<compile_context>
chip_gen: v7x
topology: tpu7x:2x2x1
jax: 0.10.0
libtpu: 0.0.40
codegen_flags: <defaults>
</compile_context>

<pallas_src>
import jax
import jax.numpy as jnp
from jax.experimental import pallas as pl
from jax.experimental.pallas import tpu as pltpu


# --------------------------- fused Pallas kernel -----------------------------

def _fused_net_kernel(x_ref, cw_ref, cb_ref, bn1s_ref, bn1t_ref,
                      w1_ref, b1_ref, bn2s_ref, bn2t_ref,
                      w2_ref, b2_ref, fc3w_ref, fc3b_ref,
                      o_ref,
                      patches_ref, acc_ref):
    """One grid step == one subnet.  Grid axis is 'arbitrary' (accumulator).

    x_ref      : (N, H+2, W+2, Cin)  padded input image, shared across steps
    cw_ref     : (1, 9*Cin, Cb)      im2col conv weight for this subnet
    cb_ref     : (1, 1, Cb)
    bn*/w*/b*  : (1, ...)            per-subnet head params (eval-mode BN)
    fc3w/fc3b  : (128, nc)/(1, nc)   shared final linear
    o_ref      : (N, nc)             written only on the last subnet step
    patches_ref: VMEM (N*H*W, 9*Cin) im2col cache (built once, step 0)
    acc_ref    : VMEM (N, 128)       ensemble-sum accumulator
    """
    s = pl.program_id(0)
    N, Hp2, Wp2, Cin = x_ref.shape
    H, W = Hp2 - 2, Wp2 - 2

    @pl.when(s == 0)
    def _init():
        acc_ref[...] = jnp.zeros_like(acc_ref)
        xp = x_ref[...]                                         # (N, H+2, W+2, Cin)
        # im2col: 9 shifted views concatenated on the lane axis -> single
        # K = 9*Cin contraction per subnet (instead of 9 K=Cin matmuls).
        patches = jnp.concatenate(
            [xp[:, kh:kh + H, kw:kw + W, :]
             for kh in range(3) for kw in range(3)],
            axis=-1)                                            # (N, H, W, 9*Cin)
        patches_ref[...] = patches.reshape(N * H * W, 9 * Cin)

    # --- backbone stand-in: 3x3 conv (pad=1) as one MXU contraction + ReLU ---
    body = jnp.dot(patches_ref[...], cw_ref[0],
                   preferred_element_type=jnp.float32) + cb_ref[0]
    body = jnp.maximum(body, 0.0)                               # (N*H*W, Cb)

    # --- AdaptiveConcatPool2d (concat order [max, avg]) + Flatten ---
    Cb = body.shape[-1]
    body = body.reshape(N, H * W, Cb)
    mx = jnp.max(body, axis=1)                                  # (N, Cb)
    avg = jnp.mean(body, axis=1)                                # (N, Cb)
    pooled = jnp.concatenate([mx, avg], axis=-1)                # (N, 2*Cb)

    # --- BN1d -> Dropout(id) -> Linear -> ReLU -> BN1d -> Dropout(id) -> Linear
    pooled = pooled * bn1s_ref[0] + bn1t_ref[0]
    h = jnp.dot(pooled, w1_ref[0], preferred_element_type=jnp.float32) + b1_ref[0]
    h = jnp.maximum(h, 0.0)
    h = h * bn2s_ref[0] + bn2t_ref[0]
    sub_feat = jnp.dot(h, w2_ref[0],
                       preferred_element_type=jnp.float32) + b2_ref[0]   # (N, 128)

    # --- ensemble sum: x_all = 0 + sum_i sub_i(x) ---
    acc_ref[...] += sub_feat

    # --- epilogue on the last subnet: fc3 = Linear(128, nc) ---
    @pl.when(s == pl.num_programs(0) - 1)
    def _finalize():
        o_ref[...] = (jnp.dot(acc_ref[...], fc3w_ref[...],
                              preferred_element_type=jnp.float32)
                      + fc3b_ref[...])


# --------------------------- wrapper ------------------------------------------

@jax.jit
def net_forward(x_nchw, params):
    # NCHW (PyTorch) -> NHWC (kernel layout); pad once for the 3x3 / pad=1 body.
    # (The padded image is ~8 KB here; keeping the pad in XLA is negligible and
    #  avoids an in-kernel relayout.)
    x = jnp.transpose(x_nchw, (0, 2, 3, 1)).astype(jnp.float32)
    N, H, W, Cin = x.shape
    x_pad = jnp.pad(x, ((0, 0), (1, 1), (1, 1), (0, 0)))        # (N, H+2, W+2, Cin)

    S = params["conv_w"].shape[0]
    feat_dim = params["w2"].shape[-1]
    nc = params["fc3_w"].shape[-1]

    def sub_spec(arr):        # per-subnet stacked param: block = one subnet slice
        return pl.BlockSpec((1,) + arr.shape[1:], lambda s: (0,) * arr.ndim[:0] or (s, 0, 0))

    # (explicit, simple index maps — per-subnet params indexed by the grid step,
    #  shared operands pinned to block 0 so they stay resident in VMEM)
    per_subnet = lambda arr: pl.BlockSpec((1,) + arr.shape[1:], lambda s: (s, 0, 0))
    shared4 = lambda arr: pl.BlockSpec(arr.shape, lambda s: (0, 0, 0, 0))
    shared2 = lambda arr: pl.BlockSpec(arr.shape, lambda s: (0, 0))

    grid_spec = pltpu.PrefetchScalarGridSpec(
        num_scalar_prefetch=0,
        grid=(S,),
        in_specs=[
            shared4(x_pad),
            per_subnet(params["conv_w"]), per_subnet(params["conv_b"]),
            per_subnet(params["bn1_scale"]), per_subnet(params["bn1_shift"]),
            per_subnet(params["w1"]), per_subnet(params["b1"]),
            per_subnet(params["bn2_scale"]), per_subnet(params["bn2_shift"]),
            per_subnet(params["w2"]), per_subnet(params["b2"]),
            shared2(params["fc3_w"]), shared2(params["fc3_b"]),
        ],
        out_specs=pl.BlockSpec((N, nc), lambda s: (0, 0)),
        scratch_shapes=[
            pltpu.VMEM((N * H * W, 9 * Cin), jnp.float32),   # im2col cache
            pltpu.VMEM((N, feat_dim), jnp.float32),          # ensemble accumulator
        ],
    )

    return pl.pallas_call(
        _fused_net_kernel,
        out_shape=jax.ShapeDtypeStruct((N, nc), jnp.float32),
        grid_spec=grid_spec,
        compiler_params=pltpu.CompilerParams(
            # subnet axis is a reduction (output block revisited) -> arbitrary
            dimension_semantics=("arbitrary",)),
    )(x_pad,
      params["conv_w"], params["conv_b"],
      params["bn1_scale"], params["bn1_shift"],
      params["w1"], params["b1"],
      params["bn2_scale"], params["bn2_shift"],
      params["w2"], params["b2"],
      params["fc3_w"], params["fc3_b"])


# --------------------------- deterministic params -----------------------------

def init_params(key, n_subnets=2, cin=3, c_body=32, hidden=512, feat=128, nc=10):
    eps = 1e-5

    def bn_eval(dim):
        # PyTorch BatchNorm1d defaults: gamma=1, beta=0, running_mean=0, running_var=1
        gamma = jnp.ones((1, dim), jnp.float32)
        beta = jnp.zeros((1, dim), jnp.float32)
        mean = jnp.zeros((1, dim), jnp.float32)
        var = jnp.ones((1, dim), jnp.float32)
        scale = gamma / jnp.sqrt(var + eps)
        shift = beta - mean * scale
        return scale, shift

    nf = 2 * c_body  # concat_pool=True doubles the pooled feature count
    conv_w, conv_b = [], []
    bn1_s, bn1_t, w1, b1, bn2_s, bn2_t, w2, b2 = ([] for _ in range(8))
    for i in range(n_subnets):
        ks = jax.random.split(jax.random.fold_in(key, i), 6)
        s1, t1 = bn_eval(nf)
        s2, t2 = bn_eval(hidden)
        # conv weight in (kh, kw, cin, cout) layout, pre-reshaped to the
        # (9*cin, cout) im2col contraction layout the kernel consumes
        # (row order matches the kernel's [kh, kw, cin] patch-concat order).
        cw = 0.1 * jax.random.normal(ks[0], (3, 3, cin, c_body), jnp.float32)
        conv_w.append(cw.reshape(9 * cin, c_body))
        conv_b.append(0.1 * jax.random.normal(ks[1], (1, c_body), jnp.float32))
        bn1_s.append(s1); bn1_t.append(t1)
        w1.append(0.05 * jax.random.normal(ks[2], (nf, hidden), jnp.float32))
        b1.append(0.05 * jax.random.normal(ks[3], (1, hidden), jnp.float32))
        bn2_s.append(s2); bn2_t.append(t2)
        w2.append(0.05 * jax.random.normal(ks[4], (hidden, feat), jnp.float32))
        b2.append(0.05 * jax.random.normal(ks[5], (1, feat), jnp.float32))

    kw_, kb_ = jax.random.split(jax.random.fold_in(key, 1000))
    return dict(
        conv_w=jnp.stack(conv_w), conv_b=jnp.stack(conv_b),
        bn1_scale=jnp.stack(bn1_s), bn1_shift=jnp.stack(bn1_t),
        w1=jnp.stack(w1), b1=jnp.stack(b1),
        bn2_scale=jnp.stack(bn2_s), bn2_shift=jnp.stack(bn2_t),
        w2=jnp.stack(w2), b2=jnp.stack(b2),
        fc3_w=0.05 * jax.random.normal(kw_, (feat, nc), jnp.float32),
        fc3_b=0.05 * jax.random.normal(kb_, (1, nc), jnp.float32),
    )


# --------------------------- main ---------------------------------------------

if __name__ == "__main__":
    key = jax.random.PRNGKey(0)
    # NCHW input like the PyTorch module (images: 3 channels)
    x = jax.random.normal(key, (2, 3, 16, 16), dtype=jnp.float32)
    params = init_params(jax.random.PRNGKey(42), n_subnets=2,
                         cin=3, c_body=32, hidden=512, feat=128, nc=10)
    out = net_forward(x, params)
    jax.block_until_ready(out)
    assert out.shape == (2, 10) and out.dtype == jnp.float32
    print("KERNEL_OK")
</pallas_src>

<mosaic_0001>
module attributes {stable_mosaic.version = 11 : i64} {
  func.func @_fused_net_kernel(%arg0: i32, %arg1: memref<2x18x18x3xf32, #tpu.memory_space<vmem>>, %arg2: memref<1x27x32xf32, #tpu.memory_space<vmem>>, %arg3: memref<1x1x32xf32, #tpu.memory_space<vmem>>, %arg4: memref<1x1x64xf32, #tpu.memory_space<vmem>>, %arg5: memref<1x1x64xf32, #tpu.memory_space<vmem>>, %arg6: memref<1x64x512xf32, #tpu.memory_space<vmem>>, %arg7: memref<1x1x512xf32, #tpu.memory_space<vmem>>, %arg8: memref<1x1x512xf32, #tpu.memory_space<vmem>>, %arg9: memref<1x1x512xf32, #tpu.memory_space<vmem>>, %arg10: memref<1x512x128xf32, #tpu.memory_space<vmem>>, %arg11: memref<1x1x128xf32, #tpu.memory_space<vmem>>, %arg12: memref<128x10xf32, #tpu.memory_space<vmem>>, %arg13: memref<1x10xf32, #tpu.memory_space<vmem>>, %arg14: memref<2x10xf32, #tpu.memory_space<vmem>>, %arg15: memref<512x27xf32, #tpu.memory_space<vmem>>, %arg16: memref<2x128xf32, #tpu.memory_space<vmem>>) attributes {dimension_semantics = [#tpu.dimension_semantics<arbitrary>], iteration_bounds = array<i64: 2>, scalar_prefetch = 0 : i64, scratch_operands = 2 : i64, tpu.core_type = #tpu.core_type<tc>, window_params = [{pipeline_mode = #tpu.pipeline_mode<synchronous>, transform_indices = @transform_0, window_bounds = array<i64: 2, 18, 18, 3>}, {transform_indices = @transform_1, window_bounds = array<i64: 1, 27, 32>}, {transform_indices = @transform_2, window_bounds = array<i64: 1, 1, 32>}, {transform_indices = @transform_3, window_bounds = array<i64: 1, 1, 64>}, {transform_indices = @transform_4, window_bounds = array<i64: 1, 1, 64>}, {transform_indices = @transform_5, window_bounds = array<i64: 1, 64, 512>}, {transform_indices = @transform_6, window_bounds = array<i64: 1, 1, 512>}, {transform_indices = @transform_7, window_bounds = array<i64: 1, 1, 512>}, {transform_indices = @transform_8, window_bounds = array<i64: 1, 1, 512>}, {transform_indices = @transform_9, window_bounds = array<i64: 1, 512, 128>}, {transform_indices = @transform_10, window_bounds = array<i64: 1, 1, 128>}, {pipeline_mode = #tpu.pipeline_mode<synchronous>, transform_indices = @transform_11, window_bounds = array<i64: 128, 10>}, {pipeline_mode = #tpu.pipeline_mode<synchronous>, transform_indices = @transform_12, window_bounds = array<i64: 1, 10>}, {pipeline_mode = #tpu.pipeline_mode<synchronous>, transform_indices = @transform_13, window_bounds = array<i64: 2, 10>}]} {
    %c0_i32 = arith.constant 0 : i32
    %0 = arith.cmpi eq, %arg0, %c0_i32 : i32
    %1 = arith.extui %0 : i1 to i32
    %c0_i32_0 = arith.constant 0 : i32
    %2 = arith.cmpi ne, %1, %c0_i32_0 : i32
    scf.if %2 {
      %cst_44 = arith.constant 0.000000e+00 : f32
      %57 = vector.broadcast %cst_44 : f32 to vector<2x128xf32>
      %c0_45 = arith.constant 0 : index
      %c0_46 = arith.constant 0 : index
      %58 = vector.load %arg16[%c0_45, %c0_46] : memref<2x128xf32, #tpu.memory_space<vmem>>, vector<2x128xf32>
      tpu.vector_store %arg16[%c0_45, %c0_46], %57 {strides = array<i32>} : memref<2x128xf32, #tpu.memory_space<vmem>>, vector<2x128xf32>,
      %c0_47 = arith.constant 0 : index
      %c0_48 = arith.constant 0 : index
      %c0_49 = arith.constant 0 : index
      %c0_50 = arith.constant 0 : index
      %59 = vector.load %arg1[%c0_47, %c0_48, %c0_49, %c0_50] : memref<2x18x18x3xf32, #tpu.memory_space<vmem>>, vector<2x18x18x3xf32>
      %60 = vector.extract_strided_slice %59 {offsets = [0, 0, 0, 0], sizes = [2, 16, 16, 3], strides = [1, 1, 1, 1]} : vector<2x18x18x3xf32> to vector<2x16x16x3xf32>
      %61 = vector.extract_strided_slice %59 {offsets = [0, 0, 1, 0], sizes = [2, 16, 16, 3], strides = [1, 1, 1, 1]} : vector<2x18x18x3xf32> to vector<2x16x16x3xf32>
      %62 = vector.extract_strided_slice %59 {offsets = [0, 0, 2, 0], sizes = [2, 16, 16, 3], strides = [1, 1, 1, 1]} : vector<2x18x18x3xf32> to vector<2x16x16x3xf32>
      %63 = vector.extract_strided_slice %59 {offsets = [0, 1, 0, 0], sizes = [2, 16, 16, 3], strides = [1, 1, 1, 1]} : vector<2x18x18x3xf32> to vector<2x16x16x3xf32>
      %64 = vector.extract_strided_slice %59 {offsets = [0, 1, 1, 0], sizes = [2, 16, 16, 3], strides = [1, 1, 1, 1]} : vector<2x18x18x3xf32> to vector<2x16x16x3xf32>
      %65 = vector.extract_strided_slice %59 {offsets = [0, 1, 2, 0], sizes = [2, 16, 16, 3], strides = [1, 1, 1, 1]} : vector<2x18x18x3xf32> to vector<2x16x16x3xf32>
      %66 = vector.extract_strided_slice %59 {offsets = [0, 2, 0, 0], sizes = [2, 16, 16, 3], strides = [1, 1, 1, 1]} : vector<2x18x18x3xf32> to vector<2x16x16x3xf32>
      %67 = vector.extract_strided_slice %59 {offsets = [0, 2, 1, 0], sizes = [2, 16, 16, 3], strides = [1, 1, 1, 1]} : vector<2x18x18x3xf32> to vector<2x16x16x3xf32>
      %68 = vector.extract_strided_slice %59 {offsets = [0, 2, 2, 0], sizes = [2, 16, 16, 3], strides = [1, 1, 1, 1]} : vector<2x18x18x3xf32> to vector<2x16x16x3xf32>
      %69 = tpu.concatenate %60, %61, %62, %63, %64, %65, %66, %67, %68 in 3 : vector<2x16x16x3xf32>, vector<2x16x16x3xf32>, vector<2x16x16x3xf32>, vector<2x16x16x3xf32>, vector<2x16x16x3xf32>, vector<2x16x16x3xf32>, vector<2x16x16x3xf32>, vector<2x16x16x3xf32>, vector<2x16x16x3xf32> -> vector<2x16x16x27xf32>
      %70 = vector.shape_cast %69 : vector<2x16x16x27xf32> to vector<512x27xf32>
      %c0_51 = arith.constant 0 : index
      %c0_52 = arith.constant 0 : index
      %71 = vector.load %arg15[%c0_51, %c0_52] : memref<512x27xf32, #tpu.memory_space<vmem>>, vector<512x27xf32>
      tpu.vector_store %arg15[%c0_51, %c0_52], %70 {strides = array<i32>} : memref<512x27xf32, #tpu.memory_space<vmem>>, vector<512x27xf32>,
    } else {
    }
    %c0 = arith.constant 0 : index
    %c0_1 = arith.constant 0 : index
    %3 = vector.load %arg15[%c0, %c0_1] : memref<512x27xf32, #tpu.memory_space<vmem>>, vector<512x27xf32>
    %c0_2 = arith.constant 0 : index
    %c0_3 = arith.constant 0 : index
    %c0_4 = arith.constant 0 : index
    %4 = vector.load %arg2[%c0_2, %c0_3, %c0_4] : memref<1x27x32xf32, #tpu.memory_space<vmem>>, vector<1x27x32xf32>
    %5 = vector.shape_cast %4 : vector<1x27x32xf32> to vector<27x32xf32>
    %cst = arith.constant dense<0.000000e+00> : vector<512x32xf32>
    %6 = tpu.matmul %3, %5, %cst {dimension_numbers = #tpu.dot_dimension_numbers<[1], [0], [0], [1], [0, 0, 1, 1], [], []>} : vector<512x27xf32>, vector<27x32xf32>, vector<512x32xf32> -> vector<512x32xf32>
    %c0_5 = arith.constant 0 : index
    %c0_6 = arith.constant 0 : index
    %c0_7 = arith.constant 0 : index
    %7 = vector.load %arg3[%c0_5, %c0_6, %c0_7] : memref<1x1x32xf32, #tpu.memory_space<vmem>>, vector<1x1x32xf32>
    %8 = vector.shape_cast %7 : vector<1x1x32xf32> to vector<1x32xf32>
    %9 = vector.broadcast %8 : vector<1x32xf32> to vector<512x32xf32>
    %10 = arith.addf %6, %9 : vector<512x32xf32>
    %cst_8 = arith.constant 0.000000e+00 : f32
    %11 = vector.broadcast %cst_8 : f32 to vector<512x32xf32>
    %12 = arith.maximumf %10, %11 : vector<512x32xf32>
    %13 = vector.shape_cast %12 : vector<512x32xf32> to vector<2x256x32xf32>
    %cst_9 = arith.constant dense<0xFF800000> : vector<2x32xf32>
    %14 = vector.multi_reduction <maximumf>, %13, %cst_9 [1] : vector<2x256x32xf32> to vector<2x32xf32>
    %cst_10 = arith.constant dense<0.000000e+00> : vector<2x32xf32>
    %15 = vector.multi_reduction <add>, %13, %cst_10 [1] : vector<2x256x32xf32> to vector<2x32xf32>
    %cst_11 = arith.constant 2.560000e+02 : f32
    %16 = vector.broadcast %cst_11 : f32 to vector<2x32xf32>
    %17 = arith.divf %15, %16 : vector<2x32xf32>
    %18 = tpu.concatenate %14, %17 in 1 : vector<2x32xf32>, vector<2x32xf32> -> vector<2x64xf32>
    %c0_12 = arith.constant 0 : index
    %c0_13 = arith.constant 0 : index
    %c0_14 = arith.constant 0 : index
    %19 = vector.load %arg4[%c0_12, %c0_13, %c0_14] : memref<1x1x64xf32, #tpu.memory_space<vmem>>, vector<1x1x64xf32>
    %20 = vector.shape_cast %19 : vector<1x1x64xf32> to vector<1x64xf32>
    %21 = vector.broadcast %20 : vector<1x64xf32> to vector<2x64xf32>
    %22 = arith.mulf %18, %21 : vector<2x64xf32>
    %c0_15 = arith.constant 0 : index
    %c0_16 = arith.constant 0 : index
    %c0_17 = arith.constant 0 : index
    %23 = vector.load %arg5[%c0_15, %c0_16, %c0_17] : memref<1x1x64xf32, #tpu.memory_space<vmem>>, vector<1x1x64xf32>
    %24 = vector.shape_cast %23 : vector<1x1x64xf32> to vector<1x64xf32>
    %25 = vector.broadcast %24 : vector<1x64xf32> to vector<2x64xf32>
    %26 = arith.addf %22, %25 : vector<2x64xf32>
    %c0_18 = arith.constant 0 : index
    %c0_19 = arith.constant 0 : index
    %c0_20 = arith.constant 0 : index
    %27 = vector.load %arg6[%c0_18, %c0_19, %c0_20] : memref<1x64x512xf32, #tpu.memory_space<vmem>>, vector<1x64x512xf32>
    %28 = vector.shape_cast %27 : vector<1x64x512xf32> to vector<64x512xf32>
    %cst_21 = arith.constant dense<0.000000e+00> : vector<2x512xf32>
    %29 = tpu.matmul %26, %28, %cst_21 {dimension_numbers = #tpu.dot_dimension_numbers<[1], [0], [0], [1], [0, 0, 1, 1], [], []>} : vector<2x64xf32>, vector<64x512xf32>, vector<2x512xf32> -> vector<2x512xf32>
    %c0_22 = arith.constant 0 : index
    %c0_23 = arith.constant 0 : index
    %c0_24 = arith.constant 0 : index
    %30 = vector.load %arg7[%c0_22, %c0_23, %c0_24] : memref<1x1x512xf32, #tpu.memory_space<vmem>>, vector<1x1x512xf32>
    %31 = vector.shape_cast %30 : vector<1x1x512xf32> to vector<1x512xf32>
    %32 = vector.broadcast %31 : vector<1x512xf32> to vector<2x512xf32>
    %33 = arith.addf %29, %32 : vector<2x512xf32>
    %cst_25 = arith.constant 0.000000e+00 : f32
    %34 = vector.broadcast %cst_25 : f32 to vector<2x512xf32>
    %35 = arith.maximumf %33, %34 : vector<2x512xf32>
    %c0_26 = arith.constant 0 : index
    %c0_27 = arith.constant 0 : index
    %c0_28 = arith.constant 0 : index
    %36 = vector.load %arg8[%c0_26, %c0_27, %c0_28] : memref<1x1x512xf32, #tpu.memory_space<vmem>>, vector<1x1x512xf32>
    %37 = vector.shape_cast %36 : vector<1x1x512xf32> to vector<1x512xf32>
    %38 = vector.broadcast %37 : vector<1x512xf32> to vector<2x512xf32>
    %39 = arith.mulf %35, %38 : vector<2x512xf32>
    %c0_29 = arith.constant 0 : index
    %c0_30 = arith.constant 0 : index
    %c0_31 = arith.constant 0 : index
    %40 = vector.load %arg9[%c0_29, %c0_30, %c0_31] : memref<1x1x512xf32, #tpu.memory_space<vmem>>, vector<1x1x512xf32>
    %41 = vector.shape_cast %40 : vector<1x1x512xf32> to vector<1x512xf32>
    %42 = vector.broadcast %41 : vector<1x512xf32> to vector<2x512xf32>
    %43 = arith.addf %39, %42 : vector<2x512xf32>
    %c0_32 = arith.constant 0 : index
    %c0_33 = arith.constant 0 : index
    %c0_34 = arith.constant 0 : index
    %44 = vector.load %arg10[%c0_32, %c0_33, %c0_34] : memref<1x512x128xf32, #tpu.memory_space<vmem>>, vector<1x512x128xf32>
    %45 = vector.shape_cast %44 : vector<1x512x128xf32> to vector<512x128xf32>
    %cst_35 = arith.constant dense<0.000000e+00> : vector<2x128xf32>
    %46 = tpu.matmul %43, %45, %cst_35 {dimension_numbers = #tpu.dot_dimension_numbers<[1], [0], [0], [1], [0, 0, 1, 1], [], []>} : vector<2x512xf32>, vector<512x128xf32>, vector<2x128xf32> -> vector<2x128xf32>
    %c0_36 = arith.constant 0 : index
    %c0_37 = arith.constant 0 : index
    %c0_38 = arith.constant 0 : index
    %47 = vector.load %arg11[%c0_36, %c0_37, %c0_38] : memref<1x1x128xf32, #tpu.memory_space<vmem>>, vector<1x1x128xf32>
    %48 = vector.shape_cast %47 : vector<1x1x128xf32> to vector<1x128xf32>
    %49 = vector.broadcast %48 : vector<1x128xf32> to vector<2x128xf32>
    %50 = arith.addf %46, %49 : vector<2x128xf32>
    %c0_39 = arith.constant 0 : index
    %c0_40 = arith.constant 0 : index
    %51 = vector.load %arg16[%c0_39, %c0_40] : memref<2x128xf32, #tpu.memory_space<vmem>>, vector<2x128xf32>
    %52 = arith.addf %51, %50 : vector<2x128xf32>
    %c0_41 = arith.constant 0 : index
    %c0_42 = arith.constant 0 : index
    %53 = vector.load %arg16[%c0_41, %c0_42] : memref<2x128xf32, #tpu.memory_space<vmem>>, vector<2x128xf32>
    tpu.vector_store %arg16[%c0_41, %c0_42], %52 {strides = array<i32>} : memref<2x128xf32, #tpu.memory_space<vmem>>, vector<2x128xf32>,
    %c1_i32 = arith.constant 1 : i32
    %54 = arith.cmpi eq, %arg0, %c1_i32 : i32
    %55 = arith.extui %54 : i1 to i32
    %c0_i32_43 = arith.constant 0 : i32
    %56 = arith.cmpi ne, %55, %c0_i32_43 : i32
    scf.if %56 {
      %c0_44 = arith.constant 0 : index
      %c0_45 = arith.constant 0 : index
      %57 = vector.load %arg16[%c0_44, %c0_45] : memref<2x128xf32, #tpu.memory_space<vmem>>, vector<2x128xf32>
      %c0_46 = arith.constant 0 : index
      %c0_47 = arith.constant 0 : index
      %58 = vector.load %arg12[%c0_46, %c0_47] : memref<128x10xf32, #tpu.memory_space<vmem>>, vector<128x10xf32>
      %cst_48 = arith.constant dense<0.000000e+00> : vector<2x10xf32>
      %59 = tpu.matmul %57, %58, %cst_48 {dimension_numbers = #tpu.dot_dimension_numbers<[1], [0], [0], [1], [0, 0, 1, 1], [], []>} : vector<2x128xf32>, vector<128x10xf32>, vector<2x10xf32> -> vector<2x10xf32>
      %c0_49 = arith.constant 0 : index
      %c0_50 = arith.constant 0 : index
      %60 = vector.load %arg13[%c0_49, %c0_50] : memref<1x10xf32, #tpu.memory_space<vmem>>, vector<1x10xf32>
      %61 = vector.broadcast %60 : vector<1x10xf32> to vector<2x10xf32>
      %62 = arith.addf %59, %61 : vector<2x10xf32>
      %c0_51 = arith.constant 0 : index
      %c0_52 = arith.constant 0 : index
      %63 = vector.load %arg14[%c0_51, %c0_52] : memref<2x10xf32, #tpu.memory_space<vmem>>, vector<2x10xf32>
      tpu.vector_store %arg14[%c0_51, %c0_52], %62 {strides = array<i32>} : memref<2x10xf32, #tpu.memory_space<vmem>>, vector<2x10xf32>,
    } else {
    }
    return
  }
  func.func @transform_0(%arg0: i32) -> (i32, i32, i32, i32) {
    %c0_i32 = arith.constant 0 : i32
    %c0_i32_0 = arith.constant 0 : i32
    %c0_i32_1 = arith.constant 0 : i32
    %c0_i32_2 = arith.constant 0 : i32
    %c0_i32_3 = arith.constant 0 : i32
    return %c0_i32, %c0_i32_0, %c0_i32_1, %c0_i32_2 : i32, i32, i32, i32
  }
  func.func @transform_1(%arg0: i32) -> (i32, i32, i32) {
    %c0_i32 = arith.constant 0 : i32
    %c0_i32_0 = arith.constant 0 : i32
    %c0_i32_1 = arith.constant 0 : i32
    return %arg0, %c0_i32, %c0_i32_0 : i32, i32, i32
  }
  func.func @transform_2(%arg0: i32) -> (i32, i32, i32) {
    %c0_i32 = arith.constant 0 : i32
    %c0_i32_0 = arith.constant 0 : i32
    %c0_i32_1 = arith.constant 0 : i32
    return %arg0, %c0_i32, %c0_i32_0 : i32, i32, i32
  }
  func.func @transform_3(%arg0: i32) -> (i32, i32, i32) {
    %c0_i32 = arith.constant 0 : i32
    %c0_i32_0 = arith.constant 0 : i32
    %c0_i32_1 = arith.constant 0 : i32
    return %arg0, %c0_i32, %c0_i32_0 : i32, i32, i32
  }
  func.func @transform_4(%arg0: i32) -> (i32, i32, i32) {
    %c0_i32 = arith.constant 0 : i32
    %c0_i32_0 = arith.constant 0 : i32
    %c0_i32_1 = arith.constant 0 : i32
    return %arg0, %c0_i32, %c0_i32_0 : i32, i32, i32
  }
  func.func @transform_5(%arg0: i32) -> (i32, i32, i32) {
    %c0_i32 = arith.constant 0 : i32
    %c0_i32_0 = arith.constant 0 : i32
    %c0_i32_1 = arith.constant 0 : i32
    return %arg0, %c0_i32, %c0_i32_0 : i32, i32, i32
  }
  func.func @transform_6(%arg0: i32) -> (i32, i32, i32) {
    %c0_i32 = arith.constant 0 : i32
    %c0_i32_0 = arith.constant 0 : i32
    %c0_i32_1 = arith.constant 0 : i32
    return %arg0, %c0_i32, %c0_i32_0 : i32, i32, i32
  }
  func.func @transform_7(%arg0: i32) -> (i32, i32, i32) {
    %c0_i32 = arith.constant 0 : i32
    %c0_i32_0 = arith.constant 0 : i32
    %c0_i32_1 = arith.constant 0 : i32
    return %arg0, %c0_i32, %c0_i32_0 : i32, i32, i32
  }
  func.func @transform_8(%arg0: i32) -> (i32, i32, i32) {
    %c0_i32 = arith.constant 0 : i32
    %c0_i32_0 = arith.constant 0 : i32
    %c0_i32_1 = arith.constant 0 : i32
    return %arg0, %c0_i32, %c0_i32_0 : i32, i32, i32
  }
  func.func @transform_9(%arg0: i32) -> (i32, i32, i32) {
    %c0_i32 = arith.constant 0 : i32
    %c0_i32_0 = arith.constant 0 : i32
    %c0_i32_1 = arith.constant 0 : i32
    return %arg0, %c0_i32, %c0_i32_0 : i32, i32, i32
  }
  func.func @transform_10(%arg0: i32) -> (i32, i32, i32) {
    %c0_i32 = arith.constant 0 : i32
    %c0_i32_0 = arith.constant 0 : i32
    %c0_i32_1 = arith.constant 0 : i32
    return %arg0, %c0_i32, %c0_i32_0 : i32, i32, i32
  }
  func.func @transform_11(%arg0: i32) -> (i32, i32) {
    %c0_i32 = arith.constant 0 : i32
    %c0_i32_0 = arith.constant 0 : i32
    %c0_i32_1 = arith.constant 0 : i32
    return %c0_i32, %c0_i32_0 : i32, i32
  }
  func.func @transform_12(%arg0: i32) -> (i32, i32) {
    %c0_i32 = arith.constant 0 : i32
    %c0_i32_0 = arith.constant 0 : i32
    %c0_i32_1 = arith.constant 0 : i32
    return %c0_i32, %c0_i32_0 : i32, i32
  }
  func.func @transform_13(%arg0: i32) -> (i32, i32) {
    %c0_i32 = arith.constant 0 : i32
    %c0_i32_0 = arith.constant 0 : i32
    %c0_i32_1 = arith.constant 0 : i32
    return %c0_i32, %c0_i32_0 : i32, i32
  }
}

</mosaic_0001>

<llo_original>
// kernel: net_forward.1
$region0: #{net_forward.1}
  #allocation0 [shape = 'u32[]', space=smem, size = 0x4, offset = 0x4, fixed_abs, tag = 'smem constant byte address 0x4 - core index']
  #allocation1 [shape = 'u32[144,128]{1,0:T(1,128)}', space=vmem, size = 0x12000, scoped, tag = 'internal scratch']
  #allocation2 [shape = 'f32[512,27]{1,0:T(8,128)}', space=vmem, size = 0x40000, scoped, tag = 'scratch operand']
  #allocation3 [shape = 'f32[2,128]{1,0:T(2,128)}', space=vmem, size = 0x400, scoped, tag = 'scratch operand']
  %s0 = inlined_call_operand.vmem [shape: f32[2,18,18,3], index: 0, kind: input, shape index: {}]
  %s1 = inlined_call_operand.vmem [shape: f32[2,27,32], index: 1, kind: input, shape index: {}]
  %s2 = inlined_call_operand.vmem [shape: f32[2,1,32], index: 2, kind: input, shape index: {}]
  %s3 = inlined_call_operand.vmem [shape: f32[2,1,64], index: 3, kind: input, shape index: {}]
  %s4 = inlined_call_operand.vmem [shape: f32[2,1,64], index: 4, kind: input, shape index: {}]
  %s5 = inlined_call_operand.vmem [shape: f32[2,64,512], index: 5, kind: input, shape index: {}]
  %s6 = inlined_call_operand.vmem [shape: f32[2,1,512], index: 6, kind: input, shape index: {}]
  %s7 = inlined_call_operand.vmem [shape: f32[2,1,512], index: 7, kind: input, shape index: {}]
  %s8 = inlined_call_operand.vmem [shape: f32[2,1,512], index: 8, kind: input, shape index: {}]
  %s9 = inlined_call_operand.vmem [shape: f32[2,512,128], index: 9, kind: input, shape index: {}]
  %s10 = inlined_call_operand.vmem [shape: f32[2,1,128], index: 10, kind: input, shape index: {}]
  %s11 = inlined_call_operand.vmem [shape: f32[128,10], index: 11, kind: input, shape index: {}]
  %s12 = inlined_call_operand.vmem [shape: f32[1,10], index: 12, kind: input, shape index: {}]
  %s13 = inlined_call_operand.hbm [shape: f32[2,10], index: 13, kind: output, shape index: {}]
  %s14 = sld [smem:[#allocation0]]
  $region93: #{net_forward.1} parent=0
    _
  %s16 = ssub.s32 1, %s14
  %s17 = scalar_select 0, %s16, %s14
  $region1: #{net_forward.1} parent=0
    #allocation4 [shape = 'u8[1024]{0}', space=vmem, size = 0x400, scoped, tag = 'output window, operand 0, single buffered']
    #allocation5 [shape = 's32[2]{0}', space=sflag, size = 0x8, scoped, tag = 'scoped memory for net_forward.1']
    %18 = vsyncpa [#allocation5], 0
    loop: start=0, step=1, limit=4
    $region2: #{net_forward.1} parent=1 // loop_pre_header
      _
    $region3: #{net_forward.1} parent=1 // loop_header
      %s20 = sphi 0, %s24
      %p21 = scmp.ge.s32.totalorder %s20, 4
      %s28 = sphi 0, %s28
      %s30 = sphi 0, %s28
      %s31 = sphi 0, %s30
      %s45 = sphi 0, %s31
      %s51 = sphi 0, %s53
      %s54 = sphi 0, %s51
      %s55 = sphi 0, %s54
      %s71 = sphi 0, %s55
      %s77 = sphi 0, %s79
      %s80 = sphi 0, %s77
      %s81 = sphi 0, %s80
      %s97 = sphi 0, %s81
      %s103 = sphi 0, %s105
      %s106 = sphi 0, %s103
      %s107 = sphi 0, %s106
      %s123 = sphi 0, %s107
      %s129 = sphi 0, %s131
      %s132 = sphi 0, %s129
      %s133 = sphi 0, %s132
      %s149 = sphi 0, %s133
      %s155 = sphi 0, %s157
      %s158 = sphi 0, %s155
      %s159 = sphi 0, %s158
      %s175 = sphi 0, %s159
      %s181 = sphi 0, %s183
      %s184 = sphi 0, %s181
      %s185 = sphi 0, %s184
      %s201 = sphi 0, %s185
      %s207 = sphi 0, %s209
      %s210 = sphi 0, %s207
      %s211 = sphi 0, %s210
      %s227 = sphi 0, %s211
      %s233 = sphi 0, %s235
      %s236 = sphi 0, %s233
      %s237 = sphi 0, %s236
      %s253 = sphi 0, %s237
      %s259 = sphi 0, %s261
      %s262 = sphi 0, %s259
      %s263 = sphi 0, %s262
      %s279 = sphi 0, %s263
      %s285 = sphi 0, %s287
      %s288 = sphi 0, %s285
      %s289 = sphi 0, %s288
      %s305 = sphi 0, %s289
      %s309 = sphi 0, %s309
      %s311 = sphi 0, %s309
      %s312 = sphi 0, %s311
      %s326 = sphi 0, %s312
      %s330 = sphi 0, %s330
      %s332 = sphi 0, %s330
      %s333 = sphi 0, %s332
      %s347 = sphi 0, %s333
      %s351 = sphi 0, %s351
      %s353 = sphi 0, %s351
      %s354 = sphi 0, %s353
      %s368 = sphi 0, %s354
    $region4: #{net_forward.1} parent=1 // loop_header_branch
      %23 = sbr.rel (%p21) target = $region8
    $region5: #{net_forward.1} parent=1 // loop_body
      %s25 = ssub.s32 %s20, 1
      %s26 = ssub.s32 %s20, 2
      %s27 = sadd.s32 %s20, 1
      %s29 = sadd.s32 %s28, 1
      %p32 = scmp.eq.s32.totalorder %s20, 1
      %p33 = scmp.ne.s32.totalorder %s28, %s30
      %p34 = scmp.eq.s32.totalorder %s20, 0
      %p35 = por %p33, %p34
      %p36 = scmp.ne.s32.totalorder %s28, %s30
      %p37 = scmp.eq.s32.totalorder %s25, 1
      %p38 = por %p36, %p37
      %p39 = scmp.ne.s32.totalorder %s30, %s31
      %p40 = scmp.eq.s32.totalorder %s25, 0
      %p41 = por %p39, %p40
      %p42 = scmp.ne.s32.totalorder %s30, %s31
      %p43 = scmp.eq.s32.totalorder %s26, 1
      %p44 = por %p42, %p43
      %p46 = scmp.ne.s32.totalorder %s31, %s45
      %p47 = scmp.eq.s32.totalorder %s26, 0
      %p48 = por %p46, %p47
      %s49 = ssub.s32 %s20, %s27
      %p50 = scmp.eq.s32.totalorder %s49, 0
      %s52 = sadd.s32 %s51, 1
      %s53 = scalar_select %p50, %s51, %s52
      %p56 = pneg %p50
      %p57 = scmp.eq.s32.totalorder %s20, 1
      %p58 = por %p56, %p57
      %p59 = scmp.ne.s32.totalorder %s51, %s54
      %p60 = scmp.eq.s32.totalorder %s20, 0
      %p61 = por %p59, %p60
      %p62 = scmp.ne.s32.totalorder %s51, %s54
      %p63 = scmp.eq.s32.totalorder %s25, 1
      %p64 = por %p62, %p63
      %p65 = scmp.ne.s32.totalorder %s54, %s55
      %p66 = scmp.eq.s32.totalorder %s25, 0
      %p67 = por %p65, %p66
      %p68 = scmp.ne.s32.totalorder %s54, %s55
      %p69 = scmp.eq.s32.totalorder %s26, 1
      %p70 = por %p68, %p69
      %p72 = scmp.ne.s32.totalorder %s55, %s71
      %p73 = scmp.eq.s32.totalorder %s26, 0
      %p74 = por %p72, %p73
      %s75 = ssub.s32 %s20, %s27
      %p76 = scmp.eq.s32.totalorder %s75, 0
      %s78 = sadd.s32 %s77, 1
      %s79 = scalar_select %p76, %s77, %s78
      %p82 = pneg %p76
      %p83 = scmp.eq.s32.totalorder %s20, 1
      %p84 = por %p82, %p83
      %p85 = scmp.ne.s32.totalorder %s77, %s80
      %p86 = scmp.eq.s32.totalorder %s20, 0
      %p87 = por %p85, %p86
      %p88 = scmp.ne.s32.totalorder %s77, %s80
      %p89 = scmp.eq.s32.totalorder %s25, 1
      %p90 = por %p88, %p89
      %p91 = scmp.ne.s32.totalorder %s80, %s81
      %p92 = scmp.eq.s32.totalorder %s25, 0
      %p93 = por %p91, %p92
      %p94 = scmp.ne.s32.totalorder %s80, %s81
      %p95 = scmp.eq.s32.totalorder %s26, 1
      %p96 = por %p94, %p95
      %p98 = scmp.ne.s32.totalorder %s81, %s97
      %p99 = scmp.eq.s32.totalorder %s26, 0
      %p100 = por %p98, %p99
      %s101 = ssub.s32 %s20, %s27
      %p102 = scmp.eq.s32.totalorder %s101, 0
      %s104 = sadd.s32 %s103, 1
      %s105 = scalar_select %p102, %s103, %s104
      %p108 = pneg %p102
      %p109 = scmp.eq.s32.totalorder %s20, 1
      %p110 = por %p108, %p109
      %p111 = scmp.ne.s32.totalorder %s103, %s106
      %p112 = scmp.eq.s32.totalorder %s20, 0
      %p113 = por %p111, %p112
      %p114 = scmp.ne.s32.totalorder %s103, %s106
      %p115 = scmp.eq.s32.totalorder %s25, 1
      %p116 = por %p114, %p115
      %p117 = scmp.ne.s32.totalorder %s106, %s107
      %p118 = scmp.eq.s32.totalorder %s25, 0
      %p119 = por %p117, %p118
      %p120 = scmp.ne.s32.totalorder %s106, %s107
      %p121 = scmp.eq.s32.totalorder %s26, 1
      %p122 = por %p120, %p121
      %p124 = scmp.ne.s32.totalorder %s107, %s123
      %p125 = scmp.eq.s32.totalorder %s26, 0
      %p126 = por %p124, %p125
      %s127 = ssub.s32 %s20, %s27
      %p128 = scmp.eq.s32.totalorder %s127, 0
      %s130 = sadd.s32 %s129, 1
      %s131 = scalar_select %p128, %s129, %s130
      %p134 = pneg %p128
      %p135 = scmp.eq.s32.totalorder %s20, 1
      %p136 = por %p134, %p135
      %p137 = scmp.ne.s32.totalorder %s129, %s132
      %p138 = scmp.eq.s32.totalorder %s20, 0
      %p139 = por %p137, %p138
      %p140 = scmp.ne.s32.totalorder %s129, %s132
      %p141 = scmp.eq.s32.totalorder %s25, 1
      %p142 = por %p140, %p141
      %p143 = scmp.ne.s32.totalorder %s132, %s133
      %p144 = scmp.eq.s32.totalorder %s25, 0
      %p145 = por %p143, %p144
      %p146 = scmp.ne.s32.totalorder %s132, %s133
      %p147 = scmp.eq.s32.totalorder %s26, 1
      %p148 = por %p146, %p147
      %p150 = scmp.ne.s32.totalorder %s133, %s149
      %p151 = scmp.eq.s32.totalorder %s26, 0
      %p152 = por %p150, %p151
      %s153 = ssub.s32 %s20, %s27
      %p154 = scmp.eq.s32.totalorder %s153, 0
      %s156 = sadd.s32 %s155, 1
      %s157 = scalar_select %p154, %s155, %s156
      %p160 = pneg %p154
      %p161 = scmp.eq.s32.totalorder %s20, 1
      %p162 = por %p160, %p161
      %p163 = scmp.ne.s32.totalorder %s155, %s158
      %p164 = scmp.eq.s32.totalorder %s20, 0
      %p165 = por %p163, %p164
      %p166 = scmp.ne.s32.totalorder %s155, %s158
      %p167 = scmp.eq.s32.totalorder %s25, 1
      %p168 = por %p166, %p167
      %p169 = scmp.ne.s32.totalorder %s158, %s159
      %p170 = scmp.eq.s32.totalorder %s25, 0
      %p171 = por %p169, %p170
      %p172 = scmp.ne.s32.totalorder %s158, %s159
      %p173 = scmp.eq.s32.totalorder %s26, 1
      %p174 = por %p172, %p173
      %p176 = scmp.ne.s32.totalorder %s159, %s175
      %p177 = scmp.eq.s32.totalorder %s26, 0
      %p178 = por %p176, %p177
      %s179 = ssub.s32 %s20, %s27
      %p180 = scmp.eq.s32.totalorder %s179, 0
      %s182 = sadd.s32 %s181, 1
      %s183 = scalar_select %p180, %s181, %s182
      %p186 = pneg %p180
      %p187 = scmp.eq.s32.totalorder %s20, 1
      %p188 = por %p186, %p187
      %p189 = scmp.ne.s32.totalorder %s181, %s184
      %p190 = scmp.eq.s32.totalorder %s20, 0
      %p191 = por %p189, %p190
      %p192 = scmp.ne.s32.totalorder %s181, %s184
      %p193 = scmp.eq.s32.totalorder %s25, 1
      %p194 = por %p192, %p193
      %p195 = scmp.ne.s32.totalorder %s184, %s185
      %p196 = scmp.eq.s32.totalorder %s25, 0
      %p197 = por %p195, %p196
      %p198 = scmp.ne.s32.totalorder %s184, %s185
      %p199 = scmp.eq.s32.totalorder %s26, 1
      %p200 = por %p198, %p199
      %p202 = scmp.ne.s32.totalorder %s185, %s201
      %p203 = scmp.eq.s32.totalorder %s26, 0
      %p204 = por %p202, %p203
      %s205 = ssub.s32 %s20, %s27
      %p206 = scmp.eq.s32.totalorder %s205, 0
      %s208 = sadd.s32 %s207, 1
      %s209 = scalar_select %p206, %s207, %s208
      %p212 = pneg %p206
      %p213 = scmp.eq.s32.totalorder %s20, 1
      %p214 = por %p212, %p213
      %p215 = scmp.ne.s32.totalorder %s207, %s210
      %p216 = scmp.eq.s32.totalorder %s20, 0
      %p217 = por %p215, %p216
      %p218 = scmp.ne.s32.totalorder %s207, %s210
      %p219 = scmp.eq.s32.totalorder %s25, 1
      %p220 = por %p218, %p219
      %p221 = scmp.ne.s32.totalorder %s210, %s211
      %p222 = scmp.eq.s32.totalorder %s25, 0
      %p223 = por %p221, %p222
      %p224 = scmp.ne.s32.totalorder %s210, %s211
      %p225 = scmp.eq.s32.totalorder %s26, 1
      %p226 = por %p224, %p225
      %p228 = scmp.ne.s32.totalorder %s211, %s227
      %p229 = scmp.eq.s32.totalorder %s26, 0
      %p230 = por %p228, %p229
      %s231 = ssub.s32 %s20, %s27
      %p232 = scmp.eq.s32.totalorder %s231, 0
      %s234 = sadd.s32 %s233, 1
      %s235 = scalar_select %p232, %s233, %s234
      %p238 = pneg %p232
      %p239 = scmp.eq.s32.totalorder %s20, 1
      %p240 = por %p238, %p239
      %p241 = scmp.ne.s32.totalorder %s233, %s236
      %p242 = scmp.eq.s32.totalorder %s20, 0
      %p243 = por %p241, %p242
      %p244 = scmp.ne.s32.totalorder %s233, %s236
      %p245 = scmp.eq.s32.totalorder %s25, 1
      %p246 = por %p244, %p245
      %p247 = scmp.ne.s32.totalorder %s236, %s237
      %p248 = scmp.eq.s32.totalorder %s25, 0
      %p249 = por %p247, %p248
      %p250 = scmp.ne.s32.totalorder %s236, %s237
      %p251 = scmp.eq.s32.totalorder %s26, 1
      %p252 = por %p250, %p251
      %p254 = scmp.ne.s32.totalorder %s237, %s253
      %p255 = scmp.eq.s32.totalorder %s26, 0
      %p256 = por %p254, %p255
      %s257 = ssub.s32 %s20, %s27
      %p258 = scmp.eq.s32.totalorder %s257, 0
      %s260 = sadd.s32 %s259, 1
      %s261 = scalar_select %p258, %s259, %s260
      %p264 = pneg %p258
      %p265 = scmp.eq.s32.totalorder %s20, 1
      %p266 = por %p264, %p265
      %p267 = scmp.ne.s32.totalorder %s259, %s262
      %p268 = scmp.eq.s32.totalorder %s20, 0
      %p269 = por %p267, %p268
      %p270 = scmp.ne.s32.totalorder %s259, %s262
      %p271 = scmp.eq.s32.totalorder %s25, 1
      %p272 = por %p270, %p271
      %p273 = scmp.ne.s32.totalorder %s262, %s263
      %p274 = scmp.eq.s32.totalorder %s25, 0
      %p275 = por %p273, %p274
      %p276 = scmp.ne.s32.totalorder %s262, %s263
      %p277 = scmp.eq.s32.totalorder %s26, 1
      %p278 = por %p276, %p277
      %p280 = scmp.ne.s32.totalorder %s263, %s279
      %p281 = scmp.eq.s32.totalorder %s26, 0
      %p282 = por %p280, %p281
      %s283 = ssub.s32 %s20, %s27
      %p284 = scmp.eq.s32.totalorder %s283, 0
      %s286 = sadd.s32 %s285, 1
      %s287 = scalar_select %p284, %s285, %s286
      %p290 = pneg %p284
      %p291 = scmp.eq.s32.totalorder %s20, 1
      %p292 = por %p290, %p291
      %p293 = scmp.ne.s32.totalorder %s285, %s288
      %p294 = scmp.eq.s32.totalorder %s20, 0
      %p295 = por %p293, %p294
      %p296 = scmp.ne.s32.totalorder %s285, %s288
      %p297 = scmp.eq.s32.totalorder %s25, 1
      %p298 = por %p296, %p297
      %p299 = scmp.ne.s32.totalorder %s288, %s289
      %p300 = scmp.eq.s32.totalorder %s25, 0
      %p301 = por %p299, %p300
      %p302 = scmp.ne.s32.totalorder %s288, %s289
      %p303 = scmp.eq.s32.totalorder %s26, 1
      %p304 = por %p302, %p303
      %p306 = scmp.ne.s32.totalorder %s289, %s305
      %p307 = scmp.eq.s32.totalorder %s26, 0
      %p308 = por %p306, %p307
      %s310 = sadd.s32 %s309, 1
      %p313 = scmp.eq.s32.totalorder %s20, 1
      %p314 = scmp.ne.s32.totalorder %s309, %s311
      %p315 = scmp.eq.s32.totalorder %s20, 0
      %p316 = por %p314, %p315
      %p317 = scmp.ne.s32.totalorder %s309, %s311
      %p318 = scmp.eq.s32.totalorder %s25, 1
      %p319 = por %p317, %p318
      %p320 = scmp.ne.s32.totalorder %s311, %s312
      %p321 = scmp.eq.s32.totalorder %s25, 0
      %p322 = por %p320, %p321
      %p323 = scmp.ne.s32.totalorder %s311, %s312
      %p324 = scmp.eq.s32.totalorder %s26, 1
      %p325 = por %p323, %p324
      %p327 = scmp.ne.s32.totalorder %s312, %s326
      %p328 = scmp.eq.s32.totalorder %s26, 0
      %p329 = por %p327, %p328
      %s331 = sadd.s32 %s330, 1
      %p334 = scmp.eq.s32.totalorder %s20, 1
      %p335 = scmp.ne.s32.totalorder %s330, %s332
      %p336 = scmp.eq.s32.totalorder %s20, 0
      %p337 = por %p335, %p336
      %p338 = scmp.ne.s32.totalorder %s330, %s332
      %p339 = scmp.eq.s32.totalorder %s25, 1
      %p340 = por %p338, %p339
      %p341 = scmp.ne.s32.totalorder %s332, %s333
      %p342 = scmp.eq.s32.totalorder %s25, 0
      %p343 = por %p341, %p342
      %p344 = scmp.ne.s32.totalorder %s332, %s333
      %p345 = scmp.eq.s32.totalorder %s26, 1
      %p346 = por %p344, %p345
      %p348 = scmp.ne.s32.totalorder %s333, %s347
      %p349 = scmp.eq.s32.totalorder %s26, 0
      %p350 = por %p348, %p349
      %s352 = sadd.s32 %s351, 1
      %p355 = scmp.eq.s32.totalorder %s20, 1
      %p356 = scmp.ne.s32.totalorder %s351, %s353
      %p357 = scmp.eq.s32.totalorder %s20, 0
      %p358 = por %p356, %p357
      %p359 = scmp.ne.s32.totalorder %s351, %s353
      %p360 = scmp.eq.s32.totalorder %s25, 1
      %p361 = por %p359, %p360
      %p362 = scmp.ne.s32.totalorder %s353, %s354
      %p363 = scmp.eq.s32.totalorder %s25, 0
      %p364 = por %p362, %p363
      %p365 = scmp.ne.s32.totalorder %s353, %s354
      %p366 = scmp.eq.s32.totalorder %s26, 1
      %p367 = por %p365, %p366
      %p369 = scmp.ne.s32.totalorder %s354, %s368
      %p370 = scmp.eq.s32.totalorder %s26, 0
      %p371 = por %p369, %p370
      %p372 = scmp.le.s32.totalorder 1, %s20
      %p373 = scmp.lt.s32.totalorder %s20, 3
      %p374 = pnand %p372, %p373
      %p375 = pneg %p374
      // Predicated region
      $region9: #{net_forward.1} parent=5 // pred_check
        _
      $region10: #{net_forward.1} parent=5 // pred_check_branch
        %377 = sbr.rel (%p374) target = $region12
      $region11: #{net_forward.1} parent=5 // pred_region
        %s378 = ssub.s32 %s20, 1
        // Predicated region
        $region13: #{net_forward.1} parent=11 // pred_check
          %p379 = pneg %p41
        $region14: #{net_forward.1} parent=11 // pred_check_branch
          %381 = sbr.rel (%p379) target = $region16
        $region15: #{net_forward.1} parent=11 // pred_region
          _
        $region16: #{net_forward.1} parent=11 // pred_fallthru
          _
        // Predicated region
        $region17: #{net_forward.1} parent=11 // pred_check
          %p382 = pneg %p322
        $region18: #{net_forward.1} parent=11 // pred_check_branch
          %384 = sbr.rel (%p382) target = $region20
        $region19: #{net_forward.1} parent=11 // pred_region
          _
        $region20: #{net_forward.1} parent=11 // pred_fallthru
          _
        // Predicated region
        $region21: #{net_forward.1} parent=11 // pred_check
          %p385 = pneg %p343
        $region22: #{net_forward.1} parent=11 // pred_check_branch
          %387 = sbr.rel (%p385) target = $region24
        $region23: #{net_forward.1} parent=11 // pred_region
          _
        $region24: #{net_forward.1} parent=11 // pred_fallthru
          _
      $region12: #{net_forward.1} parent=5 // pred_fallthru
        _
      %p388 = scmp.lt.s32.totalorder %s20, 2
      // Predicated region
      $region25: #{net_forward.1} parent=5 // pred_check
        %p389 = pneg %p388
      $region26: #{net_forward.1} parent=5 // pred_check_branch
        %391 = sbr.rel (%p389) target = $region28
      $region27: #{net_forward.1} parent=5 // pred_region
        // Predicated region
        $region29: #{net_forward.1} parent=27 // pred_check
          %p392 = pneg %p61
        $region30: #{net_forward.1} parent=27 // pred_check_branch
          %394 = sbr.rel (%p392) target = $region32
        $region31: #{net_forward.1} parent=27 // pred_region
          %p395 = scmp.lt.s32.totalorder %s20, 1
          %s396 = scalar_select %p395, %s20, 1
          %s397 = smul.addr %s396, 4
          %s398 = smul.addr %s397, 8
          %s399 = scalar_lea.vmem %s1, %s398
        $region32: #{net_forward.1} parent=27 // pred_fallthru
          _
        // Predicated region
        $region33: #{net_forward.1} parent=27 // pred_check
          %p400 = pneg %p87
        $region34: #{net_forward.1} parent=27 // pred_check_branch
          %402 = sbr.rel (%p400) target = $region36
        $region35: #{net_forward.1} parent=27 // pred_region
          %p403 = scmp.lt.s32.totalorder %s20, 1
          %s404 = scalar_select %p403, %s20, 1
          %s405 = scalar_lea.vmem %s2, %s404
        $region36: #{net_forward.1} parent=27 // pred_fallthru
          _
        // Predicated region
        $region37: #{net_forward.1} parent=27 // pred_check
          %p406 = pneg %p113
        $region38: #{net_forward.1} parent=27 // pred_check_branch
          %408 = sbr.rel (%p406) target = $region40
        $region39: #{net_forward.1} parent=27 // pred_region
          %p409 = scmp.lt.s32.totalorder %s20, 1
          %s410 = scalar_select %p409, %s20, 1
          %s411 = scalar_lea.vmem %s3, %s410
        $region40: #{net_forward.1} parent=27 // pred_fallthru
          _
        // Predicated region
        $region41: #{net_forward.1} parent=27 // pred_check
          %p412 = pneg %p139
        $region42: #{net_forward.1} parent=27 // pred_check_branch
          %414 = sbr.rel (%p412) target = $region44
        $region43: #{net_forward.1} parent=27 // pred_region
          %p415 = scmp.lt.s32.totalorder %s20, 1
          %s416 = scalar_select %p415, %s20, 1
          %s417 = scalar_lea.vmem %s4, %s416
        $region44: #{net_forward.1} parent=27 // pred_fallthru
          _
        // Predicated region
        $region45: #{net_forward.1} parent=27 // pred_check
          %p418 = pneg %p165
        $region46: #{net_forward.1} parent=27 // pred_check_branch
          %420 = sbr.rel (%p418) target = $region48
        $region47: #{net_forward.1} parent=27 // pred_region
          %p421 = scmp.lt.s32.totalorder %s20, 1
          %s422 = scalar_select %p421, %s20, 1
          %s423 = smul.addr %s422, 32
          %s424 = smul.addr %s423, 8
          %s425 = scalar_lea.vmem %s5, %s424
        $region48: #{net_forward.1} parent=27 // pred_fallthru
          _
        // Predicated region
        $region49: #{net_forward.1} parent=27 // pred_check
          %p426 = pneg %p191
        $region50: #{net_forward.1} parent=27 // pred_check_branch
          %428 = sbr.rel (%p426) target = $region52
        $region51: #{net_forward.1} parent=27 // pred_region
          %p429 = scmp.lt.s32.totalorder %s20, 1
          %s430 = scalar_select %p429, %s20, 1
          %s431 = smul.addr %s430, 4
          %s432 = scalar_lea.vmem %s6, %s431
        $region52: #{net_forward.1} parent=27 // pred_fallthru
          _
        // Predicated region
        $region53: #{net_forward.1} parent=27 // pred_check
          %p433 = pneg %p217
        $region54: #{net_forward.1} parent=27 // pred_check_branch
          %435 = sbr.rel (%p433) target = $region56
        $region55: #{net_forward.1} parent=27 // pred_region
          %p436 = scmp.lt.s32.totalorder %s20, 1
          %s437 = scalar_select %p436, %s20, 1
          %s438 = smul.addr %s437, 4
          %s439 = scalar_lea.vmem %s7, %s438
        $region56: #{net_forward.1} parent=27 // pred_fallthru
          _
        // Predicated region
        $region57: #{net_forward.1} parent=27 // pred_check
          %p440 = pneg %p243
        $region58: #{net_forward.1} parent=27 // pred_check_branch
          %442 = sbr.rel (%p440) target = $region60
        $region59: #{net_forward.1} parent=27 // pred_region
          %p443 = scmp.lt.s32.totalorder %s20, 1
          %s444 = scalar_select %p443, %s20, 1
          %s445 = smul.addr %s444, 4
          %s446 = scalar_lea.vmem %s8, %s445
        $region60: #{net_forward.1} parent=27 // pred_fallthru
          _
        // Predicated region
        $region61: #{net_forward.1} parent=27 // pred_check
          %p447 = pneg %p269
        $region62: #{net_forward.1} parent=27 // pred_check_branch
          %449 = sbr.rel (%p447) target = $region64
        $region63: #{net_forward.1} parent=27 // pred_region
          %p450 = scmp.lt.s32.totalorder %s20, 1
          %s451 = scalar_select %p450, %s20, 1
          %s452 = smul.addr %s451, 64
          %s453 = smul.addr %s452, 8
          %s454 = scalar_lea.vmem %s9, %s453
        $region64: #{net_forward.1} parent=27 // pred_fallthru
          _
        // Predicated region
        $region65: #{net_forward.1} parent=27 // pred_check
          %p455 = pneg %p295
        $region66: #{net_forward.1} parent=27 // pred_check_branch
          %457 = sbr.rel (%p455) target = $region68
        $region67: #{net_forward.1} parent=27 // pred_region
          %p458 = scmp.lt.s32.totalorder %s20, 1
          %s459 = scalar_select %p458, %s20, 1
          %s460 = scalar_lea.vmem %s10, %s459
        $region68: #{net_forward.1} parent=27 // pred_fallthru
          _
      $region28: #{net_forward.1} parent=5 // pred_fallthru
        _
      %p461 = scmp.le.s32.totalorder 1, %s20
      %p462 = scmp.lt.s32.totalorder %s20, 3
      %p463 = pnand %p461, %p462
      %p464 = pneg %p463
      // Predicated region
      $region69: #{net_forward.1} parent=5 // pred_check
        _
      $region70: #{net_forward.1} parent=5 // pred_check_branch
        %466 = sbr.rel (%p463) target = $region72
      $region71: #{net_forward.1} parent=5 // pred_region
        %s467 = ssub.s32 %s20, 1
        %p468 = pneg %p41
        %p469 = pneg %p38
        %p470 = scmp.lt.s32.totalorder %s25, 1
        %s471 = scalar_select %p470, %s25, 1
        %s472 = smul.addr %s471, 4
        %s473 = smul.addr %s472, 8
        %s474 = scalar_lea.vmem %s1, %s473
        %p475 = pneg %p67
        %p476 = pneg %p64
        %p477 = scmp.lt.s32.totalorder %s25, 1
        %s478 = scalar_select %p477, %s25, 1
        %s479 = scalar_lea.vmem %s2, %s478
        %p480 = pneg %p93
        %p481 = pneg %p90
        %p482 = scmp.lt.s32.totalorder %s25, 1
        %s483 = scalar_select %p482, %s25, 1
        %s484 = scalar_lea.vmem %s3, %s483
        %p485 = pneg %p119
        %p486 = pneg %p116
        %p487 = scmp.lt.s32.totalorder %s25, 1
        %s488 = scalar_select %p487, %s25, 1
        %s489 = scalar_lea.vmem %s4, %s488
        %p490 = pneg %p145
        %p491 = pneg %p142
        %p492 = scmp.lt.s32.totalorder %s25, 1
        %s493 = scalar_select %p492, %s25, 1
        %s494 = smul.addr %s493, 32
        %s495 = smul.addr %s494, 8
        %s496 = scalar_lea.vmem %s5, %s495
        %p497 = pneg %p171
        %p498 = pneg %p168
        %p499 = scmp.lt.s32.totalorder %s25, 1
        %s500 = scalar_select %p499, %s25, 1
        %s501 = smul.addr %s500, 4
        %s502 = scalar_lea.vmem %s6, %s501
        %p503 = pneg %p197
        %p504 = pneg %p194
        %p505 = scmp.lt.s32.totalorder %s25, 1
        %s506 = scalar_select %p505, %s25, 1
        %s507 = smul.addr %s506, 4
        %s508 = scalar_lea.vmem %s7, %s507
        %p509 = pneg %p223
        %p510 = pneg %p220
        %p511 = scmp.lt.s32.totalorder %s25, 1
        %s512 = scalar_select %p511, %s25, 1
        %s513 = smul.addr %s512, 4
        %s514 = scalar_lea.vmem %s8, %s513
        %p515 = pneg %p249
        %p516 = pneg %p246
        %p517 = scmp.lt.s32.totalorder %s25, 1
        %s518 = scalar_select %p517, %s25, 1
        %s519 = smul.addr %s518, 64
        %s520 = smul.addr %s519, 8
        %s521 = scalar_lea.vmem %s9, %s520
        %p522 = pneg %p275
        %p523 = pneg %p272
        %p524 = scmp.lt.s32.totalorder %s25, 1
        %s525 = scalar_select %p524, %s25, 1
        %s526 = scalar_lea.vmem %s10, %s525
        %p527 = pneg %p301
        %p528 = pneg %p298
        %p529 = pneg %p322
        %p530 = pneg %p319
        %p531 = pneg %p343
        %p532 = pneg %p340
        %p533 = pneg %p364
        %p534 = pneg %p361
        %p535 = scmp.lt.s32.totalorder %s25, 1
        %s536 = scalar_select %p535, %s25, 1
        %s537 = smul.addr %s536, 4
        %s538 = smul.addr %s537, 8
        %s539 = scalar_lea.vmem %s1, %s538
        %p540 = scmp.lt.s32.totalorder %s25, 1
        %s541 = scalar_select %p540, %s25, 1
        %s542 = scalar_lea.vmem %s2, %s541
        %p543 = scmp.lt.s32.totalorder %s25, 1
        %s544 = scalar_select %p543, %s25, 1
        %s545 = scalar_lea.vmem %s3, %s544
        %p546 = scmp.lt.s32.totalorder %s25, 1
        %s547 = scalar_select %p546, %s25, 1
        %s548 = scalar_lea.vmem %s4, %s547
        %p549 = scmp.lt.s32.totalorder %s25, 1
        %s550 = scalar_select %p549, %s25, 1
        %s551 = smul.addr %s550, 32
        %s552 = smul.addr %s551, 8
        %s553 = scalar_lea.vmem %s5, %s552
        %p554 = scmp.lt.s32.totalorder %s25, 1
        %s555 = scalar_select %p554, %s25, 1
        %s556 = smul.addr %s555, 4
        %s557 = scalar_lea.vmem %s6, %s556
        %p558 = scmp.lt.s32.totalorder %s25, 1
        %s559 = scalar_select %p558, %s25, 1
        %s560 = smul.addr %s559, 4
        %s561 = scalar_lea.vmem %s7, %s560
        %p562 = scmp.lt.s32.totalorder %s25, 1
        %s563 = scalar_select %p562, %s25, 1
        %s564 = smul.addr %s563, 4
        %s565 = scalar_lea.vmem %s8, %s564
        %p566 = scmp.lt.s32.totalorder %s25, 1
        %s567 = scalar_select %p566, %s25, 1
        %s568 = smul.addr %s567, 64
        %s569 = smul.addr %s568, 8
        %s570 = scalar_lea.vmem %s9, %s569
        %p571 = scmp.lt.s32.totalorder %s25, 1
        %s572 = scalar_select %p571, %s25, 1
        %s573 = scalar_lea.vmem %s10, %s572
        %p574 = scmp.eq.s32.totalorder %s25, 0
        // Predicated region
        $region73: #{net_forward.1} parent=71 // pred_check
          %p575 = pneg %p574
        $region74: #{net_forward.1} parent=71 // pred_check_branch
          %577 = sbr.rel (%p575) target = $region76
        $region75: #{net_forward.1} parent=71 // pred_region
          %578 = vst [vmem:[#allocation3] sm:$0x3] 0.0
          %v579 = vld [vmem:[%s0] sm:$0xff]
          %v580 = vld [vmem:[%s0 + $0x8] sm:$0xff]
          %v581 = vld [vmem:[%s0 + $0x10] sm:$0x3]
          %v582 = vld [vmem:[%s0 + $0x18] sm:$0xff]
          %v583 = vld [vmem:[%s0 + $0x20] sm:$0xff]
          %v584 = vld [vmem:[%s0 + $0x28] sm:$0x3]
          %v585 = vld [vmem:[%s0 + $0x30] sm:$0xff]
          %v586 = vld [vmem:[%s0 + $0x38] sm:$0xff]
          %v587 = vld [vmem:[%s0 + $0x40] sm:$0x3]
          %v588 = vld [vmem:[%s0 + $0x48] sm:$0xff]
          %v589 = vld [vmem:[%s0 + $0x50] sm:$0xff]
          %v590 = vld [vmem:[%s0 + $0x58] sm:$0x3]
          %v591 = vld [vmem:[%s0 + $0x60] sm:$0xff]
          %v592 = vld [vmem:[%s0 + $0x68] sm:$0xff]
          %v593 = vld [vmem:[%s0 + $0x70] sm:$0x3]
          %v594 = vld [vmem:[%s0 + $0x78] sm:$0xff]
          %v595 = vld [vmem:[%s0 + $0x80] sm:$0xff]
          %v596 = vld [vmem:[%s0 + $0x88] sm:$0x3]
          %v597 = vld [vmem:[%s0 + $0x90] sm:$0xff]
          %v598 = vld [vmem:[%s0 + $0x98] sm:$0xff]
          %v599 = vld [vmem:[%s0 + $0xa0] sm:$0x3]
          %v600 = vld [vmem:[%s0 + $0xa8] sm:$0xff]
          %v601 = vld [vmem:[%s0 + $0xb0] sm:$0xff]
          %v602 = vld [vmem:[%s0 + $0xb8] sm:$0x3]
          %v603 = vld [vmem:[%s0 + $0xc0] sm:$0xff]
          %v604 = vld [vmem:[%s0 + $0xc8] sm:$0xff]
          %v605 = vld [vmem:[%s0 + $0xd0] sm:$0x3]
          %v606 = vld [vmem:[%s0 + $0xd8] sm:$0xff]
          %v607 = vld [vmem:[%s0 + $0xe0] sm:$0xff]
          %v608 = vld [vmem:[%s0 + $0xe8] sm:$0x3]
          %v609 = vld [vmem:[%s0 + $0xf0] sm:$0xff]
          %v610 = vld [vmem:[%s0 + $0xf8] sm:$0xff]
          %v611 = vld [vmem:[%s0 + $0x100] sm:$0x3]
          %v612 = vld [vmem:[%s0 + $0x108] sm:$0xff]
          %v613 = vld [vmem:[%s0 + $0x110] sm:$0xff]
          %v614 = vld [vmem:[%s0 + $0x118] sm:$0x3]
          %v615 = vld [vmem:[%s0 + $0x120] sm:$0xff]
          %v616 = vld [vmem:[%s0 + $0x128] sm:$0xff]
          %v617 = vld [vmem:[%s0 + $0x130] sm:$0x3]
          %v618 = vld [vmem:[%s0 + $0x138] sm:$0xff]
          %v619 = vld [vmem:[%s0 + $0x140] sm:$0xff]
          %v620 = vld [vmem:[%s0 + $0x148] sm:$0x3]
          %v621 = vld [vmem:[%s0 + $0x150] sm:$0xff]
          %v622 = vld [vmem:[%s0 + $0x158] sm:$0xff]
          %v623 = vld [vmem:[%s0 + $0x160] sm:$0x3]
          %v624 = vld [vmem:[%s0 + $0x168] sm:$0xff]
          %v625 = vld [vmem:[%s0 + $0x170] sm:$0xff]
          %v626 = vld [vmem:[%s0 + $0x178] sm:$0x3]
          %v627 = vld [vmem:[%s0 + $0x180] sm:$0xff]
          %v628 = vld [vmem:[%s0 + $0x188] sm:$0xff]
          %v629 = vld [vmem:[%s0 + $0x190] sm:$0x3]
          %v630 = vld [vmem:[%s0 + $0x198] sm:$0xff]
          %v631 = vld [vmem:[%s0 + $0x1a0] sm:$0xff]
          %v632 = vld [vmem:[%s0 + $0x1a8] sm:$0x3]
          %v633 = vld [vmem:[%s0 + $0x1b0] sm:$0xff]
          %v634 = vld [vmem:[%s0 + $0x1b8] sm:$0xff]
          %v635 = vld [vmem:[%s0 + $0x1c0] sm:$0x3]
          %v636 = vld [vmem:[%s0 + $0x1c8] sm:$0xff]
          %v637 = vld [vmem:[%s0 + $0x1d0] sm:$0xff]
          %v638 = vld [vmem:[%s0 + $0x1d8] sm:$0x3]
          %v639 = vld [vmem:[%s0 + $0x1e0] sm:$0xff]
          %v640 = vld [vmem:[%s0 + $0x1e8] sm:$0xff]
          %v641 = vld [vmem:[%s0 + $0x1f0] sm:$0x3]
          %v642 = vld [vmem:[%s0 + $0x1f8] sm:$0xff]
          %v643 = vld [vmem:[%s0 + $0x200] sm:$0xff]
          %v644 = vld [vmem:[%s0 + $0x208] sm:$0x3]
          %v645 = vld [vmem:[%s0 + $0x210] sm:$0xff]
          %v646 = vld [vmem:[%s0 + $0x218] sm:$0xff]
          %v647 = vld [vmem:[%s0 + $0x220] sm:$0x3]
          %v648 = vld [vmem:[%s0 + $0x228] sm:$0xff]
          %v649 = vld [vmem:[%s0 + $0x230] sm:$0xff]
          %v650 = vld [vmem:[%s0 + $0x238] sm:$0x3]
          %v651 = vld [vmem:[%s0 + $0x240] sm:$0xff]
          %v652 = vld [vmem:[%s0 + $0x248] sm:$0xff]
          %v653 = vld [vmem:[%s0 + $0x250] sm:$0x3]
          %v654 = vld [vmem:[%s0 + $0x258] sm:$0xff]
          %v655 = vld [vmem:[%s0 + $0x260] sm:$0xff]
          %v656 = vld [vmem:[%s0 + $0x268] sm:$0x3]
          %v657 = vld [vmem:[%s0 + $0x270] sm:$0xff]
          %v658 = vld [vmem:[%s0 + $0x278] sm:$0xff]
          %v659 = vld [vmem:[%s0 + $0x280] sm:$0x3]
          %v660 = vld [vmem:[%s0 + $0x288] sm:$0xff]
          %v661 = vld [vmem:[%s0 + $0x290] sm:$0xff]
          %v662 = vld [vmem:[%s0 + $0x298] sm:$0x3]
          %v663 = vld [vmem:[%s0 + $0x2a0] sm:$0xff]
          %v664 = vld [vmem:[%s0 + $0x2a8] sm:$0xff]
          %v665 = vld [vmem:[%s0 + $0x2b0] sm:$0x3]
          %v666 = vld [vmem:[%s0 + $0x2b8] sm:$0xff]
          %v667 = vld [vmem:[%s0 + $0x2c0] sm:$0xff]
          %v668 = vld [vmem:[%s0 + $0x2c8] sm:$0x3]
          %v669 = vld [vmem:[%s0 + $0x2d0] sm:$0xff]
          %v670 = vld [vmem:[%s0 + $0x2d8] sm:$0xff]
          %v671 = vld [vmem:[%s0 + $0x2e0] sm:$0x3]
          %v672 = vld [vmem:[%s0 + $0x2e8] sm:$0xff]
          %v673 = vld [vmem:[%s0 + $0x2f0] sm:$0xff]
          %v674 = vld [vmem:[%s0 + $0x2f8] sm:$0x3]
          %v675 = vld [vmem:[%s0 + $0x300] sm:$0xff]
          %v676 = vld [vmem:[%s0 + $0x308] sm:$0xff]
          %v677 = vld [vmem:[%s0 + $0x310] sm:$0x3]
          %v678 = vld [vmem:[%s0 + $0x318] sm:$0xff]
          %v679 = vld [vmem:[%s0 + $0x320] sm:$0xff]
          %v680 = vld [vmem:[%s0 + $0x328] sm:$0x3]
          %v681 = vld [vmem:[%s0 + $0x330] sm:$0xff]
          %v682 = vld [vmem:[%s0 + $0x338] sm:$0xff]
          %v683 = vld [vmem:[%s0 + $0x340] sm:$0x3]
          %v684 = vld [vmem:[%s0 + $0x348] sm:$0xff]
          %v685 = vld [vmem:[%s0 + $0x350] sm:$0xff]
          %v686 = vld [vmem:[%s0 + $0x358] sm:$0x3]
          %vm783 = vcmask 1046528
          %v784 = vrot.slane %v579, 1
          %v785 = vrot.slane %v580, 1
          %v786 = vsel %vm783, %v784, %v785
          %v787 = vrot.slane %v581, 1
          %v788 = vsel %vm783, %v785, %v787
          %v789 = vrot.slane %v582, 1
          %v790 = vrot.slane %v583, 1
          %v791 = vsel %vm783, %v789, %v790
          %v792 = vrot.slane %v584, 1
          %v793 = vsel %vm783, %v790, %v792
          %v794 = vrot.slane %v585, 1
          %v795 = vrot.slane %v586, 1
          %v796 = vsel %vm783, %v794, %v795
          %v797 = vrot.slane %v587, 1
          %v798 = vsel %vm783, %v795, %v797
          %v799 = vrot.slane %v588, 1
          %v800 = vrot.slane %v589, 1
          %v801 = vsel %vm783, %v799, %v800
          %v802 = vrot.slane %v590, 1
          %v803 = vsel %vm783, %v800, %v802
          %v804 = vrot.slane %v591, 1
          %v805 = vrot.slane %v592, 1
          %v806 = vsel %vm783, %v804, %v805
          %v807 = vrot.slane %v593, 1
          %v808 = vsel %vm783, %v805, %v807
          %v809 = vrot.slane %v594, 1
          %v810 = vrot.slane %v595, 1
          %v811 = vsel %vm783, %v809, %v810
          %v812 = vrot.slane %v596, 1
          %v813 = vsel %vm783, %v810, %v812
          %v814 = vrot.slane %v597, 1
          %v815 = vrot.slane %v598, 1
          %v816 = vsel %vm783, %v814, %v815
          %v817 = vrot.slane %v599, 1
          %v818 = vsel %vm783, %v815, %v817
          %v819 = vrot.slane %v600, 1
          %v820 = vrot.slane %v601, 1
          %v821 = vsel %vm783, %v819, %v820
          %v822 = vrot.slane %v602, 1
          %v823 = vsel %vm783, %v820, %v822
          %v824 = vrot.slane %v603, 1
          %v825 = vrot.slane %v604, 1
          %v826 = vsel %vm783, %v824, %v825
          %v827 = vrot.slane %v605, 1
          %v828 = vsel %vm783, %v825, %v827
          %v829 = vrot.slane %v606, 1
          %v830 = vrot.slane %v607, 1
          %v831 = vsel %vm783, %v829, %v830
          %v832 = vrot.slane %v608, 1
          %v833 = vsel %vm783, %v830, %v832
          %v834 = vrot.slane %v609, 1
          %v835 = vrot.slane %v610, 1
          %v836 = vsel %vm783, %v834, %v835
          %v837 = vrot.slane %v611, 1
          %v838 = vsel %vm783, %v835, %v837
          %v839 = vrot.slane %v612, 1
          %v840 = vrot.slane %v613, 1
          %v841 = vsel %vm783, %v839, %v840
          %v842 = vrot.slane %v614, 1
          %v843 = vsel %vm783, %v840, %v842
          %v844 = vrot.slane %v615, 1
          %v845 = vrot.slane %v616, 1
          %v846 = vsel %vm783, %v844, %v845
          %v847 = vrot.slane %v617, 1
          %v848 = vsel %vm783, %v845, %v847
          %v849 = vrot.slane %v618, 1
          %v850 = vrot.slane %v619, 1
          %v851 = vsel %vm783, %v849, %v850
          %v852 = vrot.slane %v620, 1
          %v853 = vsel %vm783, %v850, %v852
          %v854 = vrot.slane %v621, 1
          %v855 = vrot.slane %v622, 1
          %v856 = vsel %vm783, %v854, %v855
          %v857 = vrot.slane %v623, 1
          %v858 = vsel %vm783, %v855, %v857
          %v859 = vrot.slane %v624, 1
          %v860 = vrot.slane %v625, 1
          %v861 = vsel %vm783, %v859, %v860
          %v862 = vrot.slane %v626, 1
          %v863 = vsel %vm783, %v860, %v862
          %v864 = vrot.slane %v633, 1
          %v865 = vrot.slane %v634, 1
          %v866 = vsel %vm783, %v864, %v865
          %v867 = vrot.slane %v635, 1
          %v868 = vsel %vm783, %v865, %v867
          %v869 = vrot.slane %v636, 1
          %v870 = vrot.slane %v637, 1
          %v871 = vsel %vm783, %v869, %v870
          %v872 = vrot.slane %v638, 1
          %v873 = vsel %vm783, %v870, %v872
          %v874 = vrot.slane %v639, 1
          %v875 = vrot.slane %v640, 1
          %v876 = vsel %vm783, %v874, %v875
          %v877 = vrot.slane %v641, 1
          %v878 = vsel %vm783, %v875, %v877
          %v879 = vrot.slane %v642, 1
          %v880 = vrot.slane %v643, 1
          %v881 = vsel %vm783, %v879, %v880
          %v882 = vrot.slane %v644, 1
          %v883 = vsel %vm783, %v880, %v882
          %v884 = vrot.slane %v645, 1
          %v885 = vrot.slane %v646, 1
          %v886 = vsel %vm783, %v884, %v885
          %v887 = vrot.slane %v647, 1
          %v888 = vsel %vm783, %v885, %v887
          %v889 = vrot.slane %v648, 1
          %v890 = vrot.slane %v649, 1
          %v891 = vsel %vm783, %v889, %v890
          %v892 = vrot.slane %v650, 1
          %v893 = vsel %vm783, %v890, %v892
          %v894 = vrot.slane %v651, 1
          %v895 = vrot.slane %v652, 1
          %v896 = vsel %vm783, %v894, %v895
          %v897 = vrot.slane %v653, 1
          %v898 = vsel %vm783, %v895, %v897
          %v899 = vrot.slane %v654, 1
          %v900 = vrot.slane %v655, 1
          %v901 = vsel %vm783, %v899, %v900
          %v902 = vrot.slane %v656, 1
          %v903 = vsel %vm783, %v900, %v902
          %v904 = vrot.slane %v657, 1
          %v905 = vrot.slane %v658, 1
          %v906 = vsel %vm783, %v904, %v905
          %v907 = vrot.slane %v659, 1
          %v908 = vsel %vm783, %v905, %v907
          %v909 = vrot.slane %v660, 1
          %v910 = vrot.slane %v661, 1
          %v911 = vsel %vm783, %v909, %v910
          %v912 = vrot.slane %v662, 1
          %v913 = vsel %vm783, %v910, %v912
          %v914 = vrot.slane %v663, 1
          %v915 = vrot.slane %v664, 1
          %v916 = vsel %vm783, %v914, %v915
          %v917 = vrot.slane %v665, 1
          %v918 = vsel %vm783, %v915, %v917
          %v919 = vrot.slane %v666, 1
          %v920 = vrot.slane %v667, 1
          %v921 = vsel %vm783, %v919, %v920
          %v922 = vrot.slane %v668, 1
          %v923 = vsel %vm783, %v920, %v922
          %v924 = vrot.slane %v669, 1
          %v925 = vrot.slane %v670, 1
          %v926 = vsel %vm783, %v924, %v925
          %v927 = vrot.slane %v671, 1
          %v928 = vsel %vm783, %v925, %v927
          %v929 = vrot.slane %v672, 1
          %v930 = vrot.slane %v673, 1
          %v931 = vsel %vm783, %v929, %v930
          %v932 = vrot.slane %v674, 1
          %v933 = vsel %vm783, %v930, %v932
          %v934 = vrot.slane %v675, 1
          %v935 = vrot.slane %v676, 1
          %v936 = vsel %vm783, %v934, %v935
          %v937 = vrot.slane %v677, 1
          %v938 = vsel %vm783, %v935, %v937
          %v939 = vrot.slane %v678, 1
          %v940 = vrot.slane %v679, 1
          %v941 = vsel %vm783, %v939, %v940
          %v942 = vrot.slane %v680, 1
          %v943 = vsel %vm783, %v940, %v942
          %944 = vrot.lane.b32.xlu0 %v786, 3
          %v945 = vpop.permute.xlu0 %944
          %946 = vrot.lane.b32.xlu0 %v788, 3
          %v947 = vpop.permute.xlu0 %946
          %948 = vrot.lane.b32.xlu0 %v791, 3
          %v949 = vpop.permute.xlu0 %948
          %950 = vrot.lane.b32.xlu0 %v793, 3
          %v951 = vpop.permute.xlu0 %950
          %952 = vrot.lane.b32.xlu0 %v796, 3
          %v953 = vpop.permute.xlu0 %952
          %954 = vrot.lane.b32.xlu0 %v798, 3
          %v955 = vpop.permute.xlu0 %954
          %956 = vrot.lane.b32.xlu0 %v801, 3
          %v957 = vpop.permute.xlu0 %956
          %958 = vrot.lane.b32.xlu0 %v803, 3
          %v959 = vpop.permute.xlu0 %958
          %960 = vrot.lane.b32.xlu0 %v806, 3
          %v961 = vpop.permute.xlu0 %960
          %962 = vrot.lane.b32.xlu0 %v808, 3
          %v963 = vpop.permute.xlu0 %962
          %964 = vrot.lane.b32.xlu0 %v811, 3
          %v965 = vpop.permute.xlu0 %964
          %966 = vrot.lane.b32.xlu0 %v813, 3
          %v967 = vpop.permute.xlu0 %966
          %968 = vrot.lane.b32.xlu0 %v816, 3
          %v969 = vpop.permute.xlu0 %968
          %970 = vrot.lane.b32.xlu0 %v818, 3
          %v971 = vpop.permute.xlu0 %970
          %972 = vrot.lane.b32.xlu0 %v821, 3
          %v973 = vpop.permute.xlu0 %972
          %974 = vrot.lane.b32.xlu0 %v823, 3
          %v975 = vpop.permute.xlu0 %974
          %976 = vrot.lane.b32.xlu0 %v826, 3
          %v977 = vpop.permute.xlu0 %976
          %978 = vrot.lane.b32.xlu0 %v828, 3
          %v979 = vpop.permute.xlu0 %978
          %980 = vrot.lane.b32.xlu0 %v831, 3
          %v981 = vpop.permute.xlu0 %980
          %982 = vrot.lane.b32.xlu0 %v833, 3
          %v983 = vpop.permute.xlu0 %982
          %984 = vrot.lane.b32.xlu0 %v836, 3
          %v985 = vpop.permute.xlu0 %984
          %986 = vrot.lane.b32.xlu0 %v838, 3
          %v987 = vpop.permute.xlu0 %986
          %988 = vrot.lane.b32.xlu0 %v841, 3
          %v989 = vpop.permute.xlu0 %988
          %990 = vrot.lane.b32.xlu0 %v843, 3
          %v991 = vpop.permute.xlu0 %990
          %992 = vrot.lane.b32.xlu0 %v846, 3
          %v993 = vpop.permute.xlu0 %992
          %994 = vrot.lane.b32.xlu0 %v848, 3
          %v995 = vpop.permute.xlu0 %994
          %996 = vrot.lane.b32.xlu0 %v851, 3
          %v997 = vpop.permute.xlu0 %996
          %998 = vrot.lane.b32.xlu0 %v853, 3
          %v999 = vpop.permute.xlu0 %998
          %1000 = vrot.lane.b32.xlu0 %v856, 3
          %v1001 = vpop.permute.xlu0 %1000
          %1002 = vrot.lane.b32.xlu0 %v858, 3
          %v1003 = vpop.permute.xlu0 %1002
          %1004 = vrot.lane.b32.xlu0 %v861, 3
          %v1005 = vpop.permute.xlu0 %1004
          %1006 = vrot.lane.b32.xlu0 %v863, 3
          %v1007 = vpop.permute.xlu0 %1006
          %1008 = vrot.lane.b32.xlu0 %v866, 3
          %v1009 = vpop.permute.xlu0 %1008
          %1010 = vrot.lane.b32.xlu0 %v868, 3
          %v1011 = vpop.permute.xlu0 %1010
          %1012 = vrot.lane.b32.xlu0 %v871, 3
          %v1013 = vpop.permute.xlu0 %1012
          %1014 = vrot.lane.b32.xlu0 %v873, 3
          %v1015 = vpop.permute.xlu0 %1014
          %1016 = vrot.lane.b32.xlu0 %v876, 3
          %v1017 = vpop.permute.xlu0 %1016
          %1018 = vrot.lane.b32.xlu0 %v878, 3
          %v1019 = vpop.permute.xlu0 %1018
          %1020 = vrot.lane.b32.xlu0 %v881, 3
          %v1021 = vpop.permute.xlu0 %1020
          %1022 = vrot.lane.b32.xlu0 %v883, 3
          %v1023 = vpop.permute.xlu0 %1022
          %1024 = vrot.lane.b32.xlu0 %v886, 3
          %v1025 = vpop.permute.xlu0 %1024
          %1026 = vrot.lane.b32.xlu0 %v888, 3
          %v1027 = vpop.permute.xlu0 %1026
          %1028 = vrot.lane.b32.xlu0 %v891, 3
          %v1029 = vpop.permute.xlu0 %1028
          %1030 = vrot.lane.b32.xlu0 %v893, 3
          %v1031 = vpop.permute.xlu0 %1030
          %1032 = vrot.lane.b32.xlu0 %v896, 3
          %v1033 = vpop.permute.xlu0 %1032
          %1034 = vrot.lane.b32.xlu0 %v898, 3
          %v1035 = vpop.permute.xlu0 %1034
          %1036 = vrot.lane.b32.xlu0 %v901, 3
          %v1037 = vpop.permute.xlu0 %1036
          %1038 = vrot.lane.b32.xlu0 %v903, 3
          %v1039 = vpop.permute.xlu0 %1038
          %1040 = vrot.lane.b32.xlu0 %v906, 3
          %v1041 = vpop.permute.xlu0 %1040
          %1042 = vrot.lane.b32.xlu0 %v908, 3
          %v1043 = vpop.permute.xlu0 %1042
          %1044 = vrot.lane.b32.xlu0 %v911, 3
          %v1045 = vpop.permute.xlu0 %1044
          %1046 = vrot.lane.b32.xlu0 %v913, 3
          %v1047 = vpop.permute.xlu0 %1046
          %1048 = vrot.lane.b32.xlu0 %v916, 3
          %v1049 = vpop.permute.xlu0 %1048
          %1050 = vrot.lane.b32.xlu0 %v918, 3
          %v1051 = vpop.permute.xlu0 %1050
          %1052 = vrot.lane.b32.xlu0 %v921, 3
          %v1053 = vpop.permute.xlu0 %1052
          %1054 = vrot.lane.b32.xlu0 %v923, 3
          %v1055 = vpop.permute.xlu0 %1054
          %1056 = vrot.lane.b32.xlu0 %v926, 3
          %v1057 = vpop.permute.xlu0 %1056
          %1058 = vrot.lane.b32.xlu0 %v928, 3
          %v1059 = vpop.permute.xlu0 %1058
          %1060 = vrot.lane.b32.xlu0 %v931, 3
          %v1061 = vpop.permute.xlu0 %1060
          %1062 = vrot.lane.b32.xlu0 %v933, 3
          %v1063 = vpop.permute.xlu0 %1062
          %1064 = vrot.lane.b32.xlu0 %v936, 3
          %v1065 = vpop.permute.xlu0 %1064
          %1066 = vrot.lane.b32.xlu0 %v938, 3
          %v1067 = vpop.permute.xlu0 %1066
          %1068 = vrot.lane.b32.xlu0 %v941, 3
          %v1069 = vpop.permute.xlu0 %1068
          %1070 = vrot.lane.b32.xlu0 %v943, 3
          %v1071 = vpop.permute.xlu0 %1070
          %vm1136 = vcmask 1045504
          %v1137 = vrot.slane %v579, 2
          %v1138 = vrot.slane %v580, 2
          %v1139 = vsel %vm1136, %v1137, %v1138
          %v1140 = vrot.slane %v581, 2
          %v1141 = vsel %vm1136, %v1138, %v1140
          %v1142 = vrot.slane %v582, 2
          %v1143 = vrot.slane %v583, 2
          %v1144 = vsel %vm1136, %v1142, %v1143
          %v1145 = vrot.slane %v584, 2
          %v1146 = vsel %vm1136, %v1143, %v1145
          %v1147 = vrot.slane %v585, 2
          %v1148 = vrot.slane %v586, 2
          %v1149 = vsel %vm1136, %v1147, %v1148
          %v1150 = vrot.slane %v587, 2
          %v1151 = vsel %vm1136, %v1148, %v1150
          %v1152 = vrot.slane %v588, 2
          %v1153 = vrot.slane %v589, 2
          %v1154 = vsel %vm1136, %v1152, %v1153
          %v1155 = vrot.slane %v590, 2
          %v1156 = vsel %vm1136, %v1153, %v1155
          %v1157 = vrot.slane %v591, 2
          %v1158 = vrot.slane %v592, 2
          %v1159 = vsel %vm1136, %v1157, %v1158
          %v1160 = vrot.slane %v593, 2
          %v1161 = vsel %vm1136, %v1158, %v1160
          %v1162 = vrot.slane %v594, 2
          %v1163 = vrot.slane %v595, 2
          %v1164 = vsel %vm1136, %v1162, %v1163
          %v1165 = vrot.slane %v596, 2
          %v1166 = vsel %vm1136, %v1163, %v1165
          %v1167 = vrot.slane %v597, 2
          %v1168 = vrot.slane %v598, 2
          %v1169 = vsel %vm1136, %v1167, %v1168
          %v1170 = vrot.slane %v599, 2
          %v1171 = vsel %vm1136, %v1168, %v1170
          %v1172 = vrot.slane %v600, 2
          %v1173 = vrot.slane %v601, 2
          %v1174 = vsel %vm1136, %v1172, %v1173
          %v1175 = vrot.slane %v602, 2
          %v1176 = vsel %vm1136, %v1173, %v1175
          %v1177 = vrot.slane %v603, 2
          %v1178 = vrot.slane %v604, 2
          %v1179 = vsel %vm1136, %v1177, %v1178
          %v1180 = vrot.slane %v605, 2
          %v1181 = vsel %vm1136, %v1178, %v1180
          %v1182 = vrot.slane %v606, 2
          %v1183 = vrot.slane %v607, 2
          %v1184 = vsel %vm1136, %v1182, %v1183
          %v1185 = vrot.slane %v608, 2
          %v1186 = vsel %vm1136, %v1183, %v1185
          %v1187 = vrot.slane %v609, 2
          %v1188 = vrot.slane %v610, 2
          %v1189 = vsel %vm1136, %v1187, %v1188
          %v1190 = vrot.slane %v611, 2
          %v1191 = vsel %vm1136, %v1188, %v1190
          %v1192 = vrot.slane %v612, 2
          %v1193 = vrot.slane %v613, 2
          %v1194 = vsel %vm1136, %v1192, %v1193
          %v1195 = vrot.slane %v614, 2
          %v1196 = vsel %vm1136, %v1193, %v1195
          %v1197 = vrot.slane %v615, 2
          %v1198 = vrot.slane %v616, 2
          %v1199 = vsel %vm1136, %v1197, %v1198
          %v1200 = vrot.slane %v617, 2
          %v1201 = vsel %vm1136, %v1198, %v1200
          %v1202 = vrot.slane %v618, 2
          %v1203 = vrot.slane %v619, 2
          %v1204 = vsel %vm1136, %v1202, %v1203
          %v1205 = vrot.slane %v620, 2
          %v1206 = vsel %vm1136, %v1203, %v1205
          %v1207 = vrot.slane %v621, 2
          %v1208 = vrot.slane %v622, 2
          %v1209 = vsel %vm1136, %v1207, %v1208
          %v1210 = vrot.slane %v623, 2
          %v1211 = vsel %vm1136, %v1208, %v1210
          %v1212 = vrot.slane %v624, 2
          %v1213 = vrot.slane %v625, 2
          %v1214 = vsel %vm1136, %v1212, %v1213
          %v1215 = vrot.slane %v626, 2
          %v1216 = vsel %vm1136, %v1213, %v1215
          %v1217 = vrot.slane %v633, 2
          %v1218 = vrot.slane %v634, 2
          %v1219 = vsel %vm1136, %v1217, %v1218
          %v1220 = vrot.slane %v635, 2
          %v1221 = vsel %vm1136, %v1218, %v1220
          %v1222 = vrot.slane %v636, 2
          %v1223 = vrot.slane %v637, 2
          %v1224 = vsel %vm1136, %v1222, %v1223
          %v1225 = vrot.slane %v638, 2
          %v1226 = vsel %vm1136, %v1223, %v1225
          %v1227 = vrot.slane %v639, 2
          %v1228 = vrot.slane %v640, 2
          %v1229 = vsel %vm1136, %v1227, %v1228
          %v1230 = vrot.slane %v641, 2
          %v1231 = vsel %vm1136, %v1228, %v1230
          %v1232 = vrot.slane %v642, 2
          %v1233 = vrot.slane %v643, 2
          %v1234 = vsel %vm1136, %v1232, %v1233
          %v1235 = vrot.slane %v644, 2
          %v1236 = vsel %vm1136, %v1233, %v1235
          %v1237 = vrot.slane %v645, 2
          %v1238 = vrot.slane %v646, 2
          %v1239 = vsel %vm1136, %v1237, %v1238
          %v1240 = vrot.slane %v647, 2
          %v1241 = vsel %vm1136, %v1238, %v1240
          %v1242 = vrot.slane %v648, 2
          %v1243 = vrot.slane %v649, 2
          %v1244 = vsel %vm1136, %v1242, %v1243
          %v1245 = vrot.slane %v650, 2
          %v1246 = vsel %vm1136, %v1243, %v1245
          %v1247 = vrot.slane %v651, 2
          %v1248 = vrot.slane %v652, 2
          %v1249 = vsel %vm1136, %v1247, %v1248
          %v1250 = vrot.slane %v653, 2
          %v1251 = vsel %vm1136, %v1248, %v1250
          %v1252 = vrot.slane %v654, 2
          %v1253 = vrot.slane %v655, 2
          %v1254 = vsel %vm1136, %v1252, %v1253
          %v1255 = vrot.slane %v656, 2
          %v1256 = vsel %vm1136, %v1253, %v1255
          %v1257 = vrot.slane %v657, 2
          %v1258 = vrot.slane %v658, 2
          %v1259 = vsel %vm1136, %v1257, %v1258
          %v1260 = vrot.slane %v659, 2
          %v1261 = vsel %vm1136, %v1258, %v1260
          %v1262 = vrot.slane %v660, 2
          %v1263 = vrot.slane %v661, 2
          %v1264 = vsel %vm1136, %v1262, %v1263
          %v1265 = vrot.slane %v662, 2
          %v1266 = vsel %vm1136, %v1263, %v1265
          %v1267 = vrot.slane %v663, 2
          %v1268 = vrot.slane %v664, 2
          %v1269 = vsel %vm1136, %v1267, %v1268
          %v1270 = vrot.slane %v665, 2
          %v1271 = vsel %vm1136, %v1268, %v1270
          %v1272 = vrot.slane %v666, 2
          %v1273 = vrot.slane %v667, 2
          %v1274 = vsel %vm1136, %v1272, %v1273
          %v1275 = vrot.slane %v668, 2
          %v1276 = vsel %vm1136, %v1273, %v1275
          %v1277 = vrot.slane %v669, 2
          %v1278 = vrot.slane %v670, 2
          %v1279 = vsel %vm1136, %v1277, %v1278
          %v1280 = vrot.slane %v671, 2
          %v1281 = vsel %vm1136, %v1278, %v1280
          %v1282 = vrot.slane %v672, 2
          %v1283 = vrot.slane %v673, 2
          %v1284 = vsel %vm1136, %v1282, %v1283
          %v1285 = vrot.slane %v674, 2
          %v1286 = vsel %vm1136, %v1283, %v1285
          %v1287 = vrot.slane %v675, 2
          %v1288 = vrot.slane %v676, 2
          %v1289 = vsel %vm1136, %v1287, %v1288
          %v1290 = vrot.slane %v677, 2
          %v1291 = vsel %vm1136, %v1288, %v1290
          %v1292 = vrot.slane %v678, 2
          %v1293 = vrot.slane %v679, 2
          %v1294 = vsel %vm1136, %v1292, %v1293
          %v1295 = vrot.slane %v680, 2
          %v1296 = vsel %vm1136, %v1293, %v1295
          %1297 = vrot.lane.b32.xlu0 %v1139, 6
          %v1298 = vpop.permute.xlu0 %1297
          %1299 = vrot.lane.b32.xlu0 %v1141, 6
          %v1300 = vpop.permute.xlu0 %1299
          %1301 = vrot.lane.b32.xlu0 %v1144, 6
          %v1302 = vpop.permute.xlu0 %1301
          %1303 = vrot.lane.b32.xlu0 %v1146, 6
          %v1304 = vpop.permute.xlu0 %1303
          %1305 = vrot.lane.b32.xlu0 %v1149, 6
          %v1306 = vpop.permute.xlu0 %1305
          %1307 = vrot.lane.b32.xlu0 %v1151, 6
          %v1308 = vpop.permute.xlu0 %1307
          %1309 = vrot.lane.b32.xlu0 %v1154, 6
          %v1310 = vpop.permute.xlu0 %1309
          %1311 = vrot.lane.b32.xlu0 %v1156, 6
          %v1312 = vpop.permute.xlu0 %1311
          %1313 = vrot.lane.b32.xlu0 %v1159, 6
          %v1314 = vpop.permute.xlu0 %1313
          %1315 = vrot.lane.b32.xlu0 %v1161, 6
          %v1316 = vpop.permute.xlu0 %1315
          %1317 = vrot.lane.b32.xlu0 %v1164, 6
          %v1318 = vpop.permute.xlu0 %1317
          %1319 = vrot.lane.b32.xlu0 %v1166, 6
          %v1320 = vpop.permute.xlu0 %1319
          %1321 = vrot.lane.b32.xlu0 %v1169, 6
          %v1322 = vpop.permute.xlu0 %1321
          %1323 = vrot.lane.b32.xlu0 %v1171, 6
          %v1324 = vpop.permute.xlu0 %1323
          %1325 = vrot.lane.b32.xlu0 %v1174, 6
          %v1326 = vpop.permute.xlu0 %1325
          %1327 = vrot.lane.b32.xlu0 %v1176, 6
          %v1328 = vpop.permute.xlu0 %1327
          %1329 = vrot.lane.b32.xlu0 %v1179, 6
          %v1330 = vpop.permute.xlu0 %1329
          %1331 = vrot.lane.b32.xlu0 %v1181, 6
          %v1332 = vpop.permute.xlu0 %1331
          %1333 = vrot.lane.b32.xlu0 %v1184, 6
          %v1334 = vpop.permute.xlu0 %1333
          %1335 = vrot.lane.b32.xlu0 %v1186, 6
          %v1336 = vpop.permute.xlu0 %1335
          %1337 = vrot.lane.b32.xlu0 %v1189, 6
          %v1338 = vpop.permute.xlu0 %1337
          %1339 = vrot.lane.b32.xlu0 %v1191, 6
          %v1340 = vpop.permute.xlu0 %1339
          %1341 = vrot.lane.b32.xlu0 %v1194, 6
          %v1342 = vpop.permute.xlu0 %1341
          %1343 = vrot.lane.b32.xlu0 %v1196, 6
          %v1344 = vpop.permute.xlu0 %1343
          %1345 = vrot.lane.b32.xlu0 %v1199, 6
          %v1346 = vpop.permute.xlu0 %1345
          %1347 = vrot.lane.b32.xlu0 %v1201, 6
          %v1348 = vpop.permute.xlu0 %1347
          %1349 = vrot.lane.b32.xlu0 %v1204, 6
          %v1350 = vpop.permute.xlu0 %1349
          %1351 = vrot.lane.b32.xlu0 %v1206, 6
          %v1352 = vpop.permute.xlu0 %1351
          %1353 = vrot.lane.b32.xlu0 %v1209, 6
          %v1354 = vpop.permute.xlu0 %1353
          %1355 = vrot.lane.b32.xlu0 %v1211, 6
          %v1356 = vpop.permute.xlu0 %1355
          %1357 = vrot.lane.b32.xlu0 %v1214, 6
          %v1358 = vpop.permute.xlu0 %1357
          %1359 = vrot.lane.b32.xlu0 %v1216, 6
          %v1360 = vpop.permute.xlu0 %1359
          %1361 = vrot.lane.b32.xlu0 %v1219, 6
          %v1362 = vpop.permute.xlu0 %1361
          %1363 = vrot.lane.b32.xlu0 %v1221, 6
          %v1364 = vpop.permute.xlu0 %1363
          %1365 = vrot.lane.b32.xlu0 %v1224, 6
          %v1366 = vpop.permute.xlu0 %1365
          %1367 = vrot.lane.b32.xlu0 %v1226, 6
          %v1368 = vpop.permute.xlu0 %1367
          %1369 = vrot.lane.b32.xlu0 %v1229, 6
          %v1370 = vpop.permute.xlu0 %1369
          %1371 = vrot.lane.b32.xlu0 %v1231, 6
          %v1372 = vpop.permute.xlu0 %1371
          %1373 = vrot.lane.b32.xlu0 %v1234, 6
          %v1374 = vpop.permute.xlu0 %1373
          %1375 = vrot.lane.b32.xlu0 %v1236, 6
          %v1376 = vpop.permute.xlu0 %1375
          %1377 = vrot.lane.b32.xlu0 %v1239, 6
          %v1378 = vpop.permute.xlu0 %1377
          %1379 = vrot.lane.b32.xlu0 %v1241, 6
          %v1380 = vpop.permute.xlu0 %1379
          %1381 = vrot.lane.b32.xlu0 %v1244, 6
          %v1382 = vpop.permute.xlu0 %1381
          %1383 = vrot.lane.b32.xlu0 %v1246, 6
          %v1384 = vpop.permute.xlu0 %1383
          %1385 = vrot.lane.b32.xlu0 %v1249, 6
          %v1386 = vpop.permute.xlu0 %1385
          %1387 = vrot.lane.b32.xlu0 %v1251, 6
          %v1388 = vpop.permute.xlu0 %1387
          %1389 = vrot.lane.b32.xlu0 %v1254, 6
          %v1390 = vpop.permute.xlu0 %1389
          %1391 = vrot.lane.b32.xlu0 %v1256, 6
          %v1392 = vpop.permute.xlu0 %1391
          %1393 = vrot.lane.b32.xlu0 %v1259, 6
          %v1394 = vpop.permute.xlu0 %1393
          %1395 = vrot.lane.b32.xlu0 %v1261, 6
          %v1396 = vpop.permute.xlu0 %1395
          %1397 = vrot.lane.b32.xlu0 %v1264, 6
          %v1398 = vpop.permute.xlu0 %1397
          %1399 = vrot.lane.b32.xlu0 %v1266, 6
          %v1400 = vpop.permute.xlu0 %1399
          %1401 = vrot.lane.b32.xlu0 %v1269, 6
          %v1402 = vpop.permute.xlu0 %1401
          %1403 = vrot.lane.b32.xlu0 %v1271, 6
          %v1404 = vpop.permute.xlu0 %1403
          %1405 = vrot.lane.b32.xlu0 %v1274, 6
          %v1406 = vpop.permute.xlu0 %1405
          %1407 = vrot.lane.b32.xlu0 %v1276, 6
          %v1408 = vpop.permute.xlu0 %1407
          %1409 = vrot.lane.b32.xlu0 %v1279, 6
          %v1410 = vpop.permute.xlu0 %1409
          %1411 = vrot.lane.b32.xlu0 %v1281, 6
          %v1412 = vpop.permute.xlu0 %1411
          %1413 = vrot.lane.b32.xlu0 %v1284, 6
          %v1414 = vpop.permute.xlu0 %1413
          %1415 = vrot.lane.b32.xlu0 %v1286, 6
          %v1416 = vpop.permute.xlu0 %1415
          %1417 = vrot.lane.b32.xlu0 %v1289, 6
          %v1418 = vpop.permute.xlu0 %1417
          %1419 = vrot.lane.b32.xlu0 %v1291, 6
          %v1420 = vpop.permute.xlu0 %1419
          %1421 = vrot.lane.b32.xlu0 %v1294, 6
          %v1422 = vpop.permute.xlu0 %1421
          %1423 = vrot.lane.b32.xlu0 %v1296, 6
          %v1424 = vpop.permute.xlu0 %1423
          %1493 = vrot.lane.b32.xlu0 %v582, 9
          %v1494 = vpop.permute.xlu0 %1493
          %1495 = vrot.lane.b32.xlu0 %v583, 9
          %v1496 = vpop.permute.xlu0 %1495
          %1497 = vrot.lane.b32.xlu0 %v585, 9
          %v1498 = vpop.permute.xlu0 %1497
          %1499 = vrot.lane.b32.xlu0 %v586, 9
          %v1500 = vpop.permute.xlu0 %1499
          %1501 = vrot.lane.b32.xlu0 %v588, 9
          %v1502 = vpop.permute.xlu0 %1501
          %1503 = vrot.lane.b32.xlu0 %v589, 9
          %v1504 = vpop.permute.xlu0 %1503
          %1505 = vrot.lane.b32.xlu0 %v591, 9
          %v1506 = vpop.permute.xlu0 %1505
          %1507 = vrot.lane.b32.xlu0 %v592, 9
          %v1508 = vpop.permute.xlu0 %1507
          %1509 = vrot.lane.b32.xlu0 %v594, 9
          %v1510 = vpop.permute.xlu0 %1509
          %1511 = vrot.lane.b32.xlu0 %v595, 9
          %v1512 = vpop.permute.xlu0 %1511
          %1513 = vrot.lane.b32.xlu0 %v597, 9
          %v1514 = vpop.permute.xlu0 %1513
          %1515 = vrot.lane.b32.xlu0 %v598, 9
          %v1516 = vpop.permute.xlu0 %1515
          %1517 = vrot.lane.b32.xlu0 %v600, 9
          %v1518 = vpop.permute.xlu0 %1517
          %1519 = vrot.lane.b32.xlu0 %v601, 9
          %v1520 = vpop.permute.xlu0 %1519
          %1521 = vrot.lane.b32.xlu0 %v603, 9
          %v1522 = vpop.permute.xlu0 %1521
          %1523 = vrot.lane.b32.xlu0 %v604, 9
          %v1524 = vpop.permute.xlu0 %1523
          %1525 = vrot.lane.b32.xlu0 %v606, 9
          %v1526 = vpop.permute.xlu0 %1525
          %1527 = vrot.lane.b32.xlu0 %v607, 9
          %v1528 = vpop.permute.xlu0 %1527
          %1529 = vrot.lane.b32.xlu0 %v609, 9
          %v1530 = vpop.permute.xlu0 %1529
          %1531 = vrot.lane.b32.xlu0 %v610, 9
          %v1532 = vpop.permute.xlu0 %1531
          %1533 = vrot.lane.b32.xlu0 %v612, 9
          %v1534 = vpop.permute.xlu0 %1533
          %1535 = vrot.lane.b32.xlu0 %v613, 9
          %v1536 = vpop.permute.xlu0 %1535
          %1537 = vrot.lane.b32.xlu0 %v615, 9
          %v1538 = vpop.permute.xlu0 %1537
          %1539 = vrot.lane.b32.xlu0 %v616, 9
          %v1540 = vpop.permute.xlu0 %1539
          %1541 = vrot.lane.b32.xlu0 %v618, 9
          %v1542 = vpop.permute.xlu0 %1541
          %1543 = vrot.lane.b32.xlu0 %v619, 9
          %v1544 = vpop.permute.xlu0 %1543
          %1545 = vrot.lane.b32.xlu0 %v621, 9
          %v1546 = vpop.permute.xlu0 %1545
          %1547 = vrot.lane.b32.xlu0 %v622, 9
          %v1548 = vpop.permute.xlu0 %1547
          %1549 = vrot.lane.b32.xlu0 %v624, 9
          %v1550 = vpop.permute.xlu0 %1549
          %1551 = vrot.lane.b32.xlu0 %v625, 9
          %v1552 = vpop.permute.xlu0 %1551
          %1553 = vrot.lane.b32.xlu0 %v627, 9
          %v1554 = vpop.permute.xlu0 %1553
          %1555 = vrot.lane.b32.xlu0 %v628, 9
          %v1556 = vpop.permute.xlu0 %1555
          %1557 = vrot.lane.b32.xlu0 %v636, 9
          %v1558 = vpop.permute.xlu0 %1557
          %1559 = vrot.lane.b32.xlu0 %v637, 9
          %v1560 = vpop.permute.xlu0 %1559
          %1561 = vrot.lane.b32.xlu0 %v639, 9
          %v1562 = vpop.permute.xlu0 %1561
          %1563 = vrot.lane.b32.xlu0 %v640, 9
          %v1564 = vpop.permute.xlu0 %1563
          %1565 = vrot.lane.b32.xlu0 %v642, 9
          %v1566 = vpop.permute.xlu0 %1565
          %1567 = vrot.lane.b32.xlu0 %v643, 9
          %v1568 = vpop.permute.xlu0 %1567
          %1569 = vrot.lane.b32.xlu0 %v645, 9
          %v1570 = vpop.permute.xlu0 %1569
          %1571 = vrot.lane.b32.xlu0 %v646, 9
          %v1572 = vpop.permute.xlu0 %1571
          %1573 = vrot.lane.b32.xlu0 %v648, 9
          %v1574 = vpop.permute.xlu0 %1573
          %1575 = vrot.lane.b32.xlu0 %v649, 9
          %v1576 = vpop.permute.xlu0 %1575
          %1577 = vrot.lane.b32.xlu0 %v651, 9
          %v1578 = vpop.permute.xlu0 %1577
          %1579 = vrot.lane.b32.xlu0 %v652, 9
          %v1580 = vpop.permute.xlu0 %1579
          %1581 = vrot.lane.b32.xlu0 %v654, 9
          %v1582 = vpop.permute.xlu0 %1581
          %1583 = vrot.lane.b32.xlu0 %v655, 9
          %v1584 = vpop.permute.xlu0 %1583
          %1585 = vrot.lane.b32.xlu0 %v657, 9
          %v1586 = vpop.permute.xlu0 %1585
          %1587 = vrot.lane.b32.xlu0 %v658, 9
          %v1588 = vpop.permute.xlu0 %1587
          %1589 = vrot.lane.b32.xlu0 %v660, 9
          %v1590 = vpop.permute.xlu0 %1589
          %1591 = vrot.lane.b32.xlu0 %v661, 9
          %v1592 = vpop.permute.xlu0 %1591
          %1593 = vrot.lane.b32.xlu0 %v663, 9
          %v1594 = vpop.permute.xlu0 %1593
          %1595 = vrot.lane.b32.xlu0 %v664, 9
          %v1596 = vpop.permute.xlu0 %1595
          %1597 = vrot.lane.b32.xlu0 %v666, 9
          %v1598 = vpop.permute.xlu0 %1597
          %1599 = vrot.lane.b32.xlu0 %v667, 9
          %v1600 = vpop.permute.xlu0 %1599
          %1601 = vrot.lane.b32.xlu0 %v669, 9
          %v1602 = vpop.permute.xlu0 %1601
          %1603 = vrot.lane.b32.xlu0 %v670, 9
          %v1604 = vpop.permute.xlu0 %1603
          %1605 = vrot.lane.b32.xlu0 %v672, 9
          %v1606 = vpop.permute.xlu0 %1605
          %1607 = vrot.lane.b32.xlu0 %v673, 9
          %v1608 = vpop.permute.xlu0 %1607
          %1609 = vrot.lane.b32.xlu0 %v675, 9
          %v1610 = vpop.permute.xlu0 %1609
          %1611 = vrot.lane.b32.xlu0 %v676, 9
          %v1612 = vpop.permute.xlu0 %1611
          %1613 = vrot.lane.b32.xlu0 %v678, 9
          %v1614 = vpop.permute.xlu0 %1613
          %1615 = vrot.lane.b32.xlu0 %v679, 9
          %v1616 = vpop.permute.xlu0 %1615
          %1617 = vrot.lane.b32.xlu0 %v681, 9
          %v1618 = vpop.permute.xlu0 %1617
          %1619 = vrot.lane.b32.xlu0 %v682, 9
          %v1620 = vpop.permute.xlu0 %1619
          %v1687 = vrot.slane %v627, 1
          %v1688 = vrot.slane %v628, 1
          %v1689 = vsel %vm783, %v1687, %v1688
          %v1690 = vrot.slane %v629, 1
          %v1691 = vsel %vm783, %v1688, %v1690
          %v1692 = vrot.slane %v681, 1
          %v1693 = vrot.slane %v682, 1
          %v1694 = vsel %vm783, %v1692, %v1693
          %v1695 = vrot.slane %v683, 1
          %v1696 = vsel %vm783, %v1693, %v1695
          %1697 = vrot.lane.b32.xlu0 %v791, 12
          %v1698 = vpop.permute.xlu0 %1697
          %1699 = vrot.lane.b32.xlu0 %v793, 12
          %v1700 = vpop.permute.xlu0 %1699
          %1701 = vrot.lane.b32.xlu0 %v796, 12
          %v1702 = vpop.permute.xlu0 %1701
          %1703 = vrot.lane.b32.xlu0 %v798, 12
          %v1704 = vpop.permute.xlu0 %1703
          %1705 = vrot.lane.b32.xlu0 %v801, 12
          %v1706 = vpop.permute.xlu0 %1705
          %1707 = vrot.lane.b32.xlu0 %v803, 12
          %v1708 = vpop.permute.xlu0 %1707
          %1709 = vrot.lane.b32.xlu0 %v806, 12
          %v1710 = vpop.permute.xlu0 %1709
          %1711 = vrot.lane.b32.xlu0 %v808, 12
          %v1712 = vpop.permute.xlu0 %1711
          %1713 = vrot.lane.b32.xlu0 %v811, 12
          %v1714 = vpop.permute.xlu0 %1713
          %1715 = vrot.lane.b32.xlu0 %v813, 12
          %v1716 = vpop.permute.xlu0 %1715
          %1717 = vrot.lane.b32.xlu0 %v816, 12
          %v1718 = vpop.permute.xlu0 %1717
          %1719 = vrot.lane.b32.xlu0 %v818, 12
          %v1720 = vpop.permute.xlu0 %1719
          %1721 = vrot.lane.b32.xlu0 %v821, 12
          %v1722 = vpop.permute.xlu0 %1721
          %1723 = vrot.lane.b32.xlu0 %v823, 12
          %v1724 = vpop.permute.xlu0 %1723
          %1725 = vrot.lane.b32.xlu0 %v826, 12
          %v1726 = vpop.permute.xlu0 %1725
          %1727 = vrot.lane.b32.xlu0 %v828, 12
          %v1728 = vpop.permute.xlu0 %1727
          %1729 = vrot.lane.b32.xlu0 %v831, 12
          %v1730 = vpop.permute.xlu0 %1729
          %1731 = vrot.lane.b32.xlu0 %v833, 12
          %v1732 = vpop.permute.xlu0 %1731
          %1733 = vrot.lane.b32.xlu0 %v836, 12
          %v1734 = vpop.permute.xlu0 %1733
          %1735 = vrot.lane.b32.xlu0 %v838, 12
          %v1736 = vpop.permute.xlu0 %1735
          %1737 = vrot.lane.b32.xlu0 %v841, 12
          %v1738 = vpop.permute.xlu0 %1737
          %1739 = vrot.lane.b32.xlu0 %v843, 12
          %v1740 = vpop.permute.xlu0 %1739
          %1741 = vrot.lane.b32.xlu0 %v846, 12
          %v1742 = vpop.permute.xlu0 %1741
          %1743 = vrot.lane.b32.xlu0 %v848, 12
          %v1744 = vpop.permute.xlu0 %1743
          %1745 = vrot.lane.b32.xlu0 %v851, 12
          %v1746 = vpop.permute.xlu0 %1745
          %1747 = vrot.lane.b32.xlu0 %v853, 12
          %v1748 = vpop.permute.xlu0 %1747
          %1749 = vrot.lane.b32.xlu0 %v856, 12
          %v1750 = vpop.permute.xlu0 %1749
          %1751 = vrot.lane.b32.xlu0 %v858, 12
          %v1752 = vpop.permute.xlu0 %1751
          %1753 = vrot.lane.b32.xlu0 %v861, 12
          %v1754 = vpop.permute.xlu0 %1753
          %1755 = vrot.lane.b32.xlu0 %v863, 12
          %v1756 = vpop.permute.xlu0 %1755
          %1757 = vrot.lane.b32.xlu0 %v1689, 12
          %v1758 = vpop.permute.xlu0 %1757
          %1759 = vrot.lane.b32.xlu0 %v1691, 12
          %v1760 = vpop.permute.xlu0 %1759
          %1761 = vrot.lane.b32.xlu0 %v871, 12
          %v1762 = vpop.permute.xlu0 %1761
          %1763 = vrot.lane.b32.xlu0 %v873, 12
          %v1764 = vpop.permute.xlu0 %1763
          %1765 = vrot.lane.b32.xlu0 %v876, 12
          %v1766 = vpop.permute.xlu0 %1765
          %1767 = vrot.lane.b32.xlu0 %v878, 12
          %v1768 = vpop.permute.xlu0 %1767
          %1769 = vrot.lane.b32.xlu0 %v881, 12
          %v1770 = vpop.permute.xlu0 %1769
          %1771 = vrot.lane.b32.xlu0 %v883, 12
          %v1772 = vpop.permute.xlu0 %1771
          %1773 = vrot.lane.b32.xlu0 %v886, 12
          %v1774 = vpop.permute.xlu0 %1773
          %1775 = vrot.lane.b32.xlu0 %v888, 12
          %v1776 = vpop.permute.xlu0 %1775
          %1777 = vrot.lane.b32.xlu0 %v891, 12
          %v1778 = vpop.permute.xlu0 %1777
          %1779 = vrot.lane.b32.xlu0 %v893, 12
          %v1780 = vpop.permute.xlu0 %1779
          %1781 = vrot.lane.b32.xlu0 %v896, 12
          %v1782 = vpop.permute.xlu0 %1781
          %1783 = vrot.lane.b32.xlu0 %v898, 12
          %v1784 = vpop.permute.xlu0 %1783
          %1785 = vrot.lane.b32.xlu0 %v901, 12
          %v1786 = vpop.permute.xlu0 %1785
          %1787 = vrot.lane.b32.xlu0 %v903, 12
          %v1788 = vpop.permute.xlu0 %1787
          %1789 = vrot.lane.b32.xlu0 %v906, 12
          %v1790 = vpop.permute.xlu0 %1789
          %1791 = vrot.lane.b32.xlu0 %v908, 12
          %v1792 = vpop.permute.xlu0 %1791
          %1793 = vrot.lane.b32.xlu0 %v911, 12
          %v1794 = vpop.permute.xlu0 %1793
          %1795 = vrot.lane.b32.xlu0 %v913, 12
          %v1796 = vpop.permute.xlu0 %1795
          %1797 = vrot.lane.b32.xlu0 %v916, 12
          %v1798 = vpop.permute.xlu0 %1797
          %1799 = vrot.lane.b32.xlu0 %v918, 12
          %v1800 = vpop.permute.xlu0 %1799
          %1801 = vrot.lane.b32.xlu0 %v921, 12
          %v1802 = vpop.permute.xlu0 %1801
          %1803 = vrot.lane.b32.xlu0 %v923, 12
          %v1804 = vpop.permute.xlu0 %1803
          %1805 = vrot.lane.b32.xlu0 %v926, 12
          %v1806 = vpop.permute.xlu0 %1805
          %1807 = vrot.lane.b32.xlu0 %v928, 12
          %v1808 = vpop.permute.xlu0 %1807
          %1809 = vrot.lane.b32.xlu0 %v931, 12
          %v1810 = vpop.permute.xlu0 %1809
          %1811 = vrot.lane.b32.xlu0 %v933, 12
          %v1812 = vpop.permute.xlu0 %1811
          %1813 = vrot.lane.b32.xlu0 %v936, 12
          %v1814 = vpop.permute.xlu0 %1813
          %1815 = vrot.lane.b32.xlu0 %v938, 12
          %v1816 = vpop.permute.xlu0 %1815
          %1817 = vrot.lane.b32.xlu0 %v941, 12
          %v1818 = vpop.permute.xlu0 %1817
          %1819 = vrot.lane.b32.xlu0 %v943, 12
          %v1820 = vpop.permute.xlu0 %1819
          %1821 = vrot.lane.b32.xlu0 %v1694, 12
          %v1822 = vpop.permute.xlu0 %1821
          %1823 = vrot.lane.b32.xlu0 %v1696, 12
          %v1824 = vpop.permute.xlu0 %1823
          %v1889 = vrot.slane %v627, 2
          %v1890 = vrot.slane %v628, 2
          %v1891 = vsel %vm1136, %v1889, %v1890
          %v1892 = vrot.slane %v629, 2
          %v1893 = vsel %vm1136, %v1890, %v1892
          %v1894 = vrot.slane %v681, 2
          %v1895 = vrot.slane %v682, 2
          %v1896 = vsel %vm1136, %v1894, %v1895
          %v1897 = vrot.slane %v683, 2
          %v1898 = vsel %vm1136, %v1895, %v1897
          %1899 = vrot.lane.b32.xlu0 %v1144, 15
          %v1900 = vpop.permute.xlu0 %1899
          %1901 = vrot.lane.b32.xlu0 %v1146, 15
          %v1902 = vpop.permute.xlu0 %1901
          %1903 = vrot.lane.b32.xlu0 %v1149, 15
          %v1904 = vpop.permute.xlu0 %1903
          %1905 = vrot.lane.b32.xlu0 %v1151, 15
          %v1906 = vpop.permute.xlu0 %1905
          %1907 = vrot.lane.b32.xlu0 %v1154, 15
          %v1908 = vpop.permute.xlu0 %1907
          %1909 = vrot.lane.b32.xlu0 %v1156, 15
          %v1910 = vpop.permute.xlu0 %1909
          %1911 = vrot.lane.b32.xlu0 %v1159, 15
          %v1912 = vpop.permute.xlu0 %1911
          %1913 = vrot.lane.b32.xlu0 %v1161, 15
          %v1914 = vpop.permute.xlu0 %1913
          %1915 = vrot.lane.b32.xlu0 %v1164, 15
          %v1916 = vpop.permute.xlu0 %1915
          %1917 = vrot.lane.b32.xlu0 %v1166, 15
          %v1918 = vpop.permute.xlu0 %1917
          %1919 = vrot.lane.b32.xlu0 %v1169, 15
          %v1920 = vpop.permute.xlu0 %1919
          %1921 = vrot.lane.b32.xlu0 %v1171, 15
          %v1922 = vpop.permute.xlu0 %1921
          %1923 = vrot.lane.b32.xlu0 %v1174, 15
          %v1924 = vpop.permute.xlu0 %1923
          %1925 = vrot.lane.b32.xlu0 %v1176, 15
          %v1926 = vpop.permute.xlu0 %1925
          %1927 = vrot.lane.b32.xlu0 %v1179, 15
          %v1928 = vpop.permute.xlu0 %1927
          %1929 = vrot.lane.b32.xlu0 %v1181, 15
          %v1930 = vpop.permute.xlu0 %1929
          %1931 = vrot.lane.b32.xlu0 %v1184, 15
          %v1932 = vpop.permute.xlu0 %1931
          %1933 = vrot.lane.b32.xlu0 %v1186, 15
          %v1934 = vpop.permute.xlu0 %1933
          %1935 = vrot.lane.b32.xlu0 %v1189, 15
          %v1936 = vpop.permute.xlu0 %1935
          %1937 = vrot.lane.b32.xlu0 %v1191, 15
          %v1938 = vpop.permute.xlu0 %1937
          %1939 = vrot.lane.b32.xlu0 %v1194, 15
          %v1940 = vpop.permute.xlu0 %1939
          %1941 = vrot.lane.b32.xlu0 %v1196, 15
          %v1942 = vpop.permute.xlu0 %1941
          %1943 = vrot.lane.b32.xlu0 %v1199, 15
          %v1944 = vpop.permute.xlu0 %1943
          %1945 = vrot.lane.b32.xlu0 %v1201, 15
          %v1946 = vpop.permute.xlu0 %1945
          %1947 = vrot.lane.b32.xlu0 %v1204, 15
          %v1948 = vpop.permute.xlu0 %1947
          %1949 = vrot.lane.b32.xlu0 %v1206, 15
          %v1950 = vpop.permute.xlu0 %1949
          %1951 = vrot.lane.b32.xlu0 %v1209, 15
          %v1952 = vpop.permute.xlu0 %1951
          %1953 = vrot.lane.b32.xlu0 %v1211, 15
          %v1954 = vpop.permute.xlu0 %1953
          %1955 = vrot.lane.b32.xlu0 %v1214, 15
          %v1956 = vpop.permute.xlu0 %1955
          %1957 = vrot.lane.b32.xlu0 %v1216, 15
          %v1958 = vpop.permute.xlu0 %1957
          %1959 = vrot.lane.b32.xlu0 %v1891, 15
          %v1960 = vpop.permute.xlu0 %1959
          %1961 = vrot.lane.b32.xlu0 %v1893, 15
          %v1962 = vpop.permute.xlu0 %1961
          %1963 = vrot.lane.b32.xlu0 %v1224, 15
          %v1964 = vpop.permute.xlu0 %1963
          %1965 = vrot.lane.b32.xlu0 %v1226, 15
          %v1966 = vpop.permute.xlu0 %1965
          %1967 = vrot.lane.b32.xlu0 %v1229, 15
          %v1968 = vpop.permute.xlu0 %1967
          %1969 = vrot.lane.b32.xlu0 %v1231, 15
          %v1970 = vpop.permute.xlu0 %1969
          %1971 = vrot.lane.b32.xlu0 %v1234, 15
          %v1972 = vpop.permute.xlu0 %1971
          %1973 = vrot.lane.b32.xlu0 %v1236, 15
          %v1974 = vpop.permute.xlu0 %1973
          %1975 = vrot.lane.b32.xlu0 %v1239, 15
          %v1976 = vpop.permute.xlu0 %1975
          %1977 = vrot.lane.b32.xlu0 %v1241, 15
          %v1978 = vpop.permute.xlu0 %1977
          %1979 = vrot.lane.b32.xlu0 %v1244, 15
          %v1980 = vpop.permute.xlu0 %1979
          %1981 = vrot.lane.b32.xlu0 %v1246, 15
          %v1982 = vpop.permute.xlu0 %1981
          %1983 = vrot.lane.b32.xlu0 %v1249, 15
          %v1984 = vpop.permute.xlu0 %1983
          %1985 = vrot.lane.b32.xlu0 %v1251, 15
          %v1986 = vpop.permute.xlu0 %1985
          %1987 = vrot.lane.b32.xlu0 %v1254, 15
          %v1988 = vpop.permute.xlu0 %1987
          %1989 = vrot.lane.b32.xlu0 %v1256, 15
          %v1990 = vpop.permute.xlu0 %1989
          %1991 = vrot.lane.b32.xlu0 %v1259, 15
          %v1992 = vpop.permute.xlu0 %1991
          %1993 = vrot.lane.b32.xlu0 %v1261, 15
          %v1994 = vpop.permute.xlu0 %1993
          %1995 = vrot.lane.b32.xlu0 %v1264, 15
          %v1996 = vpop.permute.xlu0 %1995
          %1997 = vrot.lane.b32.xlu0 %v1266, 15
          %v1998 = vpop.permute.xlu0 %1997
          %1999 = vrot.lane.b32.xlu0 %v1269, 15
          %v2000 = vpop.permute.xlu0 %1999
          %2001 = vrot.lane.b32.xlu0 %v1271, 15
          %v2002 = vpop.permute.xlu0 %2001
          %2003 = vrot.lane.b32.xlu0 %v1274, 15
          %v2004 = vpop.permute.xlu0 %2003
          %2005 = vrot.lane.b32.xlu0 %v1276, 15
          %v2006 = vpop.permute.xlu0 %2005
          %2007 = vrot.lane.b32.xlu0 %v1279, 15
          %v2008 = vpop.permute.xlu0 %2007
          %2009 = vrot.lane.b32.xlu0 %v1281, 15
          %v2010 = vpop.permute.xlu0 %2009
          %2011 = vrot.lane.b32.xlu0 %v1284, 15
          %v2012 = vpop.permute.xlu0 %2011
          %2013 = vrot.lane.b32.xlu0 %v1286, 15
          %v2014 = vpop.permute.xlu0 %2013
          %2015 = vrot.lane.b32.xlu0 %v1289, 15
          %v2016 = vpop.permute.xlu0 %2015
          %2017 = vrot.lane.b32.xlu0 %v1291, 15
          %v2018 = vpop.permute.xlu0 %2017
          %2019 = vrot.lane.b32.xlu0 %v1294, 15
          %v2020 = vpop.permute.xlu0 %2019
          %2021 = vrot.lane.b32.xlu0 %v1296, 15
          %v2022 = vpop.permute.xlu0 %2021
          %2023 = vrot.lane.b32.xlu0 %v1896, 15
          %v2024 = vpop.permute.xlu0 %2023
          %2025 = vrot.lane.b32.xlu0 %v1898, 15
          %v2026 = vpop.permute.xlu0 %2025
          %2095 = vrot.lane.b32.xlu0 %v585, 18
          %v2096 = vpop.permute.xlu0 %2095
          %2097 = vrot.lane.b32.xlu0 %v586, 18
          %v2098 = vpop.permute.xlu0 %2097
          %2099 = vrot.lane.b32.xlu0 %v588, 18
          %v2100 = vpop.permute.xlu0 %2099
          %2101 = vrot.lane.b32.xlu0 %v589, 18
          %v2102 = vpop.permute.xlu0 %2101
          %2103 = vrot.lane.b32.xlu0 %v591, 18
          %v2104 = vpop.permute.xlu0 %2103
          %2105 = vrot.lane.b32.xlu0 %v592, 18
          %v2106 = vpop.permute.xlu0 %2105
          %2107 = vrot.lane.b32.xlu0 %v594, 18
          %v2108 = vpop.permute.xlu0 %2107
          %2109 = vrot.lane.b32.xlu0 %v595, 18
          %v2110 = vpop.permute.xlu0 %2109
          %2111 = vrot.lane.b32.xlu0 %v597, 18
          %v2112 = vpop.permute.xlu0 %2111
          %2113 = vrot.lane.b32.xlu0 %v598, 18
          %v2114 = vpop.permute.xlu0 %2113
          %2115 = vrot.lane.b32.xlu0 %v600, 18
          %v2116 = vpop.permute.xlu0 %2115
          %2117 = vrot.lane.b32.xlu0 %v601, 18
          %v2118 = vpop.permute.xlu0 %2117
          %2119 = vrot.lane.b32.xlu0 %v603, 18
          %v2120 = vpop.permute.xlu0 %2119
          %2121 = vrot.lane.b32.xlu0 %v604, 18
          %v2122 = vpop.permute.xlu0 %2121
          %2123 = vrot.lane.b32.xlu0 %v606, 18
          %v2124 = vpop.permute.xlu0 %2123
          %2125 = vrot.lane.b32.xlu0 %v607, 18
          %v2126 = vpop.permute.xlu0 %2125
          %2127 = vrot.lane.b32.xlu0 %v609, 18
          %v2128 = vpop.permute.xlu0 %2127
          %2129 = vrot.lane.b32.xlu0 %v610, 18
          %v2130 = vpop.permute.xlu0 %2129
          %2131 = vrot.lane.b32.xlu0 %v612, 18
          %v2132 = vpop.permute.xlu0 %2131
          %2133 = vrot.lane.b32.xlu0 %v613, 18
          %v2134 = vpop.permute.xlu0 %2133
          %2135 = vrot.lane.b32.xlu0 %v615, 18
          %v2136 = vpop.permute.xlu0 %2135
          %2137 = vrot.lane.b32.xlu0 %v616, 18
          %v2138 = vpop.permute.xlu0 %2137
          %2139 = vrot.lane.b32.xlu0 %v618, 18
          %v2140 = vpop.permute.xlu0 %2139
          %2141 = vrot.lane.b32.xlu0 %v619, 18
          %v2142 = vpop.permute.xlu0 %2141
          %2143 = vrot.lane.b32.xlu0 %v621, 18
          %v2144 = vpop.permute.xlu0 %2143
          %2145 = vrot.lane.b32.xlu0 %v622, 18
          %v2146 = vpop.permute.xlu0 %2145
          %2147 = vrot.lane.b32.xlu0 %v624, 18
          %v2148 = vpop.permute.xlu0 %2147
          %2149 = vrot.lane.b32.xlu0 %v625, 18
          %v2150 = vpop.permute.xlu0 %2149
          %2151 = vrot.lane.b32.xlu0 %v627, 18
          %v2152 = vpop.permute.xlu0 %2151
          %2153 = vrot.lane.b32.xlu0 %v628, 18
          %v2154 = vpop.permute.xlu0 %2153
          %2155 = vrot.lane.b32.xlu0 %v630, 18
          %v2156 = vpop.permute.xlu0 %2155
          %2157 = vrot.lane.b32.xlu0 %v631, 18
          %v2158 = vpop.permute.xlu0 %2157
          %2159 = vrot.lane.b32.xlu0 %v639, 18
          %v2160 = vpop.permute.xlu0 %2159
          %2161 = vrot.lane.b32.xlu0 %v640, 18
          %v2162 = vpop.permute.xlu0 %2161
          %2163 = vrot.lane.b32.xlu0 %v642, 18
          %v2164 = vpop.permute.xlu0 %2163
          %2165 = vrot.lane.b32.xlu0 %v643, 18
          %v2166 = vpop.permute.xlu0 %2165
          %2167 = vrot.lane.b32.xlu0 %v645, 18
          %v2168 = vpop.permute.xlu0 %2167
          %2169 = vrot.lane.b32.xlu0 %v646, 18
          %v2170 = vpop.permute.xlu0 %2169
          %2171 = vrot.lane.b32.xlu0 %v648, 18
          %v2172 = vpop.permute.xlu0 %2171
          %2173 = vrot.lane.b32.xlu0 %v649, 18
          %v2174 = vpop.permute.xlu0 %2173
          %2175 = vrot.lane.b32.xlu0 %v651, 18
          %v2176 = vpop.permute.xlu0 %2175
          %2177 = vrot.lane.b32.xlu0 %v652, 18
          %v2178 = vpop.permute.xlu0 %2177
          %2179 = vrot.lane.b32.xlu0 %v654, 18
          %v2180 = vpop.permute.xlu0 %2179
          %2181 = vrot.lane.b32.xlu0 %v655, 18
          %v2182 = vpop.permute.xlu0 %2181
          %2183 = vrot.lane.b32.xlu0 %v657, 18
          %v2184 = vpop.permute.xlu0 %2183
          %2185 = vrot.lane.b32.xlu0 %v658, 18
          %v2186 = vpop.permute.xlu0 %2185
          %2187 = vrot.lane.b32.xlu0 %v660, 18
          %v2188 = vpop.permute.xlu0 %2187
          %2189 = vrot.lane.b32.xlu0 %v661, 18
          %v2190 = vpop.permute.xlu0 %2189
          %2191 = vrot.lane.b32.xlu0 %v663, 18
          %v2192 = vpop.permute.xlu0 %2191
          %2193 = vrot.lane.b32.xlu0 %v664, 18
          %v2194 = vpop.permute.xlu0 %2193
          %2195 = vrot.lane.b32.xlu0 %v666, 18
          %v2196 = vpop.permute.xlu0 %2195
          %2197 = vrot.lane.b32.xlu0 %v667, 18
          %v2198 = vpop.permute.xlu0 %2197
          %2199 = vrot.lane.b32.xlu0 %v669, 18
          %v2200 = vpop.permute.xlu0 %2199
          %2201 = vrot.lane.b32.xlu0 %v670, 18
          %v2202 = vpop.permute.xlu0 %2201
          %2203 = vrot.lane.b32.xlu0 %v672, 18
          %v2204 = vpop.permute.xlu0 %2203
          %2205 = vrot.lane.b32.xlu0 %v673, 18
          %v2206 = vpop.permute.xlu0 %2205
          %2207 = vrot.lane.b32.xlu0 %v675, 18
          %v2208 = vpop.permute.xlu0 %2207
          %2209 = vrot.lane.b32.xlu0 %v676, 18
          %v2210 = vpop.permute.xlu0 %2209
          %2211 = vrot.lane.b32.xlu0 %v678, 18
          %v2212 = vpop.permute.xlu0 %2211
          %2213 = vrot.lane.b32.xlu0 %v679, 18
          %v2214 = vpop.permute.xlu0 %2213
          %2215 = vrot.lane.b32.xlu0 %v681, 18
          %v2216 = vpop.permute.xlu0 %2215
          %2217 = vrot.lane.b32.xlu0 %v682, 18
          %v2218 = vpop.permute.xlu0 %2217
          %2219 = vrot.lane.b32.xlu0 %v684, 18
          %v2220 = vpop.permute.xlu0 %2219
          %2221 = vrot.lane.b32.xlu0 %v685, 18
          %v2222 = vpop.permute.xlu0 %2221
          %v2289 = vrot.slane %v630, 1
          %v2290 = vrot.slane %v631, 1
          %v2291 = vsel %vm783, %v2289, %v2290
          %v2292 = vrot.slane %v632, 1
          %v2293 = vsel %vm783, %v2290, %v2292
          %v2294 = vrot.slane %v684, 1
          %v2295 = vrot.slane %v685, 1
          %v2296 = vsel %vm783, %v2294, %v2295
          %v2297 = vrot.slane %v686, 1
          %v2298 = vsel %vm783, %v2295, %v2297
          %2299 = vrot.lane.b32.xlu0 %v796, 21
          %v2300 = vpop.permute.xlu0 %2299
          %2301 = vrot.lane.b32.xlu0 %v798, 21
          %v2302 = vpop.permute.xlu0 %2301
          %2303 = vrot.lane.b32.xlu0 %v801, 21
          %v2304 = vpop.permute.xlu0 %2303
          %2305 = vrot.lane.b32.xlu0 %v803, 21
          %v2306 = vpop.permute.xlu0 %2305
          %2307 = vrot.lane.b32.xlu0 %v806, 21
          %v2308 = vpop.permute.xlu0 %2307
          %2309 = vrot.lane.b32.xlu0 %v808, 21
          %v2310 = vpop.permute.xlu0 %2309
          %2311 = vrot.lane.b32.xlu0 %v811, 21
          %v2312 = vpop.permute.xlu0 %2311
          %2313 = vrot.lane.b32.xlu0 %v813, 21
          %v2314 = vpop.permute.xlu0 %2313
          %2315 = vrot.lane.b32.xlu0 %v816, 21
          %v2316 = vpop.permute.xlu0 %2315
          %2317 = vrot.lane.b32.xlu0 %v818, 21
          %v2318 = vpop.permute.xlu0 %2317
          %2319 = vrot.lane.b32.xlu0 %v821, 21
          %v2320 = vpop.permute.xlu0 %2319
          %2321 = vrot.lane.b32.xlu0 %v823, 21
          %v2322 = vpop.permute.xlu0 %2321
          %2323 = vrot.lane.b32.xlu0 %v826, 21
          %v2324 = vpop.permute.xlu0 %2323
          %2325 = vrot.lane.b32.xlu0 %v828, 21
          %v2326 = vpop.permute.xlu0 %2325
          %2327 = vrot.lane.b32.xlu0 %v831, 21
          %v2328 = vpop.permute.xlu0 %2327
          %2329 = vrot.lane.b32.xlu0 %v833, 21
          %v2330 = vpop.permute.xlu0 %2329
          %2331 = vrot.lane.b32.xlu0 %v836, 21
          %v2332 = vpop.permute.xlu0 %2331
          %2333 = vrot.lane.b32.xlu0 %v838, 21
          %v2334 = vpop.permute.xlu0 %2333
          %2335 = vrot.lane.b32.xlu0 %v841, 21
          %v2336 = vpop.permute.xlu0 %2335
          %2337 = vrot.lane.b32.xlu0 %v843, 21
          %v2338 = vpop.permute.xlu0 %2337
          %2339 = vrot.lane.b32.xlu0 %v846, 21
          %v2340 = vpop.permute.xlu0 %2339
          %2341 = vrot.lane.b32.xlu0 %v848, 21
          %v2342 = vpop.permute.xlu0 %2341
          %2343 = vrot.lane.b32.xlu0 %v851, 21
          %v2344 = vpop.permute.xlu0 %2343
          %2345 = vrot.lane.b32.xlu0 %v853, 21
          %v2346 = vpop.permute.xlu0 %2345
          %2347 = vrot.lane.b32.xlu0 %v856, 21
          %v2348 = vpop.permute.xlu0 %2347
          %2349 = vrot.lane.b32.xlu0 %v858, 21
          %v2350 = vpop.permute.xlu0 %2349
          %2351 = vrot.lane.b32.xlu0 %v861, 21
          %v2352 = vpop.permute.xlu0 %2351
          %2353 = vrot.lane.b32.xlu0 %v863, 21
          %v2354 = vpop.permute.xlu0 %2353
          %2355 = vrot.lane.b32.xlu0 %v1689, 21
          %v2356 = vpop.permute.xlu0 %2355
          %2357 = vrot.lane.b32.xlu0 %v1691, 21
          %v2358 = vpop.permute.xlu0 %2357
          %2359 = vrot.lane.b32.xlu0 %v2291, 21
          %v2360 = vpop.permute.xlu0 %2359
          %2361 = vrot.lane.b32.xlu0 %v2293, 21
          %v2362 = vpop.permute.xlu0 %2361
          %2363 = vrot.lane.b32.xlu0 %v876, 21
          %v2364 = vpop.permute.xlu0 %2363
          %2365 = vrot.lane.b32.xlu0 %v878, 21
          %v2366 = vpop.permute.xlu0 %2365
          %2367 = vrot.lane.b32.xlu0 %v881, 21
          %v2368 = vpop.permute.xlu0 %2367
          %2369 = vrot.lane.b32.xlu0 %v883, 21
          %v2370 = vpop.permute.xlu0 %2369
          %2371 = vrot.lane.b32.xlu0 %v886, 21
          %v2372 = vpop.permute.xlu0 %2371
          %2373 = vrot.lane.b32.xlu0 %v888, 21
          %v2374 = vpop.permute.xlu0 %2373
          %2375 = vrot.lane.b32.xlu0 %v891, 21
          %v2376 = vpop.permute.xlu0 %2375
          %2377 = vrot.lane.b32.xlu0 %v893, 21
          %v2378 = vpop.permute.xlu0 %2377
          %2379 = vrot.lane.b32.xlu0 %v896, 21
          %v2380 = vpop.permute.xlu0 %2379
          %2381 = vrot.lane.b32.xlu0 %v898, 21
          %v2382 = vpop.permute.xlu0 %2381
          %2383 = vrot.lane.b32.xlu0 %v901, 21
          %v2384 = vpop.permute.xlu0 %2383
          %2385 = vrot.lane.b32.xlu0 %v903, 21
          %v2386 = vpop.permute.xlu0 %2385
          %2387 = vrot.lane.b32.xlu0 %v906, 21
          %v2388 = vpop.permute.xlu0 %2387
          %2389 = vrot.lane.b32.xlu0 %v908, 21
          %v2390 = vpop.permute.xlu0 %2389
          %2391 = vrot.lane.b32.xlu0 %v911, 21
          %v2392 = vpop.permute.xlu0 %2391
          %2393 = vrot.lane.b32.xlu0 %v913, 21
          %v2394 = vpop.permute.xlu0 %2393
          %2395 = vrot.lane.b32.xlu0 %v916, 21
          %v2396 = vpop.permute.xlu0 %2395
          %2397 = vrot.lane.b32.xlu0 %v918, 21
          %v2398 = vpop.permute.xlu0 %2397
          %2399 = vrot.lane.b32.xlu0 %v921, 21
          %v2400 = vpop.permute.xlu0 %2399
          %2401 = vrot.lane.b32.xlu0 %v923, 21
          %v2402 = vpop.permute.xlu0 %2401
          %2403 = vrot.lane.b32.xlu0 %v926, 21
          %v2404 = vpop.permute.xlu0 %2403
          %2405 = vrot.lane.b32.xlu0 %v928, 21
          %v2406 = vpop.permute.xlu0 %2405
          %2407 = vrot.lane.b32.xlu0 %v931, 21
          %v2408 = vpop.permute.xlu0 %2407
          %2409 = vrot.lane.b32.xlu0 %v933, 21
          %v2410 = vpop.permute.xlu0 %2409
          %2411 = vrot.lane.b32.xlu0 %v936, 21
          %v2412 = vpop.permute.xlu0 %2411
          %2413 = vrot.lane.b32.xlu0 %v938, 21
          %v2414 = vpop.permute.xlu0 %2413
          %2415 = vrot.lane.b32.xlu0 %v941, 21
          %v2416 = vpop.permute.xlu0 %2415
          %2417 = vrot.lane.b32.xlu0 %v943, 21
          %v2418 = vpop.permute.xlu0 %2417
          %2419 = vrot.lane.b32.xlu0 %v1694, 21
          %v2420 = vpop.permute.xlu0 %2419
          %2421 = vrot.lane.b32.xlu0 %v1696, 21
          %v2422 = vpop.permute.xlu0 %2421
          %2423 = vrot.lane.b32.xlu0 %v2296, 21
          %v2424 = vpop.permute.xlu0 %2423
          %2425 = vrot.lane.b32.xlu0 %v2298, 21
          %v2426 = vpop.permute.xlu0 %2425
          %v2491 = vrot.slane %v630, 2
          %v2492 = vrot.slane %v631, 2
          %v2493 = vsel %vm1136, %v2491, %v2492
          %v2494 = vrot.slane %v632, 2
          %v2495 = vsel %vm1136, %v2492, %v2494
          %v2496 = vrot.slane %v684, 2
          %v2497 = vrot.slane %v685, 2
          %v2498 = vsel %vm1136, %v2496, %v2497
          %v2499 = vrot.slane %v686, 2
          %v2500 = vsel %vm1136, %v2497, %v2499
          %2501 = vrot.lane.b32.xlu0 %v1149, 24
          %v2502 = vpop.permute.xlu0 %2501
          %2503 = vrot.lane.b32.xlu0 %v1151, 24
          %v2504 = vpop.permute.xlu0 %2503
          %2505 = vrot.lane.b32.xlu0 %v1154, 24
          %v2506 = vpop.permute.xlu0 %2505
          %2507 = vrot.lane.b32.xlu0 %v1156, 24
          %v2508 = vpop.permute.xlu0 %2507
          %2509 = vrot.lane.b32.xlu0 %v1159, 24
          %v2510 = vpop.permute.xlu0 %2509
          %2511 = vrot.lane.b32.xlu0 %v1161, 24
          %v2512 = vpop.permute.xlu0 %2511
          %2513 = vrot.lane.b32.xlu0 %v1164, 24
          %v2514 = vpop.permute.xlu0 %2513
          %2515 = vrot.lane.b32.xlu0 %v1166, 24
          %v2516 = vpop.permute.xlu0 %2515
          %2517 = vrot.lane.b32.xlu0 %v1169, 24
          %v2518 = vpop.permute.xlu0 %2517
          %2519 = vrot.lane.b32.xlu0 %v1171, 24
          %v2520 = vpop.permute.xlu0 %2519
          %2521 = vrot.lane.b32.xlu0 %v1174, 24
          %v2522 = vpop.permute.xlu0 %2521
          %2523 = vrot.lane.b32.xlu0 %v1176, 24
          %v2524 = vpop.permute.xlu0 %2523
          %2525 = vrot.lane.b32.xlu0 %v1179, 24
          %v2526 = vpop.permute.xlu0 %2525
          %2527 = vrot.lane.b32.xlu0 %v1181, 24
          %v2528 = vpop.permute.xlu0 %2527
          %2529 = vrot.lane.b32.xlu0 %v1184, 24
          %v2530 = vpop.permute.xlu0 %2529
          %2531 = vrot.lane.b32.xlu0 %v1186, 24
          %v2532 = vpop.permute.xlu0 %2531
          %2533 = vrot.lane.b32.xlu0 %v1189, 24
          %v2534 = vpop.permute.xlu0 %2533
          %2535 = vrot.lane.b32.xlu0 %v1191, 24
          %v2536 = vpop.permute.xlu0 %2535
          %2537 = vrot.lane.b32.xlu0 %v1194, 24
          %v2538 = vpop.permute.xlu0 %2537
          %2539 = vrot.lane.b32.xlu0 %v1196, 24
          %v2540 = vpop.permute.xlu0 %2539
          %2541 = vrot.lane.b32.xlu0 %v1199, 24
          %v2542 = vpop.permute.xlu0 %2541
          %2543 = vrot.lane.b32.xlu0 %v1201, 24
          %v2544 = vpop.permute.xlu0 %2543
          %2545 = vrot.lane.b32.xlu0 %v1204, 24
          %v2546 = vpop.permute.xlu0 %2545
          %2547 = vrot.lane.b32.xlu0 %v1206, 24
          %v2548 = vpop.permute.xlu0 %2547
          %2549 = vrot.lane.b32.xlu0 %v1209, 24
          %v2550 = vpop.permute.xlu0 %2549
          %2551 = vrot.lane.b32.xlu0 %v1211, 24
          %v2552 = vpop.permute.xlu0 %2551
          %2553 = vrot.lane.b32.xlu0 %v1214, 24
          %v2554 = vpop.permute.xlu0 %2553
          %2555 = vrot.lane.b32.xlu0 %v1216, 24
          %v2556 = vpop.permute.xlu0 %2555
          %2557 = vrot.lane.b32.xlu0 %v1891, 24
          %v2558 = vpop.permute.xlu0 %2557
          %2559 = vrot.lane.b32.xlu0 %v1893, 24
          %v2560 = vpop.permute.xlu0 %2559
          %2561 = vrot.lane.b32.xlu0 %v2493, 24
          %v2562 = vpop.permute.xlu0 %2561
          %2563 = vrot.lane.b32.xlu0 %v2495, 24
          %v2564 = vpop.permute.xlu0 %2563
          %2565 = vrot.lane.b32.xlu0 %v1229, 24
          %v2566 = vpop.permute.xlu0 %2565
          %2567 = vrot.lane.b32.xlu0 %v1231, 24
          %v2568 = vpop.permute.xlu0 %2567
          %2569 = vrot.lane.b32.xlu0 %v1234, 24
          %v2570 = vpop.permute.xlu0 %2569
          %2571 = vrot.lane.b32.xlu0 %v1236, 24
          %v2572 = vpop.permute.xlu0 %2571
          %2573 = vrot.lane.b32.xlu0 %v1239, 24
          %v2574 = vpop.permute.xlu0 %2573
          %2575 = vrot.lane.b32.xlu0 %v1241, 24
          %v2576 = vpop.permute.xlu0 %2575
          %2577 = vrot.lane.b32.xlu0 %v1244, 24
          %v2578 = vpop.permute.xlu0 %2577
          %2579 = vrot.lane.b32.xlu0 %v1246, 24
          %v2580 = vpop.permute.xlu0 %2579
          %2581 = vrot.lane.b32.xlu0 %v1249, 24
          %v2582 = vpop.permute.xlu0 %2581
          %2583 = vrot.lane.b32.xlu0 %v1251, 24
          %v2584 = vpop.permute.xlu0 %2583
          %2585 = vrot.lane.b32.xlu0 %v1254, 24
          %v2586 = vpop.permute.xlu0 %2585
          %2587 = vrot.lane.b32.xlu0 %v1256, 24
          %v2588 = vpop.permute.xlu0 %2587
          %2589 = vrot.lane.b32.xlu0 %v1259, 24
          %v2590 = vpop.permute.xlu0 %2589
          %2591 = vrot.lane.b32.xlu0 %v1261, 24
          %v2592 = vpop.permute.xlu0 %2591
          %2593 = vrot.lane.b32.xlu0 %v1264, 24
          %v2594 = vpop.permute.xlu0 %2593
          %2595 = vrot.lane.b32.xlu0 %v1266, 24
          %v2596 = vpop.permute.xlu0 %2595
          %2597 = vrot.lane.b32.xlu0 %v1269, 24
          %v2598 = vpop.permute.xlu0 %2597
          %2599 = vrot.lane.b32.xlu0 %v1271, 24
          %v2600 = vpop.permute.xlu0 %2599
          %2601 = vrot.lane.b32.xlu0 %v1274, 24
          %v2602 = vpop.permute.xlu0 %2601
          %2603 = vrot.lane.b32.xlu0 %v1276, 24
          %v2604 = vpop.permute.xlu0 %2603
          %2605 = vrot.lane.b32.xlu0 %v1279, 24
          %v2606 = vpop.permute.xlu0 %2605
          %2607 = vrot.lane.b32.xlu0 %v1281, 24
          %v2608 = vpop.permute.xlu0 %2607
          %2609 = vrot.lane.b32.xlu0 %v1284, 24
          %v2610 = vpop.permute.xlu0 %2609
          %2611 = vrot.lane.b32.xlu0 %v1286, 24
          %v2612 = vpop.permute.xlu0 %2611
          %2613 = vrot.lane.b32.xlu0 %v1289, 24
          %v2614 = vpop.permute.xlu0 %2613
          %2615 = vrot.lane.b32.xlu0 %v1291, 24
          %v2616 = vpop.permute.xlu0 %2615
          %2617 = vrot.lane.b32.xlu0 %v1294, 24
          %v2618 = vpop.permute.xlu0 %2617
          %2619 = vrot.lane.b32.xlu0 %v1296, 24
          %v2620 = vpop.permute.xlu0 %2619
          %2621 = vrot.lane.b32.xlu0 %v1896, 24
          %v2622 = vpop.permute.xlu0 %2621
          %2623 = vrot.lane.b32.xlu0 %v1898, 24
          %v2624 = vpop.permute.xlu0 %2623
          %2625 = vrot.lane.b32.xlu0 %v2498, 24
          %v2626 = vpop.permute.xlu0 %2625
          %2627 = vrot.lane.b32.xlu0 %v2500, 24
          %v2628 = vpop.permute.xlu0 %2627
          %vm2693 = vcmask 23552
          %v2694 = vsel %vm2693, %v579, %v945
          %v2695 = vsel %vm2693, %v580, %v947
          %v2696 = vsel %vm2693, %v582, %v949
          %v2697 = vsel %vm2693, %v583, %v951
          %v2698 = vsel %vm2693, %v585, %v953
          %v2699 = vsel %vm2693, %v586, %v955
          %v2700 = vsel %vm2693, %v588, %v957
          %v2701 = vsel %vm2693, %v589, %v959
          %v2702 = vsel %vm2693, %v591, %v961
          %v2703 = vsel %vm2693, %v592, %v963
          %v2704 = vsel %vm2693, %v594, %v965
          %v2705 = vsel %vm2693, %v595, %v967
          %v2706 = vsel %vm2693, %v597, %v969
          %v2707 = vsel %vm2693, %v598, %v971
          %v2708 = vsel %vm2693, %v600, %v973
          %v2709 = vsel %vm2693, %v601, %v975
          %v2710 = vsel %vm2693, %v603, %v977
          %v2711 = vsel %vm2693, %v604, %v979
          %v2712 = vsel %vm2693, %v606, %v981
          %v2713 = vsel %vm2693, %v607, %v983
          %v2714 = vsel %vm2693, %v609, %v985
          %v2715 = vsel %vm2693, %v610, %v987
          %v2716 = vsel %vm2693, %v612, %v989
          %v2717 = vsel %vm2693, %v613, %v991
          %v2718 = vsel %vm2693, %v615, %v993
          %v2719 = vsel %vm2693, %v616, %v995
          %v2720 = vsel %vm2693, %v618, %v997
          %v2721 = vsel %vm2693, %v619, %v999
          %v2722 = vsel %vm2693, %v621, %v1001
          %v2723 = vsel %vm2693, %v622, %v1003
          %v2724 = vsel %vm2693, %v624, %v1005
          %v2725 = vsel %vm2693, %v625, %v1007
          %v2726 = vsel %vm2693, %v633, %v1009
          %v2727 = vsel %vm2693, %v634, %v1011
          %v2728 = vsel %vm2693, %v636, %v1013
          %v2729 = vsel %vm2693, %v637, %v1015
          %v2730 = vsel %vm2693, %v639, %v1017
          %v2731 = vsel %vm2693, %v640, %v1019
          %v2732 = vsel %vm2693, %v642, %v1021
          %v2733 = vsel %vm2693, %v643, %v1023
          %v2734 = vsel %vm2693, %v645, %v1025
          %v2735 = vsel %vm2693, %v646, %v1027
          %v2736 = vsel %vm2693, %v648, %v1029
          %v2737 = vsel %vm2693, %v649, %v1031
          %v2738 = vsel %vm2693, %v651, %v1033
          %v2739 = vsel %vm2693, %v652, %v1035
          %v2740 = vsel %vm2693, %v654, %v1037
          %v2741 = vsel %vm2693, %v655, %v1039
          %v2742 = vsel %vm2693, %v657, %v1041
          %v2743 = vsel %vm2693, %v658, %v1043
          %v2744 = vsel %vm2693, %v660, %v1045
          %v2745 = vsel %vm2693, %v661, %v1047
          %v2746 = vsel %vm2693, %v663, %v1049
          %v2747 = vsel %vm2693, %v664, %v1051
          %v2748 = vsel %vm2693, %v666, %v1053
          %v2749 = vsel %vm2693, %v667, %v1055
          %v2750 = vsel %vm2693, %v669, %v1057
          %v2751 = vsel %vm2693, %v670, %v1059
          %v2752 = vsel %vm2693, %v672, %v1061
          %v2753 = vsel %vm2693, %v673, %v1063
          %v2754 = vsel %vm2693, %v675, %v1065
          %v2755 = vsel %vm2693, %v676, %v1067
          %v2756 = vsel %vm2693, %v678, %v1069
          %v2757 = vsel %vm2693, %v679, %v1071
          %vm2758 = vcmask 48128
          %v2759 = vsel %vm2758, %v2694, %v1298
          %v2760 = vsel %vm2758, %v2695, %v1300
          %v2761 = vsel %vm2758, %v2696, %v1302
          %v2762 = vsel %vm2758, %v2697, %v1304
          %v2763 = vsel %vm2758, %v2698, %v1306
          %v2764 = vsel %vm2758, %v2699, %v1308
          %v2765 = vsel %vm2758, %v2700, %v1310
          %v2766 = vsel %vm2758, %v2701, %v1312
          %v2767 = vsel %vm2758, %v2702, %v1314
          %v2768 = vsel %vm2758, %v2703, %v1316
          %v2769 = vsel %vm2758, %v2704, %v1318
          %v2770 = vsel %vm2758, %v2705, %v1320
          %v2771 = vsel %vm2758, %v2706, %v1322
          %v2772 = vsel %vm2758, %v2707, %v1324
          %v2773 = vsel %vm2758, %v2708, %v1326
          %v2774 = vsel %vm2758, %v2709, %v1328
          %v2775 = vsel %vm2758, %v2710, %v1330
          %v2776 = vsel %vm2758, %v2711, %v1332
          %v2777 = vsel %vm2758, %v2712, %v1334
          %v2778 = vsel %vm2758, %v2713, %v1336
          %v2779 = vsel %vm2758, %v2714, %v1338
          %v2780 = vsel %vm2758, %v2715, %v1340
          %v2781 = vsel %vm2758, %v2716, %v1342
          %v2782 = vsel %vm2758, %v2717, %v1344
          %v2783 = vsel %vm2758, %v2718, %v1346
          %v2784 = vsel %vm2758, %v2719, %v1348
          %v2785 = vsel %vm2758, %v2720, %v1350
          %v2786 = vsel %vm2758, %v2721, %v1352
          %v2787 = vsel %vm2758, %v2722, %v1354
          %v2788 = vsel %vm2758, %v2723, %v1356
          %v2789 = vsel %vm2758, %v2724, %v1358
          %v2790 = vsel %vm2758, %v2725, %v1360
          %v2791 = vsel %vm2758, %v2726, %v1362
          %v2792 = vsel %vm2758, %v2727, %v1364
          %v2793 = vsel %vm2758, %v2728, %v1366
          %v2794 = vsel %vm2758, %v2729, %v1368
          %v2795 = vsel %vm2758, %v2730, %v1370
          %v2796 = vsel %vm2758, %v2731, %v1372
          %v2797 = vsel %vm2758, %v2732, %v1374
          %v2798 = vsel %vm2758, %v2733, %v1376
          %v2799 = vsel %vm2758, %v2734, %v1378
          %v2800 = vsel %vm2758, %v2735, %v1380
          %v2801 = vsel %vm2758, %v2736, %v1382
          %v2802 = vsel %vm2758, %v2737, %v1384
          %v2803 = vsel %vm2758, %v2738, %v1386
          %v2804 = vsel %vm2758, %v2739, %v1388
          %v2805 = vsel %vm2758, %v2740, %v1390
          %v2806 = vsel %vm2758, %v2741, %v1392
          %v2807 = vsel %vm2758, %v2742, %v1394
          %v2808 = vsel %vm2758, %v2743, %v1396
          %v2809 = vsel %vm2758, %v2744, %v1398
          %v2810 = vsel %vm2758, %v2745, %v1400
          %v2811 = vsel %vm2758, %v2746, %v1402
          %v2812 = vsel %vm2758, %v2747, %v1404
          %v2813 = vsel %vm2758, %v2748, %v1406
          %v2814 = vsel %vm2758, %v2749, %v1408
          %v2815 = vsel %vm2758, %v2750, %v1410
          %v2816 = vsel %vm2758, %v2751, %v1412
          %v2817 = vsel %vm2758, %v2752, %v1414
          %v2818 = vsel %vm2758, %v2753, %v1416
          %v2819 = vsel %vm2758, %v2754, %v1418
          %v2820 = vsel %vm2758, %v2755, %v1420
          %v2821 = vsel %vm2758, %v2756, %v1422
          %v2822 = vsel %vm2758, %v2757, %v1424
          %vm2823 = vcmask 72704
          %v2824 = vsel %vm2823, %v2759, %v1494
          %v2825 = vsel %vm2823, %v2760, %v1496
          %v2826 = vsel %vm2823, %v2761, %v1498
          %v2827 = vsel %vm2823, %v2762, %v1500
          %v2828 = vsel %vm2823, %v2763, %v1502
          %v2829 = vsel %vm2823, %v2764, %v1504
          %v2830 = vsel %vm2823, %v2765, %v1506
          %v2831 = vsel %vm2823, %v2766, %v1508
          %v2832 = vsel %vm2823, %v2767, %v1510
          %v2833 = vsel %vm2823, %v2768, %v1512
          %v2834 = vsel %vm2823, %v2769, %v1514
          %v2835 = vsel %vm2823, %v2770, %v1516
          %v2836 = vsel %vm2823, %v2771, %v1518
          %v2837 = vsel %vm2823, %v2772, %v1520
          %v2838 = vsel %vm2823, %v2773, %v1522
          %v2839 = vsel %vm2823, %v2774, %v1524
          %v2840 = vsel %vm2823, %v2775, %v1526
          %v2841 = vsel %vm2823, %v2776, %v1528
          %v2842 = vsel %vm2823, %v2777, %v1530
          %v2843 = vsel %vm2823, %v2778, %v1532
          %v2844 = vsel %vm2823, %v2779, %v1534
          %v2845 = vsel %vm2823, %v2780, %v1536
          %v2846 = vsel %vm2823, %v2781, %v1538
          %v2847 = vsel %vm2823, %v2782, %v1540
          %v2848 = vsel %vm2823, %v2783, %v1542
          %v2849 = vsel %vm2823, %v2784, %v1544
          %v2850 = vsel %vm2823, %v2785, %v1546
          %v2851 = vsel %vm2823, %v2786, %v1548
          %v2852 = vsel %vm2823, %v2787, %v1550
          %v2853 = vsel %vm2823, %v2788, %v1552
          %v2854 = vsel %vm2823, %v2789, %v1554
          %v2855 = vsel %vm2823, %v2790, %v1556
          %v2856 = vsel %vm2823, %v2791, %v1558
          %v2857 = vsel %vm2823, %v2792, %v1560
          %v2858 = vsel %vm2823, %v2793, %v1562
          %v2859 = vsel %vm2823, %v2794, %v1564
          %v2860 = vsel %vm2823, %v2795, %v1566
          %v2861 = vsel %vm2823, %v2796, %v1568
          %v2862 = vsel %vm2823, %v2797, %v1570
          %v2863 = vsel %vm2823, %v2798, %v1572
          %v2864 = vsel %vm2823, %v2799, %v1574
          %v2865 = vsel %vm2823, %v2800, %v1576
          %v2866 = vsel %vm2823, %v2801, %v1578
          %v2867 = vsel %vm2823, %v2802, %v1580
          %v2868 = vsel %vm2823, %v2803, %v1582
          %v2869 = vsel %vm2823, %v2804, %v1584
          %v2870 = vsel %vm2823, %v2805, %v1586
          %v2871 = vsel %vm2823, %v2806, %v1588
          %v2872 = vsel %vm2823, %v2807, %v1590
          %v2873 = vsel %vm2823, %v2808, %v1592
          %v2874 = vsel %vm2823, %v2809, %v1594
          %v2875 = vsel %vm2823, %v2810, %v1596
          %v2876 = vsel %vm2823, %v2811, %v1598
          %v2877 = vsel %vm2823, %v2812, %v1600
          %v2878 = vsel %vm2823, %v2813, %v1602
          %v2879 = vsel %vm2823, %v2814, %v1604
          %v2880 = vsel %vm2823, %v2815, %v1606
          %v2881 = vsel %vm2823, %v2816, %v1608
          %v2882 = vsel %vm2823, %v2817, %v1610
          %v2883 = vsel %vm2823, %v2818, %v1612
          %v2884 = vsel %vm2823, %v2819, %v1614
          %v2885 = vsel %vm2823, %v2820, %v1616
          %v2886 = vsel %vm2823, %v2821, %v1618
          %v2887 = vsel %vm2823, %v2822, %v1620
          %vm2888 = vcmask 97280
          %v2889 = vsel %vm2888, %v2824, %v1698
          %v2890 = vsel %vm2888, %v2825, %v1700
          %v2891 = vsel %vm2888, %v2826, %v1702
          %v2892 = vsel %vm2888, %v2827, %v1704
          %v2893 = vsel %vm2888, %v2828, %v1706
          %v2894 = vsel %vm2888, %v2829, %v1708
          %v2895 = vsel %vm2888, %v2830, %v1710
          %v2896 = vsel %vm2888, %v2831, %v1712
          %v2897 = vsel %vm2888, %v2832, %v1714
          %v2898 = vsel %vm2888, %v2833, %v1716
          %v2899 = vsel %vm2888, %v2834, %v1718
          %v2900 = vsel %vm2888, %v2835, %v1720
          %v2901 = vsel %vm2888, %v2836, %v1722
          %v2902 = vsel %vm2888, %v2837, %v1724
          %v2903 = vsel %vm2888, %v2838, %v1726
          %v2904 = vsel %vm2888, %v2839, %v1728
          %v2905 = vsel %vm2888, %v2840, %v1730
          %v2906 = vsel %vm2888, %v2841, %v1732
          %v2907 = vsel %vm2888, %v2842, %v1734
          %v2908 = vsel %vm2888, %v2843, %v1736
          %v2909 = vsel %vm2888, %v2844, %v1738
          %v2910 = vsel %vm2888, %v2845, %v1740
          %v2911 = vsel %vm2888, %v2846, %v1742
          %v2912 = vsel %vm2888, %v2847, %v1744
          %v2913 = vsel %vm2888, %v2848, %v1746
          %v2914 = vsel %vm2888, %v2849, %v1748
          %v2915 = vsel %vm2888, %v2850, %v1750
          %v2916 = vsel %vm2888, %v2851, %v1752
          %v2917 = vsel %vm2888, %v2852, %v1754
          %v2918 = vsel %vm2888, %v2853, %v1756
          %v2919 = vsel %vm2888, %v2854, %v1758
          %v2920 = vsel %vm2888, %v2855, %v1760
          %v2921 = vsel %vm2888, %v2856, %v1762
          %v2922 = vsel %vm2888, %v2857, %v1764
          %v2923 = vsel %vm2888, %v2858, %v1766
          %v2924 = vsel %vm2888, %v2859, %v1768
          %v2925 = vsel %vm2888, %v2860, %v1770
          %v2926 = vsel %vm2888, %v2861, %v1772
          %v2927 = vsel %vm2888, %v2862, %v1774
          %v2928 = vsel %vm2888, %v2863, %v1776
          %v2929 = vsel %vm2888, %v2864, %v1778
          %v2930 = vsel %vm2888, %v2865, %v1780
          %v2931 = vsel %vm2888, %v2866, %v1782
          %v2932 = vsel %vm2888, %v2867, %v1784
          %v2933 = vsel %vm2888, %v2868, %v1786
          %v2934 = vsel %vm2888, %v2869, %v1788
          %v2935 = vsel %vm2888, %v2870, %v1790
          %v2936 = vsel %vm2888, %v2871, %v1792
          %v2937 = vsel %vm2888, %v2872, %v1794
          %v2938 = vsel %vm2888, %v2873, %v1796
          %v2939 = vsel %vm2888, %v2874, %v1798
          %v2940 = vsel %vm2888, %v2875, %v1800
          %v2941 = vsel %vm2888, %v2876, %v1802
          %v2942 = vsel %vm2888, %v2877, %v1804
          %v2943 = vsel %vm2888, %v2878, %v1806
          %v2944 = vsel %vm2888, %v2879, %v1808
          %v2945 = vsel %vm2888, %v2880, %v1810
          %v2946 = vsel %vm2888, %v2881, %v1812
          %v2947 = vsel %vm2888, %v2882, %v1814
          %v2948 = vsel %vm2888, %v2883, %v1816
          %v2949 = vsel %vm2888, %v2884, %v1818
          %v2950 = vsel %vm2888, %v2885, %v1820
          %v2951 = vsel %vm2888, %v2886, %v1822
          %v2952 = vsel %vm2888, %v2887, %v1824
          %vm2953 = vcmask 121856
          %v2954 = vsel %vm2953, %v2889, %v1900
          %v2955 = vsel %vm2953, %v2890, %v1902
          %v2956 = vsel %vm2953, %v2891, %v1904
          %v2957 = vsel %vm2953, %v2892, %v1906
          %v2958 = vsel %vm2953, %v2893, %v1908
          %v2959 = vsel %vm2953, %v2894, %v1910
          %v2960 = vsel %vm2953, %v2895, %v1912
          %v2961 = vsel %vm2953, %v2896, %v1914
          %v2962 = vsel %vm2953, %v2897, %v1916
          %v2963 = vsel %vm2953, %v2898, %v1918
          %v2964 = vsel %vm2953, %v2899, %v1920
          %v2965 = vsel %vm2953, %v2900, %v1922
          %v2966 = vsel %vm2953, %v2901, %v1924
          %v2967 = vsel %vm2953, %v2902, %v1926
          %v2968 = vsel %vm2953, %v2903, %v1928
          %v2969 = vsel %vm2953, %v2904, %v1930
          %v2970 = vsel %vm2953, %v2905, %v1932
          %v2971 = vsel %vm2953, %v2906, %v1934
          %v2972 = vsel %vm2953, %v2907, %v1936
          %v2973 = vsel %vm2953, %v2908, %v1938
          %v2974 = vsel %vm2953, %v2909, %v1940
          %v2975 = vsel %vm2953, %v2910, %v1942
          %v2976 = vsel %vm2953, %v2911, %v1944
          %v2977 = vsel %vm2953, %v2912, %v1946
          %v2978 = vsel %vm2953, %v2913, %v1948
          %v2979 = vsel %vm2953, %v2914, %v1950
          %v2980 = vsel %vm2953, %v2915, %v1952
          %v2981 = vsel %vm2953, %v2916, %v1954
          %v2982 = vsel %vm2953, %v2917, %v1956
          %v2983 = vsel %vm2953, %v2918, %v1958
          %v2984 = vsel %vm2953, %v2919, %v1960
          %v2985 = vsel %vm2953, %v2920, %v1962
          %v2986 = vsel %vm2953, %v2921, %v1964
          %v2987 = vsel %vm2953, %v2922, %v1966
          %v2988 = vsel %vm2953, %v2923, %v1968
          %v2989 = vsel %vm2953, %v2924, %v1970
          %v2990 = vsel %vm2953, %v2925, %v1972
          %v2991 = vsel %vm2953, %v2926, %v1974
          %v2992 = vsel %vm2953, %v2927, %v1976
          %v2993 = vsel %vm2953, %v2928, %v1978
          %v2994 = vsel %vm2953, %v2929, %v1980
          %v2995 = vsel %vm2953, %v2930, %v1982
          %v2996 = vsel %vm2953, %v2931, %v1984
          %v2997 = vsel %vm2953, %v2932, %v1986
          %v2998 = vsel %vm2953, %v2933, %v1988
          %v2999 = vsel %vm2953, %v2934, %v1990
          %v3000 = vsel %vm2953, %v2935, %v1992
          %v3001 = vsel %vm2953, %v2936, %v1994
          %v3002 = vsel %vm2953, %v2937, %v1996
          %v3003 = vsel %vm2953, %v2938, %v1998
          %v3004 = vsel %vm2953, %v2939, %v2000
          %v3005 = vsel %vm2953, %v2940, %v2002
          %v3006 = vsel %vm2953, %v2941, %v2004
          %v3007 = vsel %vm2953, %v2942, %v2006
          %v3008 = vsel %vm2953, %v2943, %v2008
          %v3009 = vsel %vm2953, %v2944, %v2010
          %v3010 = vsel %vm2953, %v2945, %v2012
          %v3011 = vsel %vm2953, %v2946, %v2014
          %v3012 = vsel %vm2953, %v2947, %v2016
          %v3013 = vsel %vm2953, %v2948, %v2018
          %v3014 = vsel %vm2953, %v2949, %v2020
          %v3015 = vsel %vm2953, %v2950, %v2022
          %v3016 = vsel %vm2953, %v2951, %v2024
          %v3017 = vsel %vm2953, %v2952, %v2026
          %vm3018 = vcmask 146432
          %v3019 = vsel %vm3018, %v2954, %v2096
          %v3020 = vsel %vm3018, %v2955, %v2098
          %v3021 = vsel %vm3018, %v2956, %v2100
          %v3022 = vsel %vm3018, %v2957, %v2102
          %v3023 = vsel %vm3018, %v2958, %v2104
          %v3024 = vsel %vm3018, %v2959, %v2106
          %v3025 = vsel %vm3018, %v2960, %v2108
          %v3026 = vsel %vm3018, %v2961, %v2110
          %v3027 = vsel %vm3018, %v2962, %v2112
          %v3028 = vsel %vm3018, %v2963, %v2114
          %v3029 = vsel %vm3018, %v2964, %v2116
          %v3030 = vsel %vm3018, %v2965, %v2118
          %v3031 = vsel %vm3018, %v2966, %v2120
          %v3032 = vsel %vm3018, %v2967, %v2122
          %v3033 = vsel %vm3018, %v2968, %v2124
          %v3034 = vsel %vm3018, %v2969, %v2126
          %v3035 = vsel %vm3018, %v2970, %v2128
          %v3036 = vsel %vm3018, %v2971, %v2130
          %v3037 = vsel %vm3018, %v2972, %v2132
          %v3038 = vsel %vm3018, %v2973, %v2134
          %v3039 = vsel %vm3018, %v2974, %v2136
          %v3040 = vsel %vm3018, %v2975, %v2138
          %v3041 = vsel %vm3018, %v2976, %v2140
          %v3042 = vsel %vm3018, %v2977, %v2142
          %v3043 = vsel %vm3018, %v2978, %v2144
          %v3044 = vsel %vm3018, %v2979, %v2146
          %v3045 = vsel %vm3018, %v2980, %v2148
          %v3046 = vsel %vm3018, %v2981, %v2150
          %v3047 = vsel %vm3018, %v2982, %v2152
          %v3048 = vsel %vm3018, %v2983, %v2154
          %v3049 = vsel %vm3018, %v2984, %v2156
          %v3050 = vsel %vm3018, %v2985, %v2158
          %v3051 = vsel %vm3018, %v2986, %v2160
          %v3052 = vsel %vm3018, %v2987, %v2162
          %v3053 = vsel %vm3018, %v2988, %v2164
          %v3054 = vsel %vm3018, %v2989, %v2166
          %v3055 = vsel %vm3018, %v2990, %v2168
          %v3056 = vsel %vm3018, %v2991, %v2170
          %v3057 = vsel %vm3018, %v2992, %v2172
          %v3058 = vsel %vm3018, %v2993, %v2174
          %v3059 = vsel %vm3018, %v2994, %v2176
          %v3060 = vsel %vm3018, %v2995, %v2178
          %v3061 = vsel %vm3018, %v2996, %v2180
          %v3062 = vsel %vm3018, %v2997, %v2182
          %v3063 = vsel %vm3018, %v2998, %v2184
          %v3064 = vsel %vm3018, %v2999, %v2186
          %v3065 = vsel %vm3018, %v3000, %v2188
          %v3066 = vsel %vm3018, %v3001, %v2190
          %v3067 = vsel %vm3018, %v3002, %v2192
          %v3068 = vsel %vm3018, %v3003, %v2194
          %v3069 = vsel %vm3018, %v3004, %v2196
          %v3070 = vsel %vm3018, %v3005, %v2198
          %v3071 = vsel %vm3018, %v3006, %v2200
          %v3072 = vsel %vm3018, %v3007, %v2202
          %v3073 = vsel %vm3018, %v3008, %v2204
          %v3074 = vsel %vm3018, %v3009, %v2206
          %v3075 = vsel %vm3018, %v3010, %v2208
          %v3076 = vsel %vm3018, %v3011, %v2210
          %v3077 = vsel %vm3018, %v3012, %v2212
          %v3078 = vsel %vm3018, %v3013, %v2214
          %v3079 = vsel %vm3018, %v3014, %v2216
          %v3080 = vsel %vm3018, %v3015, %v2218
          %v3081 = vsel %vm3018, %v3016, %v2220
          %v3082 = vsel %vm3018, %v3017, %v2222
          %vm3083 = vcmask 171008
          %v3084 = vsel %vm3083, %v3019, %v2300
          %v3085 = vsel %vm3083, %v3020, %v2302
          %v3086 = vsel %vm3083, %v3021, %v2304
          %v3087 = vsel %vm3083, %v3022, %v2306
          %v3088 = vsel %vm3083, %v3023, %v2308
          %v3089 = vsel %vm3083, %v3024, %v2310
          %v3090 = vsel %vm3083, %v3025, %v2312
          %v3091 = vsel %vm3083, %v3026, %v2314
          %v3092 = vsel %vm3083, %v3027, %v2316
          %v3093 = vsel %vm3083, %v3028, %v2318
          %v3094 = vsel %vm3083, %v3029, %v2320
          %v3095 = vsel %vm3083, %v3030, %v2322
          %v3096 = vsel %vm3083, %v3031, %v2324
          %v3097 = vsel %vm3083, %v3032, %v2326
          %v3098 = vsel %vm3083, %v3033, %v2328
          %v3099 = vsel %vm3083, %v3034, %v2330
          %v3100 = vsel %vm3083, %v3035, %v2332
          %v3101 = vsel %vm3083, %v3036, %v2334
          %v3102 = vsel %vm3083, %v3037, %v2336
          %v3103 = vsel %vm3083, %v3038, %v2338
          %v3104 = vsel %vm3083, %v3039, %v2340
          %v3105 = vsel %vm3083, %v3040, %v2342
          %v3106 = vsel %vm3083, %v3041, %v2344
          %v3107 = vsel %vm3083, %v3042, %v2346
          %v3108 = vsel %vm3083, %v3043, %v2348
          %v3109 = vsel %vm3083, %v3044, %v2350
          %v3110 = vsel %vm3083, %v3045, %v2352
          %v3111 = vsel %vm3083, %v3046, %v2354
          %v3112 = vsel %vm3083, %v3047, %v2356
          %v3113 = vsel %vm3083, %v3048, %v2358
          %v3114 = vsel %vm3083, %v3049, %v2360
          %v3115 = vsel %vm3083, %v3050, %v2362
          %v3116 = vsel %vm3083, %v3051, %v2364
          %v3117 = vsel %vm3083, %v3052, %v2366
          %v3118 = vsel %vm3083, %v3053, %v2368
          %v3119 = vsel %vm3083, %v3054, %v2370
          %v3120 = vsel %vm3083, %v3055, %v2372
          %v3121 = vsel %vm3083, %v3056, %v2374
          %v3122 = vsel %vm3083, %v3057, %v2376
          %v3123 = vsel %vm3083, %v3058, %v2378
          %v3124 = vsel %vm3083, %v3059, %v2380
          %v3125 = vsel %vm3083, %v3060, %v2382
          %v3126 = vsel %vm3083, %v3061, %v2384
          %v3127 = vsel %vm3083, %v3062, %v2386
          %v3128 = vsel %vm3083, %v3063, %v2388
          %v3129 = vsel %vm3083, %v3064, %v2390
          %v3130 = vsel %vm3083, %v3065, %v2392
          %v3131 = vsel %vm3083, %v3066, %v2394
          %v3132 = vsel %vm3083, %v3067, %v2396
          %v3133 = vsel %vm3083, %v3068, %v2398
          %v3134 = vsel %vm3083, %v3069, %v2400
          %v3135 = vsel %vm3083, %v3070, %v2402
          %v3136 = vsel %vm3083, %v3071, %v2404
          %v3137 = vsel %vm3083, %v3072, %v2406
          %v3138 = vsel %vm3083, %v3073, %v2408
          %v3139 = vsel %vm3083, %v3074, %v2410
          %v3140 = vsel %vm3083, %v3075, %v2412
          %v3141 = vsel %vm3083, %v3076, %v2414
          %v3142 = vsel %vm3083, %v3077, %v2416
          %v3143 = vsel %vm3083, %v3078, %v2418
          %v3144 = vsel %vm3083, %v3079, %v2420
          %v3145 = vsel %vm3083, %v3080, %v2422
          %v3146 = vsel %vm3083, %v3081, %v2424
          %v3147 = vsel %vm3083, %v3082, %v2426
          %vm3148 = vcmask 195584
          %v3149 = vsel %vm3148, %v3084, %v2502
          %v3150 = vsel %vm3148, %v3085, %v2504
          %v3151 = vsel %vm3148, %v3086, %v2506
          %v3152 = vsel %vm3148, %v3087, %v2508
          %v3153 = vsel %vm3148, %v3088, %v2510
          %v3154 = vsel %vm3148, %v3089, %v2512
          %v3155 = vsel %vm3148, %v3090, %v2514
          %v3156 = vsel %vm3148, %v3091, %v2516
          %v3157 = vsel %vm3148, %v3092, %v2518
          %v3158 = vsel %vm3148, %v3093, %v2520
          %v3159 = vsel %vm3148, %v3094, %v2522
          %v3160 = vsel %vm3148, %v3095, %v2524
          %v3161 = vsel %vm3148, %v3096, %v2526
          %v3162 = vsel %vm3148, %v3097, %v2528
          %v3163 = vsel %vm3148, %v3098, %v2530
          %v3164 = vsel %vm3148, %v3099, %v2532
          %v3165 = vsel %vm3148, %v3100, %v2534
          %v3166 = vsel %vm3148, %v3101, %v2536
          %v3167 = vsel %vm3148, %v3102, %v2538
          %v3168 = vsel %vm3148, %v3103, %v2540
          %v3169 = vsel %vm3148, %v3104, %v2542
          %v3170 = vsel %vm3148, %v3105, %v2544
          %v3171 = vsel %vm3148, %v3106, %v2546
          %v3172 = vsel %vm3148, %v3107, %v2548
          %v3173 = vsel %vm3148, %v3108, %v2550
          %v3174 = vsel %vm3148, %v3109, %v2552
          %v3175 = vsel %vm3148, %v3110, %v2554
          %v3176 = vsel %vm3148, %v3111, %v2556
          %v3177 = vsel %vm3148, %v3112, %v2558
          %v3178 = vsel %vm3148, %v3113, %v2560
          %v3179 = vsel %vm3148, %v3114, %v2562
          %v3180 = vsel %vm3148, %v3115, %v2564
          %v3181 = vsel %vm3148, %v3116, %v2566
          %v3182 = vsel %vm3148, %v3117, %v2568
          %v3183 = vsel %vm3148, %v3118, %v2570
          %v3184 = vsel %vm3148, %v3119, %v2572
          %v3185 = vsel %vm3148, %v3120, %v2574
          %v3186 = vsel %vm3148, %v3121, %v2576
          %v3187 = vsel %vm3148, %v3122, %v2578
          %v3188 = vsel %vm3148, %v3123, %v2580
          %v3189 = vsel %vm3148, %v3124, %v2582
          %v3190 = vsel %vm3148, %v3125, %v2584
          %v3191 = vsel %vm3148, %v3126, %v2586
          %v3192 = vsel %vm3148, %v3127, %v2588
          %v3193 = vsel %vm3148, %v3128, %v2590
          %v3194 = vsel %vm3148, %v3129, %v2592
          %v3195 = vsel %vm3148, %v3130, %v2594
          %v3196 = vsel %vm3148, %v3131, %v2596
          %v3197 = vsel %vm3148, %v3132, %v2598
          %v3198 = vsel %vm3148, %v3133, %v2600
          %v3199 = vsel %vm3148, %v3134, %v2602
          %v3200 = vsel %vm3148, %v3135, %v2604
          %v3201 = vsel %vm3148, %v3136, %v2606
          %v3202 = vsel %vm3148, %v3137, %v2608
          %v3203 = vsel %vm3148, %v3138, %v2610
          %v3204 = vsel %vm3148, %v3139, %v2612
          %v3205 = vsel %vm3148, %v3140, %v2614
          %v3206 = vsel %vm3148, %v3141, %v2616
          %v3207 = vsel %vm3148, %v3142, %v2618
          %v3208 = vsel %vm3148, %v3143, %v2620
          %v3209 = vsel %vm3148, %v3144, %v2622
          %v3210 = vsel %vm3148, %v3145, %v2624
          %v3211 = vsel %vm3148, %v3146, %v2626
          %v3212 = vsel %vm3148, %v3147, %v2628
          %vm3213 = vcmask 220160
          %3214 = vst.msk [vmem:[#allocation2] sm:$0xff] %vm3213, %v3149
          %3215 = vst.msk [vmem:[#allocation2 + $0x8] sm:$0xff] %vm3213, %v3150
          %3216 = vst.msk [vmem:[#allocation2 + $0x10] sm:$0xff] %vm3213, %v3151
          %3217 = vst.msk [vmem:[#allocation2 + $0x18] sm:$0xff] %vm3213, %v3152
          %3218 = vst.msk [vmem:[#allocation2 + $0x20] sm:$0xff] %vm3213, %v3153
          %3219 = vst.msk [vmem:[#allocation2 + $0x28] sm:$0xff] %vm3213, %v3154
          %3220 = vst.msk [vmem:[#allocation2 + $0x30] sm:$0xff] %vm3213, %v3155
          %3221 = vst.msk [vmem:[#allocation2 + $0x38] sm:$0xff] %vm3213, %v3156
          %3222 = vst.msk [vmem:[#allocation2 + $0x40] sm:$0xff] %vm3213, %v3157
          %3223 = vst.msk [vmem:[#allocation2 + $0x48] sm:$0xff] %vm3213, %v3158
          %3224 = vst.msk [vmem:[#allocation2 + $0x50] sm:$0xff] %vm3213, %v3159
          %3225 = vst.msk [vmem:[#allocation2 + $0x58] sm:$0xff] %vm3213, %v3160
          %3226 = vst.msk [vmem:[#allocation2 + $0x60] sm:$0xff] %vm3213, %v3161
          %3227 = vst.msk [vmem:[#allocation2 + $0x68] sm:$0xff] %vm3213, %v3162
          %3228 = vst.msk [vmem:[#allocation2 + $0x70] sm:$0xff] %vm3213, %v3163
          %3229 = vst.msk [vmem:[#allocation2 + $0x78] sm:$0xff] %vm3213, %v3164
          %3230 = vst.msk [vmem:[#allocation2 + $0x80] sm:$0xff] %vm3213, %v3165
          %3231 = vst.msk [vmem:[#allocation2 + $0x88] sm:$0xff] %vm3213, %v3166
          %3232 = vst.msk [vmem:[#allocation2 + $0x90] sm:$0xff] %vm3213, %v3167
          %3233 = vst.msk [vmem:[#allocation2 + $0x98] sm:$0xff] %vm3213, %v3168
          %3234 = vst.msk [vmem:[#allocation2 + $0xa0] sm:$0xff] %vm3213, %v3169
          %3235 = vst.msk [vmem:[#allocation2 + $0xa8] sm:$0xff] %vm3213, %v3170
          %3236 = vst.msk [vmem:[#allocation2 + $0xb0] sm:$0xff] %vm3213, %v3171
          %3237 = vst.msk [vmem:[#allocation2 + $0xb8] sm:$0xff] %vm3213, %v3172
          %3238 = vst.msk [vmem:[#allocation2 + $0xc0] sm:$0xff] %vm3213, %v3173
          %3239 = vst.msk [vmem:[#allocation2 + $0xc8] sm:$0xff] %vm3213, %v3174
          %3240 = vst.msk [vmem:[#allocation2 + $0xd0] sm:$0xff] %vm3213, %v3175
          %3241 = vst.msk [vmem:[#allocation2 + $0xd8] sm:$0xff] %vm3213, %v3176
          %3242 = vst.msk [vmem:[#allocation2 + $0xe0] sm:$0xff] %vm3213, %v3177
          %3243 = vst.msk [vmem:[#allocation2 + $0xe8] sm:$0xff] %vm3213, %v3178
          %3244 = vst.msk [vmem:[#allocation2 + $0xf0] sm:$0xff] %vm3213, %v3179
          %3245 = vst.msk [vmem:[#allocation2 + $0xf8] sm:$0xff] %vm3213, %v3180
          %3246 = vst.msk [vmem:[#allocation2 + $0x100] sm:$0xff] %vm3213, %v3181
          %3247 = vst.msk [vmem:[#allocation2 + $0x108] sm:$0xff] %vm3213, %v3182
          %3248 = vst.msk [vmem:[#allocation2 + $0x110] sm:$0xff] %vm3213, %v3183
          %3249 = vst.msk [vmem:[#allocation2 + $0x118] sm:$0xff] %vm3213, %v3184
          %3250 = vst.msk [vmem:[#allocation2 + $0x120] sm:$0xff] %vm3213, %v3185
          %3251 = vst.msk [vmem:[#allocation2 + $0x128] sm:$0xff] %vm3213, %v3186
          %3252 = vst.msk [vmem:[#allocation2 + $0x130] sm:$0xff] %vm3213, %v3187
          %3253 = vst.msk [vmem:[#allocation2 + $0x138] sm:$0xff] %vm3213, %v3188
          %3254 = vst.msk [vmem:[#allocation2 + $0x140] sm:$0xff] %vm3213, %v3189
          %3255 = vst.msk [vmem:[#allocation2 + $0x148] sm:$0xff] %vm3213, %v3190
          %3256 = vst.msk [vmem:[#allocation2 + $0x150] sm:$0xff] %vm3213, %v3191
          %3257 = vst.msk [vmem:[#allocation2 + $0x158] sm:$0xff] %vm3213, %v3192
          %3258 = vst.msk [vmem:[#allocation2 + $0x160] sm:$0xff] %vm3213, %v3193
          %3259 = vst.msk [vmem:[#allocation2 + $0x168] sm:$0xff] %vm3213, %v3194
          %3260 = vst.msk [vmem:[#allocation2 + $0x170] sm:$0xff] %vm3213, %v3195
          %3261 = vst.msk [vmem:[#allocation2 + $0x178] sm:$0xff] %vm3213, %v3196
          %3262 = vst.msk [vmem:[#allocation2 + $0x180] sm:$0xff] %vm3213, %v3197
          %3263 = vst.msk [vmem:[#allocation2 + $0x188] sm:$0xff] %vm3213, %v3198
          %3264 = vst.msk [vmem:[#allocation2 + $0x190] sm:$0xff] %vm3213, %v3199
          %3265 = vst.msk [vmem:[#allocation2 + $0x198] sm:$0xff] %vm3213, %v3200
          %3266 = vst.msk [vmem:[#allocation2 + $0x1a0] sm:$0xff] %vm3213, %v3201
          %3267 = vst.msk [vmem:[#allocation2 + $0x1a8] sm:$0xff] %vm3213, %v3202
          %3268 = vst.msk [vmem:[#allocation2 + $0x1b0] sm:$0xff] %vm3213, %v3203
          %3269 = vst.msk [vmem:[#allocation2 + $0x1b8] sm:$0xff] %vm3213, %v3204
          %3270 = vst.msk [vmem:[#allocation2 + $0x1c0] sm:$0xff] %vm3213, %v3205
          %3271 = vst.msk [vmem:[#allocation2 + $0x1c8] sm:$0xff] %vm3213, %v3206
          %3272 = vst.msk [vmem:[#allocation2 + $0x1d0] sm:$0xff] %vm3213, %v3207
          %3273 = vst.msk [vmem:[#allocation2 + $0x1d8] sm:$0xff] %vm3213, %v3208
          %3274 = vst.msk [vmem:[#allocation2 + $0x1e0] sm:$0xff] %vm3213, %v3209
          %3275 = vst.msk [vmem:[#allocation2 + $0x1e8] sm:$0xff] %vm3213, %v3210
          %3276 = vst.msk [vmem:[#allocation2 + $0x1f0] sm:$0xff] %vm3213, %v3211
          %3277 = vst.msk [vmem:[#allocation2 + $0x1f8] sm:$0xff] %vm3213, %v3212
        $region76: #{net_forward.1} parent=71 // pred_fallthru
          _
        %v3278 = vld [vmem:[#allocation2] sm:$0xff]
        %v3279 = vld [vmem:[#allocation2 + $0x8] sm:$0xff]
        %v3280 = vld [vmem:[#allocation2 + $0x10] sm:$0xff]
        %v3281 = vld [vmem:[#allocation2 + $0x18] sm:$0xff]
        %v3282 = vld [vmem:[#allocation2 + $0x20] sm:$0xff]
        %v3283 = vld [vmem:[#allocation2 + $0x28] sm:$0xff]
        %v3284 = vld [vmem:[#allocation2 + $0x30] sm:$0xff]
        %v3285 = vld [vmem:[#allocation2 + $0x38] sm:$0xff]
        %v3286 = vld [vmem:[#allocation2 + $0x40] sm:$0xff]
        %v3287 = vld [vmem:[#allocation2 + $0x48] sm:$0xff]
        %v3288 = vld [vmem:[#allocation2 + $0x50] sm:$0xff]
        %v3289 = vld [vmem:[#allocation2 + $0x58] sm:$0xff]
        %v3290 = vld [vmem:[#allocation2 + $0x60] sm:$0xff]
        %v3291 = vld [vmem:[#allocation2 + $0x68] sm:$0xff]
        %v3292 = vld [vmem:[#allocation2 + $0x70] sm:$0xff]
        %v3293 = vld [vmem:[#allocation2 + $0x78] sm:$0xff]
        %v3294 = vld [vmem:[#allocation2 + $0x80] sm:$0xff]
        %v3295 = vld [vmem:[#allocation2 + $0x88] sm:$0xff]
        %v3296 = vld [vmem:[#allocation2 + $0x90] sm:$0xff]
        %v3297 = vld [vmem:[#allocation2 + $0x98] sm:$0xff]
        %v3298 = vld [vmem:[#allocation2 + $0xa0] sm:$0xff]
        %v3299 = vld [vmem:[#allocation2 + $0xa8] sm:$0xff]
        %v3300 = vld [vmem:[#allocation2 + $0xb0] sm:$0xff]
        %v3301 = vld [vmem:[#allocation2 + $0xb8] sm:$0xff]
        %v3302 = vld [vmem:[#allocation2 + $0xc0] sm:$0xff]
        %v3303 = vld [vmem:[#allocation2 + $0xc8] sm:$0xff]
        %v3304 = vld [vmem:[#allocation2 + $0xd0] sm:$0xff]
        %v3305 = vld [vmem:[#allocation2 + $0xd8] sm:$0xff]
        %v3306 = vld [vmem:[#allocation2 + $0xe0] sm:$0xff]
        %v3307 = vld [vmem:[#allocation2 + $0xe8] sm:$0xff]
        %v3308 = vld [vmem:[#allocation2 + $0xf0] sm:$0xff]
        %v3309 = vld [vmem:[#allocation2 + $0xf8] sm:$0xff]
        %v3310 = vld [vmem:[#allocation2 + $0x100] sm:$0xff]
        %v3311 = vld [vmem:[#allocation2 + $0x108] sm:$0xff]
        %v3312 = vld [vmem:[#allocation2 + $0x110] sm:$0xff]
        %v3313 = vld [vmem:[#allocation2 + $0x118] sm:$0xff]
        %v3314 = vld [vmem:[#allocation2 + $0x120] sm:$0xff]
        %v3315 = vld [vmem:[#allocation2 + $0x128] sm:$0xff]
        %v3316 = vld [vmem:[#allocation2 + $0x130] sm:$0xff]
        %v3317 = vld [vmem:[#allocation2 + $0x138] sm:$0xff]
        %v3318 = vld [vmem:[#allocation2 + $0x140] sm:$0xff]
        %v3319 = vld [vmem:[#allocation2 + $0x148] sm:$0xff]
        %v3320 = vld [vmem:[#allocation2 + $0x150] sm:$0xff]
        %v3321 = vld [vmem:[#allocation2 + $0x158] sm:$0xff]
        %v3322 = vld [vmem:[#allocation2 + $0x160] sm:$0xff]
        %v3323 = vld [vmem:[#allocation2 + $0x168] sm:$0xff]
        %v3324 = vld [vmem:[#allocation2 + $0x170] sm:$0xff]
        %v3325 = vld [vmem:[#allocation2 + $0x178] sm:$0xff]
        %v3326 = vld [vmem:[#allocation2 + $0x180] sm:$0xff]
        %v3327 = vld [vmem:[#allocation2 + $0x188] sm:$0xff]
        %v3328 = vld [vmem:[#allocation2 + $0x190] sm:$0xff]
        %v3329 = vld [vmem:[#allocation2 + $0x198] sm:$0xff]
        %v3330 = vld [vmem:[#allocation2 + $0x1a0] sm:$0xff]
        %v3331 = vld [vmem:[#allocation2 + $0x1a8] sm:$0xff]
        %v3332 = vld [vmem:[#allocation2 + $0x1b0] sm:$0xff]
        %v3333 = vld [vmem:[#allocation2 + $0x1b8] sm:$0xff]
        %v3334 = vld [vmem:[#allocation2 + $0x1c0] sm:$0xff]
        %v3335 = vld [vmem:[#allocation2 + $0x1c8] sm:$0xff]
        %v3336 = vld [vmem:[#allocation2 + $0x1d0] sm:$0xff]
        %v3337 = vld [vmem:[#allocation2 + $0x1d8] sm:$0xff]
        %v3338 = vld [vmem:[#allocation2 + $0x1e0] sm:$0xff]
        %v3339 = vld [vmem:[#allocation2 + $0x1e8] sm:$0xff]
        %v3340 = vld [vmem:[#allocation2 + $0x1f0] sm:$0xff]
        %v3341 = vld [vmem:[#allocation2 + $0x1f8] sm:$0xff]
        %v3342 = vld [vmem:[%s539] sm:$0xff]
        %v3343 = vld [vmem:[%s539 + $0x8] sm:$0xff]
        %v3344 = vld [vmem:[%s539 + $0x10] sm:$0xff]
        %v3345 = vld [vmem:[%s539 + $0x18] sm:$0x7]
        %v3346 = vld [vmem:[%s542] sm:$0x1]
        %v3348 = vlaneseq
        %v3349 = vshrl.u32 %v3348, 7
        %v3350 = vsub.s32 0, %v3349
        %v3351 = vrot.slane %v3346, %v3350
        %vm3353 = vcmask 220160
        %v3355 = vsel %vm3353, %v3278, 0
        %v3358 = vsel %vm3353, %v3279, 0
        %v3361 = vsel %vm3353, %v3280, 0
        %v3364 = vsel %vm3353, %v3281, 0
        %v3367 = vsel %vm3353, %v3282, 0
        %v3370 = vsel %vm3353, %v3283, 0
        %v3373 = vsel %vm3353, %v3284, 0
        %v3376 = vsel %vm3353, %v3285, 0
        %v3379 = vsel %vm3353, %v3286, 0
        %v3382 = vsel %vm3353, %v3287, 0
        %v3385 = vsel %vm3353, %v3288, 0
        %v3388 = vsel %vm3353, %v3289, 0
        %v3391 = vsel %vm3353, %v3290, 0
        %v3394 = vsel %vm3353, %v3291, 0
        %v3397 = vsel %vm3353, %v3292, 0
        %v3400 = vsel %vm3353, %v3293, 0
        %v3403 = vsel %vm3353, %v3294, 0
        %v3406 = vsel %vm3353, %v3295, 0
        %v3409 = vsel %vm3353, %v3296, 0
        %v3412 = vsel %vm3353, %v3297, 0
        %v3415 = vsel %vm3353, %v3298, 0
        %v3418 = vsel %vm3353, %v3299, 0
        %v3421 = vsel %vm3353, %v3300, 0
        %v3424 = vsel %vm3353, %v3301, 0
        %v3427 = vsel %vm3353, %v3302, 0
        %v3430 = vsel %vm3353, %v3303, 0
        %v3433 = vsel %vm3353, %v3304, 0
        %v3436 = vsel %vm3353, %v3305, 0
        %v3439 = vsel %vm3353, %v3306, 0
        %v3442 = vsel %vm3353, %v3307, 0
        %v3445 = vsel %vm3353, %v3308, 0
        %v3448 = vsel %vm3353, %v3309, 0
        %v3451 = vsel %vm3353, %v3310, 0
        %v3454 = vsel %vm3353, %v3311, 0
        %v3457 = vsel %vm3353, %v3312, 0
        %v3460 = vsel %vm3353, %v3313, 0
        %v3463 = vsel %vm3353, %v3314, 0
        %v3466 = vsel %vm3353, %v3315, 0
        %v3469 = vsel %vm3353, %v3316, 0
        %v3472 = vsel %vm3353, %v3317, 0
        %v3475 = vsel %vm3353, %v3318, 0
        %v3478 = vsel %vm3353, %v3319, 0
        %v3481 = vsel %vm3353, %v3320, 0
        %v3484 = vsel %vm3353, %v3321, 0
        %v3487 = vsel %vm3353, %v3322, 0
        %v3490 = vsel %vm3353, %v3323, 0
        %v3493 = vsel %vm3353, %v3324, 0
        %v3496 = vsel %vm3353, %v3325, 0
        %v3499 = vsel %vm3353, %v3326, 0
        %v3502 = vsel %vm3353, %v3327, 0
        %v3505 = vsel %vm3353, %v3328, 0
        %v3508 = vsel %vm3353, %v3329, 0
        %v3511 = vsel %vm3353, %v3330, 0
        %v3514 = vsel %vm3353, %v3331, 0
        %v3517 = vsel %vm3353, %v3332, 0
        %v3520 = vsel %vm3353, %v3333, 0
        %v3523 = vsel %vm3353, %v3334, 0
        %v3526 = vsel %vm3353, %v3335, 0
        %v3529 = vsel %vm3353, %v3336, 0
        %v3532 = vsel %vm3353, %v3337, 0
        %v3535 = vsel %vm3353, %v3338, 0
        %v3538 = vsel %vm3353, %v3339, 0
        %v3541 = vsel %vm3353, %v3340, 0
        %v3544 = vsel %vm3353, %v3341, 0
        %vm3546 = vcmask 1042432
        %v3548 = vsel %vm3546, %v3345, 0
        %3550 = vmatprep.subr.mxu0 0.0
        %3551 = vmatpush1.msra.mxu0 %v3342
        %3552 = vmatprep.subr.mxu0 0.0
        %3553 = vmatpush1.msra.mxu0 %v3343
        %3554 = vmatprep.subr.mxu0 0.0
        %3555 = vmatpush1.msra.mxu0 %v3344
        %3556 = vmatprep.subr.mxu0 0.0
        %3557 = vmatpush1.msra.mxu0 %v3548
        %3558 = vmatprep.subr.mxu0 0.0
        %3559 = vmatpush1.msra.mxu0 0.0
        %3560 = vmatprep.subr.mxu0 0.0
        %3561 = vmatpush1.msra.mxu0 0.0
        %3562 = vmatprep.subr.mxu0 0.0
        %3563 = vmatpush1.msra.mxu0 0.0
        %3564 = vmatprep.subr.mxu0 0.0
        %3565 = vmatpush1.msra.mxu0 0.0
        %3566 = vmatprep.subr.mxu0 0.0
        %3567 = vmatpush1.msra.mxu0 0.0
        %3568 = vmatprep.subr.mxu0 0.0
        %3569 = vmatpush1.msra.mxu0 0.0
        %3570 = vmatprep.subr.mxu0 0.0
        %3571 = vmatpush1.msra.mxu0 0.0
        %3572 = vmatprep.subr.mxu0 0.0
        %3573 = vmatpush1.msra.mxu0 0.0
        %3574 = vmatprep.subr.mxu0 0.0
        %3575 = vmatpush1.msra.mxu0 0.0
        %3576 = vmatprep.subr.mxu0 0.0
        %3577 = vmatpush1.msra.mxu0 0.0
        %3578 = vmatprep.subr.mxu0 0.0
        %3579 = vmatpush1.msra.mxu0 0.0
        %3580 = vmatprep.subr.mxu0 0.0
        %3581 = vmatpush1.msra.mxu0 0.0
        %3582 = vmatprep.subr.mxu0 0.0
        %3583 = vmatpush1.msra.mxu0 0.0
        %3584 = vmatprep.subr.mxu0 0.0
        %3585 = vmatpush1.msra.mxu0 0.0
        %3586 = vmatprep.subr.mxu0 0.0
        %3587 = vmatpush1.msra.mxu0 0.0
        %3588 = vmatprep.subr.mxu0 0.0
        %3589 = vmatpush1.msra.mxu0 0.0
        %3590 = vmatprep.subr.mxu0 0.0
        %3591 = vmatpush1.msra.mxu0 0.0
        %3592 = vmatprep.subr.mxu0 0.0
        %3593 = vmatpush1.msra.mxu0 0.0
        %3594 = vmatprep.subr.mxu0 0.0
        %3595 = vmatpush1.msra.mxu0 0.0
        %3596 = vmatprep.subr.mxu0 0.0
        %3597 = vmatpush1.msra.mxu0 0.0
        %3598 = vmatprep.subr.mxu0 0.0
        %3599 = vmatpush1.msra.mxu0 0.0
        %3600 = vmatprep.subr.mxu0 0.0
        %3601 = vmatpush1.msra.mxu0 0.0
        %3602 = vmatprep.subr.mxu0 0.0
        %3603 = vmatpush1.msra.mxu0 0.0
        %3604 = vmatprep.subr.mxu0 0.0
        %3605 = vmatpush1.msra.mxu0 0.0
        %3606 = vmatprep.subr.mxu0 0.0
        %3607 = vmatpush1.msra.mxu0 0.0
        %3608 = vmatprep.subr.mxu0 0.0
        %3609 = vmatpush1.msra.mxu0 0.0
        %3610 = vmatprep.subr.mxu0 0.0
        %3611 = vmatpush1.msra.mxu0 0.0
        %3612 = vmatprep.subr.mxu0 0.0
        %3613 = vmatpush1.msra.mxu0 0.0
        %3614 = vmatprep.mubr.f32.mxu0 0.0
        %3615 = vmatmul.mubr.f32.gmra.mrb[0].mxu0 %v3355
        %v3616 = vpop.f32.mrb[0].mxu0
        %v3617 = vadd.f32 %v3351, %v3616
        %v3618 = vpop.f32.mrb[0].mxu0
        %3619 = vmatprep.mubr.f32.mxu0 0.0
        %3620 = vmatmul.mubr.f32.gmra.mrb[0].mxu0 %v3358
        %v3621 = vpop.f32.mrb[0].mxu0
        %v3622 = vadd.f32 %v3351, %v3621
        %v3623 = vpop.f32.mrb[0].mxu0
        %3624 = vmatprep.mubr.f32.mxu0 0.0
        %3625 = vmatmul.mubr.f32.gmra.mrb[0].mxu0 %v3361
        %v3626 = vpop.f32.mrb[0].mxu0
        %v3627 = vadd.f32 %v3351, %v3626
        %v3628 = vpop.f32.mrb[0].mxu0
        %3629 = vmatprep.mubr.f32.mxu0 0.0
        %3630 = vmatmul.mubr.f32.gmra.mrb[0].mxu0 %v3364
        %v3631 = vpop.f32.mrb[0].mxu0
        %v3632 = vadd.f32 %v3351, %v3631
        %v3633 = vpop.f32.mrb[0].mxu0
        %3634 = vmatprep.mubr.f32.mxu0 0.0
        %3635 = vmatmul.mubr.f32.gmra.mrb[0].mxu0 %v3367
        %v3636 = vpop.f32.mrb[0].mxu0
        %v3637 = vadd.f32 %v3351, %v3636
        %v3638 = vpop.f32.mrb[0].mxu0
        %3639 = vmatprep.mubr.f32.mxu0 0.0
        %3640 = vmatmul.mubr.f32.gmra.mrb[0].mxu0 %v3370
        %v3641 = vpop.f32.mrb[0].mxu0
        %v3642 = vadd.f32 %v3351, %v3641
        %v3643 = vpop.f32.mrb[0].mxu0
        %3644 = vmatprep.mubr.f32.mxu0 0.0
        %3645 = vmatmul.mubr.f32.gmra.mrb[0].mxu0 %v3373
        %v3646 = vpop.f32.mrb[0].mxu0
        %v3647 = vadd.f32 %v3351, %v3646
        %v3648 = vpop.f32.mrb[0].mxu0
        %3649 = vmatprep.mubr.f32.mxu0 0.0
        %3650 = vmatmul.mubr.f32.gmra.mrb[0].mxu0 %v3376
        %v3651 = vpop.f32.mrb[0].mxu0
        %v3652 = vadd.f32 %v3351, %v3651
        %v3653 = vpop.f32.mrb[0].mxu0
        %3654 = vmatprep.mubr.f32.mxu0 0.0
        %3655 = vmatmul.mubr.f32.gmra.mrb[0].mxu0 %v3379
        %v3656 = vpop.f32.mrb[0].mxu0
        %v3657 = vadd.f32 %v3351, %v3656
        %v3658 = vpop.f32.mrb[0].mxu0
        %3659 = vmatprep.mubr.f32.mxu0 0.0
        %3660 = vmatmul.mubr.f32.gmra.mrb[0].mxu0 %v3382
        %v3661 = vpop.f32.mrb[0].mxu0
        %v3662 = vadd.f32 %v3351, %v3661
        %v3663 = vpop.f32.mrb[0].mxu0
        %3664 = vmatprep.mubr.f32.mxu0 0.0
        %3665 = vmatmul.mubr.f32.gmra.mrb[0].mxu0 %v3385
        %v3666 = vpop.f32.mrb[0].mxu0
        %v3667 = vadd.f32 %v3351, %v3666
        %v3668 = vpop.f32.mrb[0].mxu0
        %3669 = vmatprep.mubr.f32.mxu0 0.0
        %3670 = vmatmul.mubr.f32.gmra.mrb[0].mxu0 %v3388
        %v3671 = vpop.f32.mrb[0].mxu0
        %v3672 = vadd.f32 %v3351, %v3671
        %v3673 = vpop.f32.mrb[0].mxu0
        %3674 = vmatprep.mubr.f32.mxu0 0.0
        %3675 = vmatmul.mubr.f32.gmra.mrb[0].mxu0 %v3391
        %v3676 = vpop.f32.mrb[0].mxu0
        %v3677 = vadd.f32 %v3351, %v3676
        %v3678 = vpop.f32.mrb[0].mxu0
        %3679 = vmatprep.mubr.f32.mxu0 0.0
        %3680 = vmatmul.mubr.f32.gmra.mrb[0].mxu0 %v3394
        %v3681 = vpop.f32.mrb[0].mxu0
        %v3682 = vadd.f32 %v3351, %v3681
        %v3683 = vpop.f32.mrb[0].mxu0
        %3684 = vmatprep.mubr.f32.mxu0 0.0
        %3685 = vmatmul.mubr.f32.gmra.mrb[0].mxu0 %v3397
        %v3686 = vpop.f32.mrb[0].mxu0
        %v3687 = vadd.f32 %v3351, %v3686
        %v3688 = vpop.f32.mrb[0].mxu0
        %3689 = vmatprep.mubr.f32.mxu0 0.0
        %3690 = vmatmul.mubr.f32.gmra.mrb[0].mxu0 %v3400
        %v3691 = vpop.f32.mrb[0].mxu0
        %v3692 = vadd.f32 %v3351, %v3691
        %v3693 = vpop.f32.mrb[0].mxu0
        %3694 = vmatprep.mubr.f32.mxu0 0.0
        %3695 = vmatmul.mubr.f32.gmra.mrb[0].mxu0 %v3403
        %v3696 = vpop.f32.mrb[0].mxu0
        %v3697 = vadd.f32 %v3351, %v3696
        %v3698 = vpop.f32.mrb[0].mxu0
        %3699 = vmatprep.mubr.f32.mxu0 0.0
        %3700 = vmatmul.mubr.f32.gmra.mrb[0].mxu0 %v3406
        %v3701 = vpop.f32.mrb[0].mxu0
        %v3702 = vadd.f32 %v3351, %v3701
        %v3703 = vpop.f32.mrb[0].mxu0
        %3704 = vmatprep.mubr.f32.mxu0 0.0
        %3705 = vmatmul.mubr.f32.gmra.mrb[0].mxu0 %v3409
        %v3706 = vpop.f32.mrb[0].mxu0
        %v3707 = vadd.f32 %v3351, %v3706
        %v3708 = vpop.f32.mrb[0].mxu0
        %3709 = vmatprep.mubr.f32.mxu0 0.0
        %3710 = vmatmul.mubr.f32.gmra.mrb[0].mxu0 %v3412
        %v3711 = vpop.f32.mrb[0].mxu0
        %v3712 = vadd.f32 %v3351, %v3711
        %v3713 = vpop.f32.mrb[0].mxu0
        %3714 = vmatprep.mubr.f32.mxu0 0.0
        %3715 = vmatmul.mubr.f32.gmra.mrb[0].mxu0 %v3415
        %v3716 = vpop.f32.mrb[0].mxu0
        %v3717 = vadd.f32 %v3351, %v3716
        %v3718 = vpop.f32.mrb[0].mxu0
        %3719 = vmatprep.mubr.f32.mxu0 0.0
        %3720 = vmatmul.mubr.f32.gmra.mrb[0].mxu0 %v3418
        %v3721 = vpop.f32.mrb[0].mxu0
        %v3722 = vadd.f32 %v3351, %v3721
        %v3723 = vpop.f32.mrb[0].mxu0
        %3724 = vmatprep.mubr.f32.mxu0 0.0
        %3725 = vmatmul.mubr.f32.gmra.mrb[0].mxu0 %v3421
        %v3726 = vpop.f32.mrb[0].mxu0
        %v3727 = vadd.f32 %v3351, %v3726
        %v3728 = vpop.f32.mrb[0].mxu0
        %3729 = vmatprep.mubr.f32.mxu0 0.0
        %3730 = vmatmul.mubr.f32.gmra.mrb[0].mxu0 %v3424
        %v3731 = vpop.f32.mrb[0].mxu0
        %v3732 = vadd.f32 %v3351, %v3731
        %v3733 = vpop.f32.mrb[0].mxu0
        %3734 = vmatprep.mubr.f32.mxu0 0.0
        %3735 = vmatmul.mubr.f32.gmra.mrb[0].mxu0 %v3427
        %v3736 = vpop.f32.mrb[0].mxu0
        %v3737 = vadd.f32 %v3351, %v3736
        %v3738 = vpop.f32.mrb[0].mxu0
        %3739 = vmatprep.mubr.f32.mxu0 0.0
        %3740 = vmatmul.mubr.f32.gmra.mrb[0].mxu0 %v3430
        %v3741 = vpop.f32.mrb[0].mxu0
        %v3742 = vadd.f32 %v3351, %v3741
        %v3743 = vpop.f32.mrb[0].mxu0
        %3744 = vmatprep.mubr.f32.mxu0 0.0
        %3745 = vmatmul.mubr.f32.gmra.mrb[0].mxu0 %v3433
        %v3746 = vpop.f32.mrb[0].mxu0
        %v3747 = vadd.f32 %v3351, %v3746
        %v3748 = vpop.f32.mrb[0].mxu0
        %3749 = vmatprep.mubr.f32.mxu0 0.0
        %3750 = vmatmul.mubr.f32.gmra.mrb[0].mxu0 %v3436
        %v3751 = vpop.f32.mrb[0].mxu0
        %v3752 = vadd.f32 %v3351, %v3751
        %v3753 = vpop.f32.mrb[0].mxu0
        %3754 = vmatprep.mubr.f32.mxu0 0.0
        %3755 = vmatmul.mubr.f32.gmra.mrb[0].mxu0 %v3439
        %v3756 = vpop.f32.mrb[0].mxu0
        %v3757 = vadd.f32 %v3351, %v3756
        %v3758 = vpop.f32.mrb[0].mxu0
        %3759 = vmatprep.mubr.f32.mxu0 0.0
        %3760 = vmatmul.mubr.f32.gmra.mrb[0].mxu0 %v3442
        %v3761 = vpop.f32.mrb[0].mxu0
        %v3762 = vadd.f32 %v3351, %v3761
        %v3763 = vpop.f32.mrb[0].mxu0
        %3764 = vmatprep.mubr.f32.mxu0 0.0
        %3765 = vmatmul.mubr.f32.gmra.mrb[0].mxu0 %v3445
        %v3766 = vpop.f32.mrb[0].mxu0
        %v3767 = vadd.f32 %v3351, %v3766
        %v3768 = vpop.f32.mrb[0].mxu0
        %3769 = vmatprep.mubr.f32.mxu0 0.0
        %3770 = vmatmul.mubr.f32.gmra.mrb[0].mxu0 %v3448
        %v3771 = vpop.f32.mrb[0].mxu0
        %v3772 = vadd.f32 %v3351, %v3771
        %v3773 = vpop.f32.mrb[0].mxu0
        %3774 = vmatprep.mubr.f32.mxu0 0.0
        %3775 = vmatmul.mubr.f32.gmra.mrb[0].mxu0 %v3451
        %v3776 = vpop.f32.mrb[0].mxu0
        %v3777 = vadd.f32 %v3351, %v3776
        %v3778 = vpop.f32.mrb[0].mxu0
        %3779 = vmatprep.mubr.f32.mxu0 0.0
        %3780 = vmatmul.mubr.f32.gmra.mrb[0].mxu0 %v3454
        %v3781 = vpop.f32.mrb[0].mxu0
        %v3782 = vadd.f32 %v3351, %v3781
        %v3783 = vpop.f32.mrb[0].mxu0
        %3784 = vmatprep.mubr.f32.mxu0 0.0
        %3785 = vmatmul.mubr.f32.gmra.mrb[0].mxu0 %v3457
        %v3786 = vpop.f32.mrb[0].mxu0
        %v3787 = vadd.f32 %v3351, %v3786
        %v3788 = vpop.f32.mrb[0].mxu0
        %3789 = vmatprep.mubr.f32.mxu0 0.0
        %3790 = vmatmul.mubr.f32.gmra.mrb[0].mxu0 %v3460
        %v3791 = vpop.f32.mrb[0].mxu0
        %v3792 = vadd.f32 %v3351, %v3791
        %v3793 = vpop.f32.mrb[0].mxu0
        %3794 = vmatprep.mubr.f32.mxu0 0.0
        %3795 = vmatmul.mubr.f32.gmra.mrb[0].mxu0 %v3463
        %v3796 = vpop.f32.mrb[0].mxu0
        %v3797 = vadd.f32 %v3351, %v3796
        %v3798 = vpop.f32.mrb[0].mxu0
        %3799 = vmatprep.mubr.f32.mxu0 0.0
        %3800 = vmatmul.mubr.f32.gmra.mrb[0].mxu0 %v3466
        %v3801 = vpop.f32.mrb[0].mxu0
        %v3802 = vadd.f32 %v3351, %v3801
        %v3803 = vpop.f32.mrb[0].mxu0
        %3804 = vmatprep.mubr.f32.mxu0 0.0
        %3805 = vmatmul.mubr.f32.gmra.mrb[0].mxu0 %v3469
        %v3806 = vpop.f32.mrb[0].mxu0
        %v3807 = vadd.f32 %v3351, %v3806
        %v3808 = vpop.f32.mrb[0].mxu0
        %3809 = vmatprep.mubr.f32.mxu0 0.0
        %3810 = vmatmul.mubr.f32.gmra.mrb[0].mxu0 %v3472
        %v3811 = vpop.f32.mrb[0].mxu0
        %v3812 = vadd.f32 %v3351, %v3811
        %v3813 = vpop.f32.mrb[0].mxu0
        %3814 = vmatprep.mubr.f32.mxu0 0.0
        %3815 = vmatmul.mubr.f32.gmra.mrb[0].mxu0 %v3475
        %v3816 = vpop.f32.mrb[0].mxu0
        %v3817 = vadd.f32 %v3351, %v3816
        %v3818 = vpop.f32.mrb[0].mxu0
        %3819 = vmatprep.mubr.f32.mxu0 0.0
        %3820 = vmatmul.mubr.f32.gmra.mrb[0].mxu0 %v3478
        %v3821 = vpop.f32.mrb[0].mxu0
        %v3822 = vadd.f32 %v3351, %v3821
        %v3823 = vpop.f32.mrb[0].mxu0
        %3824 = vmatprep.mubr.f32.mxu0 0.0
        %3825 = vmatmul.mubr.f32.gmra.mrb[0].mxu0 %v3481
        %v3826 = vpop.f32.mrb[0].mxu0
        %v3827 = vadd.f32 %v3351, %v3826
        %v3828 = vpop.f32.mrb[0].mxu0
        %3829 = vmatprep.mubr.f32.mxu0 0.0
        %3830 = vmatmul.mubr.f32.gmra.mrb[0].mxu0 %v3484
        %v3831 = vpop.f32.mrb[0].mxu0
        %v3832 = vadd.f32 %v3351, %v3831
        %v3833 = vpop.f32.mrb[0].mxu0
        %3834 = vmatprep.mubr.f32.mxu0 0.0
        %3835 = vmatmul.mubr.f32.gmra.mrb[0].mxu0 %v3487
        %v3836 = vpop.f32.mrb[0].mxu0
        %v3837 = vadd.f32 %v3351, %v3836
        %v3838 = vpop.f32.mrb[0].mxu0
        %3839 = vmatprep.mubr.f32.mxu0 0.0
        %3840 = vmatmul.mubr.f32.gmra.mrb[0].mxu0 %v3490
        %v3841 = vpop.f32.mrb[0].mxu0
        %v3842 = vadd.f32 %v3351, %v3841
        %v3843 = vpop.f32.mrb[0].mxu0
        %3844 = vmatprep.mubr.f32.mxu0 0.0
        %3845 = vmatmul.mubr.f32.gmra.mrb[0].mxu0 %v3493
        %v3846 = vpop.f32.mrb[0].mxu0
        %v3847 = vadd.f32 %v3351, %v3846
        %v3848 = vpop.f32.mrb[0].mxu0
        %3849 = vmatprep.mubr.f32.mxu0 0.0
        %3850 = vmatmul.mubr.f32.gmra.mrb[0].mxu0 %v3496
        %v3851 = vpop.f32.mrb[0].mxu0
        %v3852 = vadd.f32 %v3351, %v3851
        %v3853 = vpop.f32.mrb[0].mxu0
        %3854 = vmatprep.mubr.f32.mxu0 0.0
        %3855 = vmatmul.mubr.f32.gmra.mrb[0].mxu0 %v3499
        %v3856 = vpop.f32.mrb[0].mxu0
        %v3857 = vadd.f32 %v3351, %v3856
        %v3858 = vpop.f32.mrb[0].mxu0
        %3859 = vmatprep.mubr.f32.mxu0 0.0
        %3860 = vmatmul.mubr.f32.gmra.mrb[0].mxu0 %v3502
        %v3861 = vpop.f32.mrb[0].mxu0
        %v3862 = vadd.f32 %v3351, %v3861
        %v3863 = vpop.f32.mrb[0].mxu0
        %3864 = vmatprep.mubr.f32.mxu0 0.0
        %3865 = vmatmul.mubr.f32.gmra.mrb[0].mxu0 %v3505
        %v3866 = vpop.f32.mrb[0].mxu0
        %v3867 = vadd.f32 %v3351, %v3866
        %v3868 = vpop.f32.mrb[0].mxu0
        %3869 = vmatprep.mubr.f32.mxu0 0.0
        %3870 = vmatmul.mubr.f32.gmra.mrb[0].mxu0 %v3508
        %v3871 = vpop.f32.mrb[0].mxu0
        %v3872 = vadd.f32 %v3351, %v3871
        %v3873 = vpop.f32.mrb[0].mxu0
        %3874 = vmatprep.mubr.f32.mxu0 0.0
        %3875 = vmatmul.mubr.f32.gmra.mrb[0].mxu0 %v3511
        %v3876 = vpop.f32.mrb[0].mxu0
        %v3877 = vadd.f32 %v3351, %v3876
        %v3878 = vpop.f32.mrb[0].mxu0
        %3879 = vmatprep.mubr.f32.mxu0 0.0
        %3880 = vmatmul.mubr.f32.gmra.mrb[0].mxu0 %v3514
        %v3881 = vpop.f32.mrb[0].mxu0
        %v3882 = vadd.f32 %v3351, %v3881
        %v3883 = vpop.f32.mrb[0].mxu0
        %3884 = vmatprep.mubr.f32.mxu0 0.0
        %3885 = vmatmul.mubr.f32.gmra.mrb[0].mxu0 %v3517
        %v3886 = vpop.f32.mrb[0].mxu0
        %v3887 = vadd.f32 %v3351, %v3886
        %v3888 = vpop.f32.mrb[0].mxu0
        %3889 = vmatprep.mubr.f32.mxu0 0.0
        %3890 = vmatmul.mubr.f32.gmra.mrb[0].mxu0 %v3520
        %v3891 = vpop.f32.mrb[0].mxu0
        %v3892 = vadd.f32 %v3351, %v3891
        %v3893 = vpop.f32.mrb[0].mxu0
        %3894 = vmatprep.mubr.f32.mxu0 0.0
        %3895 = vmatmul.mubr.f32.gmra.mrb[0].mxu0 %v3523
        %v3896 = vpop.f32.mrb[0].mxu0
        %v3897 = vadd.f32 %v3351, %v3896
        %v3898 = vpop.f32.mrb[0].mxu0
        %3899 = vmatprep.mubr.f32.mxu0 0.0
        %3900 = vmatmul.mubr.f32.gmra.mrb[0].mxu0 %v3526
        %v3901 = vpop.f32.mrb[0].mxu0
        %v3902 = vadd.f32 %v3351, %v3901
        %v3903 = vpop.f32.mrb[0].mxu0
        %3904 = vmatprep.mubr.f32.mxu0 0.0
        %3905 = vmatmul.mubr.f32.gmra.mrb[0].mxu0 %v3529
        %v3906 = vpop.f32.mrb[0].mxu0
        %v3907 = vadd.f32 %v3351, %v3906
        %v3908 = vpop.f32.mrb[0].mxu0
        %3909 = vmatprep.mubr.f32.mxu0 0.0
        %3910 = vmatmul.mubr.f32.gmra.mrb[0].mxu0 %v3532
        %v3911 = vpop.f32.mrb[0].mxu0
        %v3912 = vadd.f32 %v3351, %v3911
        %v3913 = vpop.f32.mrb[0].mxu0
        %3914 = vmatprep.mubr.f32.mxu0 0.0
        %3915 = vmatmul.mubr.f32.gmra.mrb[0].mxu0 %v3535
        %v3916 = vpop.f32.mrb[0].mxu0
        %v3917 = vadd.f32 %v3351, %v3916
        %v3918 = vpop.f32.mrb[0].mxu0
        %3919 = vmatprep.mubr.f32.mxu0 0.0
        %3920 = vmatmul.mubr.f32.gmra.mrb[0].mxu0 %v3538
        %v3921 = vpop.f32.mrb[0].mxu0
        %v3922 = vadd.f32 %v3351, %v3921
        %v3923 = vpop.f32.mrb[0].mxu0
        %3924 = vmatprep.mubr.f32.mxu0 0.0
        %3925 = vmatmul.mubr.f32.gmra.mrb[0].mxu0 %v3541
        %v3926 = vpop.f32.mrb[0].mxu0
        %v3927 = vadd.f32 %v3351, %v3926
        %v3928 = vpop.f32.mrb[0].mxu0
        %3929 = vmatprep.mubr.f32.mxu0 0.0
        %3930 = vmatmul.mubr.f32.gmra.mrb[0].mxu0 %v3544
        %v3931 = vpop.f32.mrb[0].mxu0
        %v3932 = vadd.f32 %v3351, %v3931
        %v3933 = vpop.f32.mrb[0].mxu0
        %3934 = vdwg.mxu0
        %v3935 = vmax.f32 %v3617, 0.0
        %v3936 = vmax.f32 %v3622, 0.0
        %v3937 = vmax.f32 %v3627, 0.0
        %v3938 = vmax.f32 %v3632, 0.0
        %v3939 = vmax.f32 %v3637, 0.0
        %v3940 = vmax.f32 %v3642, 0.0
        %v3941 = vmax.f32 %v3647, 0.0
        %v3942 = vmax.f32 %v3652, 0.0
        %v3943 = vmax.f32 %v3657, 0.0
        %v3944 = vmax.f32 %v3662, 0.0
        %v3945 = vmax.f32 %v3667, 0.0
        %v3946 = vmax.f32 %v3672, 0.0
        %v3947 = vmax.f32 %v3677, 0.0
        %v3948 = vmax.f32 %v3682, 0.0
        %v3949 = vmax.f32 %v3687, 0.0
        %v3950 = vmax.f32 %v3692, 0.0
        %v3951 = vmax.f32 %v3697, 0.0
        %v3952 = vmax.f32 %v3702, 0.0
        %v3953 = vmax.f32 %v3707, 0.0
        %v3954 = vmax.f32 %v3712, 0.0
        %v3955 = vmax.f32 %v3717, 0.0
        %v3956 = vmax.f32 %v3722, 0.0
        %v3957 = vmax.f32 %v3727, 0.0
        %v3958 = vmax.f32 %v3732, 0.0
        %v3959 = vmax.f32 %v3737, 0.0
        %v3960 = vmax.f32 %v3742, 0.0
        %v3961 = vmax.f32 %v3747, 0.0
        %v3962 = vmax.f32 %v3752, 0.0
        %v3963 = vmax.f32 %v3757, 0.0
        %v3964 = vmax.f32 %v3762, 0.0
        %v3965 = vmax.f32 %v3767, 0.0
        %v3966 = vmax.f32 %v3772, 0.0
        %v3967 = vmax.f32 %v3777, 0.0
        %v3968 = vmax.f32 %v3782, 0.0
        %v3969 = vmax.f32 %v3787, 0.0
        %v3970 = vmax.f32 %v3792, 0.0
        %v3971 = vmax.f32 %v3797, 0.0
        %v3972 = vmax.f32 %v3802, 0.0
        %v3973 = vmax.f32 %v3807, 0.0
        %v3974 = vmax.f32 %v3812, 0.0
        %v3975 = vmax.f32 %v3817, 0.0
        %v3976 = vmax.f32 %v3822, 0.0
        %v3977 = vmax.f32 %v3827, 0.0
        %v3978 = vmax.f32 %v3832, 0.0
        %v3979 = vmax.f32 %v3837, 0.0
        %v3980 = vmax.f32 %v3842, 0.0
        %v3981 = vmax.f32 %v3847, 0.0
        %v3982 = vmax.f32 %v3852, 0.0
        %v3983 = vmax.f32 %v3857, 0.0
        %v3984 = vmax.f32 %v3862, 0.0
        %v3985 = vmax.f32 %v3867, 0.0
        %v3986 = vmax.f32 %v3872, 0.0
        %v3987 = vmax.f32 %v3877, 0.0
        %v3988 = vmax.f32 %v3882, 0.0
        %v3989 = vmax.f32 %v3887, 0.0
        %v3990 = vmax.f32 %v3892, 0.0
        %v3991 = vmax.f32 %v3897, 0.0
        %v3992 = vmax.f32 %v3902, 0.0
        %v3993 = vmax.f32 %v3907, 0.0
        %v3994 = vmax.f32 %v3912, 0.0
        %v3995 = vmax.f32 %v3917, 0.0
        %v3996 = vmax.f32 %v3922, 0.0
        %v3997 = vmax.f32 %v3927, 0.0
        %v3998 = vmax.f32 %v3932, 0.0
        %vm3999 = vcmask 261120
        %v4000 = vsel %vm3999, %v3935, -inf
        %v4001 = vsel %vm3999, %v3936, -inf
        %v4002 = vsel %vm3999, %v3937, -inf
        %v4003 = vmax.f32 %v4000, %v4002
        %v4004 = vsel %vm3999, %v3938, -inf
        %v4005 = vmax.f32 %v4001, %v4004
        %v4006 = vsel %vm3999, %v3939, -inf
        %v4007 = vmax.f32 %v4003, %v4006
        %v4008 = vsel %vm3999, %v3940, -inf
        %v4009 = vmax.f32 %v4005, %v4008
        %v4010 = vsel %vm3999, %v3941, -inf
        %v4011 = vmax.f32 %v4007, %v4010
        %v4012 = vsel %vm3999, %v3942, -inf
        %v4013 = vmax.f32 %v4009, %v4012
        %v4014 = vsel %vm3999, %v3943, -inf
        %v4015 = vmax.f32 %v4011, %v4014
        %v4016 = vsel %vm3999, %v3944, -inf
        %v4017 = vmax.f32 %v4013, %v4016
        %v4018 = vsel %vm3999, %v3945, -inf
        %v4019 = vmax.f32 %v4015, %v4018
        %v4020 = vsel %vm3999, %v3946, -inf
        %v4021 = vmax.f32 %v4017, %v4020
        %v4022 = vsel %vm3999, %v3947, -inf
        %v4023 = vmax.f32 %v4019, %v4022
        %v4024 = vsel %vm3999, %v3948, -inf
        %v4025 = vmax.f32 %v4021, %v4024
        %v4026 = vsel %vm3999, %v3949, -inf
        %v4027 = vmax.f32 %v4023, %v4026
        %v4028 = vsel %vm3999, %v3950, -inf
        %v4029 = vmax.f32 %v4025, %v4028
        %v4030 = vsel %vm3999, %v3951, -inf
        %v4031 = vmax.f32 %v4027, %v4030
        %v4032 = vsel %vm3999, %v3952, -inf
        %v4033 = vmax.f32 %v4029, %v4032
        %v4034 = vsel %vm3999, %v3953, -inf
        %v4035 = vmax.f32 %v4031, %v4034
        %v4036 = vsel %vm3999, %v3954, -inf
        %v4037 = vmax.f32 %v4033, %v4036
        %v4038 = vsel %vm3999, %v3955, -inf
        %v4039 = vmax.f32 %v4035, %v4038
        %v4040 = vsel %vm3999, %v3956, -inf
        %v4041 = vmax.f32 %v4037, %v4040
        %v4042 = vsel %vm3999, %v3957, -inf
        %v4043 = vmax.f32 %v4039, %v4042
        %v4044 = vsel %vm3999, %v3958, -inf
        %v4045 = vmax.f32 %v4041, %v4044
        %v4046 = vsel %vm3999, %v3959, -inf
        %v4047 = vmax.f32 %v4043, %v4046
        %v4048 = vsel %vm3999, %v3960, -inf
        %v4049 = vmax.f32 %v4045, %v4048
        %v4050 = vsel %vm3999, %v3961, -inf
        %v4051 = vmax.f32 %v4047, %v4050
        %v4052 = vsel %vm3999, %v3962, -inf
        %v4053 = vmax.f32 %v4049, %v4052
        %v4054 = vsel %vm3999, %v3963, -inf
        %v4055 = vmax.f32 %v4051, %v4054
        %v4056 = vsel %vm3999, %v3964, -inf
        %v4057 = vmax.f32 %v4053, %v4056
        %v4058 = vsel %vm3999, %v3965, -inf
        %v4059 = vmax.f32 %v4055, %v4058
        %v4060 = vsel %vm3999, %v3966, -inf
        %v4061 = vmax.f32 %v4057, %v4060
        %v4062 = vmax.f32 %v4059, %v4061
        %v4063 = vrot.slane %v4062, 4
        %v4064 = vmax.f32 %v4062, %v4063
        %v4065 = vrot.slane %v4064, 2
        %v4066 = vmax.f32 %v4064, %v4065
        %v4067 = vrot.slane %v4066, 1
        %v4068 = vmax.f32 %v4066, %v4067
        %v4069 = vsel %vm3999, %v3967, -inf
        %v4070 = vsel %vm3999, %v3968, -inf
        %v4071 = vsel %vm3999, %v3969, -inf
        %v4072 = vmax.f32 %v4069, %v4071
        %v4073 = vsel %vm3999, %v3970, -inf
        %v4074 = vmax.f32 %v4070, %v4073
        %v4075 = vsel %vm3999, %v3971, -inf
        %v4076 = vmax.f32 %v4072, %v4075
        %v4077 = vsel %vm3999, %v3972, -inf
        %v4078 = vmax.f32 %v4074, %v4077
        %v4079 = vsel %vm3999, %v3973, -inf
        %v4080 = vmax.f32 %v4076, %v4079
        %v4081 = vsel %vm3999, %v3974, -inf
        %v4082 = vmax.f32 %v4078, %v4081
        %v4083 = vsel %vm3999, %v3975, -inf
        %v4084 = vmax.f32 %v4080, %v4083
        %v4085 = vsel %vm3999, %v3976, -inf
        %v4086 = vmax.f32 %v4082, %v4085
        %v4087 = vsel %vm3999, %v3977, -inf
        %v4088 = vmax.f32 %v4084, %v4087
        %v4089 = vsel %vm3999, %v3978, -inf
        %v4090 = vmax.f32 %v4086, %v4089
        %v4091 = vsel %vm3999, %v3979, -inf
        %v4092 = vmax.f32 %v4088, %v4091
        %v4093 = vsel %vm3999, %v3980, -inf
        %v4094 = vmax.f32 %v4090, %v4093
        %v4095 = vsel %vm3999, %v3981, -inf
        %v4096 = vmax.f32 %v4092, %v4095
        %v4097 = vsel %vm3999, %v3982, -inf
        %v4098 = vmax.f32 %v4094, %v4097
        %v4099 = vsel %vm3999, %v3983, -inf
        %v4100 = vmax.f32 %v4096, %v4099
        %v4101 = vsel %vm3999, %v3984, -inf
        %v4102 = vmax.f32 %v4098, %v4101
        %v4103 = vsel %vm3999, %v3985, -inf
        %v4104 = vmax.f32 %v4100, %v4103
        %v4105 = vsel %vm3999, %v3986, -inf
        %v4106 = vmax.f32 %v4102, %v4105
        %v4107 = vsel %vm3999, %v3987, -inf
        %v4108 = vmax.f32 %v4104, %v4107
        %v4109 = vsel %vm3999, %v3988, -inf
        %v4110 = vmax.f32 %v4106, %v4109
        %v4111 = vsel %vm3999, %v3989, -inf
        %v4112 = vmax.f32 %v4108, %v4111
        %v4113 = vsel %vm3999, %v3990, -inf
        %v4114 = vmax.f32 %v4110, %v4113
        %v4115 = vsel %vm3999, %v3991, -inf
        %v4116 = vmax.f32 %v4112, %v4115
        %v4117 = vsel %vm3999, %v3992, -inf
        %v4118 = vmax.f32 %v4114, %v4117
        %v4119 = vsel %vm3999, %v3993, -inf
        %v4120 = vmax.f32 %v4116, %v4119
        %v4121 = vsel %vm3999, %v3994, -inf
        %v4122 = vmax.f32 %v4118, %v4121
        %v4123 = vsel %vm3999, %v3995, -inf
        %v4124 = vmax.f32 %v4120, %v4123
        %v4125 = vsel %vm3999, %v3996, -inf
        %v4126 = vmax.f32 %v4122, %v4125
        %v4127 = vsel %vm3999, %v3997, -inf
        %v4128 = vmax.f32 %v4124, %v4127
        %v4129 = vsel %vm3999, %v3998, -inf
        %v4130 = vmax.f32 %v4126, %v4129
        %v4131 = vmax.f32 %v4128, %v4130
        %v4132 = vrot.slane %v4131, 4
        %v4133 = vmax.f32 %v4131, %v4132
        %v4134 = vrot.slane %v4133, 2
        %v4135 = vmax.f32 %v4133, %v4134
        %v4136 = vrot.slane %v4135, 1
        %v4137 = vmax.f32 %v4135, %v4136
        %v4138 = vsel %vm3999, %v3935, 0.0
        %v4139 = vsel %vm3999, %v3936, 0.0
        %v4140 = vadd.f32 %v4138, %v4139
        %v4141 = vsel %vm3999, %v3937, 0.0
        %v4142 = vadd.f32 %v4140, %v4141
        %v4143 = vsel %vm3999, %v3938, 0.0
        %v4144 = vadd.f32 %v4142, %v4143
        %v4145 = vsel %vm3999, %v3939, 0.0
        %v4146 = vadd.f32 %v4144, %v4145
        %v4147 = vsel %vm3999, %v3940, 0.0
        %v4148 = vadd.f32 %v4146, %v4147
        %v4149 = vsel %vm3999, %v3941, 0.0
        %v4150 = vadd.f32 %v4148, %v4149
        %v4151 = vsel %vm3999, %v3942, 0.0
        %v4152 = vadd.f32 %v4150, %v4151
        %v4153 = vsel %vm3999, %v3943, 0.0
        %v4154 = vadd.f32 %v4152, %v4153
        %v4155 = vsel %vm3999, %v3944, 0.0
        %v4156 = vadd.f32 %v4154, %v4155
        %v4157 = vsel %vm3999, %v3945, 0.0
        %v4158 = vadd.f32 %v4156, %v4157
        %v4159 = vsel %vm3999, %v3946, 0.0
        %v4160 = vadd.f32 %v4158, %v4159
        %v4161 = vsel %vm3999, %v3947, 0.0
        %v4162 = vadd.f32 %v4160, %v4161
        %v4163 = vsel %vm3999, %v3948, 0.0
        %v4164 = vadd.f32 %v4162, %v4163
        %v4165 = vsel %vm3999, %v3949, 0.0
        %v4166 = vadd.f32 %v4164, %v4165
        %v4167 = vsel %vm3999, %v3950, 0.0
        %v4168 = vadd.f32 %v4166, %v4167
        %v4169 = vsel %vm3999, %v3951, 0.0
        %v4170 = vadd.f32 %v4168, %v4169
        %v4171 = vsel %vm3999, %v3952, 0.0
        %v4172 = vadd.f32 %v4170, %v4171
        %v4173 = vsel %vm3999, %v3953, 0.0
        %v4174 = vadd.f32 %v4172, %v4173
        %v4175 = vsel %vm3999, %v3954, 0.0
        %v4176 = vadd.f32 %v4174, %v4175
        %v4177 = vsel %vm3999, %v3955, 0.0
        %v4178 = vadd.f32 %v4176, %v4177
        %v4179 = vsel %vm3999, %v3956, 0.0
        %v4180 = vadd.f32 %v4178, %v4179
        %v4181 = vsel %vm3999, %v3957, 0.0
        %v4182 = vadd.f32 %v4180, %v4181
        %v4183 = vsel %vm3999, %v3958, 0.0
        %v4184 = vadd.f32 %v4182, %v4183
        %v4185 = vsel %vm3999, %v3959, 0.0
        %v4186 = vadd.f32 %v4184, %v4185
        %v4187 = vsel %vm3999, %v3960, 0.0
        %v4188 = vadd.f32 %v4186, %v4187
        %v4189 = vsel %vm3999, %v3961, 0.0
        %v4190 = vadd.f32 %v4188, %v4189
        %v4191 = vsel %vm3999, %v3962, 0.0
        %v4192 = vadd.f32 %v4190, %v4191
        %v4193 = vsel %vm3999, %v3963, 0.0
        %v4194 = vadd.f32 %v4192, %v4193
        %v4195 = vsel %vm3999, %v3964, 0.0
        %v4196 = vadd.f32 %v4194, %v4195
        %v4197 = vsel %vm3999, %v3965, 0.0
        %v4198 = vadd.f32 %v4196, %v4197
        %v4199 = vsel %vm3999, %v3966, 0.0
        %v4200 = vadd.f32 %v4198, %v4199
        %v4201 = vrot.slane %v4200, 4
        %v4202 = vadd.f32 %v4200, %v4201
        %v4203 = vrot.slane %v4202, 2
        %v4204 = vadd.f32 %v4202, %v4203
        %v4205 = vrot.slane %v4204, 1
        %v4206 = vadd.f32 %v4204, %v4205
        %v4207 = vsel %vm3999, %v3967, 0.0
        %v4208 = vsel %vm3999, %v3968, 0.0
        %v4209 = vadd.f32 %v4207, %v4208
        %v4210 = vsel %vm3999, %v3969, 0.0
        %v4211 = vadd.f32 %v4209, %v4210
        %v4212 = vsel %vm3999, %v3970, 0.0
        %v4213 = vadd.f32 %v4211, %v4212
        %v4214 = vsel %vm3999, %v3971, 0.0
        %v4215 = vadd.f32 %v4213, %v4214
        %v4216 = vsel %vm3999, %v3972, 0.0
        %v4217 = vadd.f32 %v4215, %v4216
        %v4218 = vsel %vm3999, %v3973, 0.0
        %v4219 = vadd.f32 %v4217, %v4218
        %v4220 = vsel %vm3999, %v3974, 0.0
        %v4221 = vadd.f32 %v4219, %v4220
        %v4222 = vsel %vm3999, %v3975, 0.0
        %v4223 = vadd.f32 %v4221, %v4222
        %v4224 = vsel %vm3999, %v3976, 0.0
        %v4225 = vadd.f32 %v4223, %v4224
        %v4226 = vsel %vm3999, %v3977, 0.0
        %v4227 = vadd.f32 %v4225, %v4226
        %v4228 = vsel %vm3999, %v3978, 0.0
        %v4229 = vadd.f32 %v4227, %v4228
        %v4230 = vsel %vm3999, %v3979, 0.0
        %v4231 = vadd.f32 %v4229, %v4230
        %v4232 = vsel %vm3999, %v3980, 0.0
        %v4233 = vadd.f32 %v4231, %v4232
        %v4234 = vsel %vm3999, %v3981, 0.0
        %v4235 = vadd.f32 %v4233, %v4234
        %v4236 = vsel %vm3999, %v3982, 0.0
        %v4237 = vadd.f32 %v4235, %v4236
        %v4238 = vsel %vm3999, %v3983, 0.0
        %v4239 = vadd.f32 %v4237, %v4238
        %v4240 = vsel %vm3999, %v3984, 0.0
        %v4241 = vadd.f32 %v4239, %v4240
        %v4242 = vsel %vm3999, %v3985, 0.0
        %v4243 = vadd.f32 %v4241, %v4242
        %v4244 = vsel %vm3999, %v3986, 0.0
        %v4245 = vadd.f32 %v4243, %v4244
        %v4246 = vsel %vm3999, %v3987, 0.0
        %v4247 = vadd.f32 %v4245, %v4246
        %v4248 = vsel %vm3999, %v3988, 0.0
        %v4249 = vadd.f32 %v4247, %v4248
        %v4250 = vsel %vm3999, %v3989, 0.0
        %v4251 = vadd.f32 %v4249, %v4250
        %v4252 = vsel %vm3999, %v3990, 0.0
        %v4253 = vadd.f32 %v4251, %v4252
        %v4254 = vsel %vm3999, %v3991, 0.0
        %v4255 = vadd.f32 %v4253, %v4254
        %v4256 = vsel %vm3999, %v3992, 0.0
        %v4257 = vadd.f32 %v4255, %v4256
        %v4258 = vsel %vm3999, %v3993, 0.0
        %v4259 = vadd.f32 %v4257, %v4258
        %v4260 = vsel %vm3999, %v3994, 0.0
        %v4261 = vadd.f32 %v4259, %v4260
        %v4262 = vsel %vm3999, %v3995, 0.0
        %v4263 = vadd.f32 %v4261, %v4262
        %v4264 = vsel %vm3999, %v3996, 0.0
        %v4265 = vadd.f32 %v4263, %v4264
        %v4266 = vsel %vm3999, %v3997, 0.0
        %v4267 = vadd.f32 %v4265, %v4266
        %v4268 = vsel %vm3999, %v3998, 0.0
        %v4269 = vadd.f32 %v4267, %v4268
        %v4270 = vrot.slane %v4269, 4
        %v4271 = vadd.f32 %v4269, %v4270
        %v4272 = vrot.slane %v4271, 2
        %v4273 = vadd.f32 %v4271, %v4272
        %v4274 = vrot.slane %v4273, 1
        %v4275 = vadd.f32 %v4273, %v4274
        %v4276 = vrcp.pop 256.0
        %v4277 = vmul.f32 %v4206, %v4276
        %v4278 = vmul.f32 %v4275, %v4276
        %vm4281 = vcmask 1041409
        %v4282 = vsel %vm4281, %v4137, %v4068
        %v4286 = vsel %vm4281, %v4278, %v4277
        %4287 = vrot.lane.b32.xlu0 %v4286, 32
        %v4288 = vpop.permute.xlu0 %4287
        %v4290 = vsel %vm3999, %v4282, %v4288
        %v4291 = vld [vmem:[%s545] sm:$0x1]
        %v4293 = vlaneseq
        %v4294 = vshrl.u32 %v4293, 7
        %v4295 = vsub.s32 0, %v4294
        %v4296 = vrot.slane %v4291, %v4295
        %v4298 = vmul.f32 %v4290, %v4296
        %v4299 = vld [vmem:[%s548] sm:$0x1]
        %v4301 = vlaneseq
        %v4302 = vshrl.u32 %v4301, 7
        %v4303 = vsub.s32 0, %v4302
        %v4304 = vrot.slane %v4299, %v4303
        %v4306 = vadd.f32 %v4298, %v4304
        %v4307 = vld [vmem:[%s553] sm:$0xff]
        %v4308 = vld [vmem:[%s553 + $0x8] sm:$0xff]
        %v4309 = vld [vmem:[%s553 + $0x10] sm:$0xff]
        %v4310 = vld [vmem:[%s553 + $0x18] sm:$0xff]
        %v4311 = vld [vmem:[%s553 + $0x20] sm:$0xff]
        %v4312 = vld [vmem:[%s553 + $0x28] sm:$0xff]
        %v4313 = vld [vmem:[%s553 + $0x30] sm:$0xff]
        %v4314 = vld [vmem:[%s553 + $0x38] sm:$0xff]
        %v4315 = vld [vmem:[%s553 + $0x40] sm:$0xff]
        %v4316 = vld [vmem:[%s553 + $0x48] sm:$0xff]
        %v4317 = vld [vmem:[%s553 + $0x50] sm:$0xff]
        %v4318 = vld [vmem:[%s553 + $0x58] sm:$0xff]
        %v4319 = vld [vmem:[%s553 + $0x60] sm:$0xff]
        %v4320 = vld [vmem:[%s553 + $0x68] sm:$0xff]
        %v4321 = vld [vmem:[%s553 + $0x70] sm:$0xff]
        %v4322 = vld [vmem:[%s553 + $0x78] sm:$0xff]
        %v4323 = vld [vmem:[%s553 + $0x80] sm:$0xff]
        %v4324 = vld [vmem:[%s553 + $0x88] sm:$0xff]
        %v4325 = vld [vmem:[%s553 + $0x90] sm:$0xff]
        %v4326 = vld [vmem:[%s553 + $0x98] sm:$0xff]
        %v4327 = vld [vmem:[%s553 + $0xa0] sm:$0xff]
        %v4328 = vld [vmem:[%s553 + $0xa8] sm:$0xff]
        %v4329 = vld [vmem:[%s553 + $0xb0] sm:$0xff]
        %v4330 = vld [vmem:[%s553 + $0xb8] sm:$0xff]
        %v4331 = vld [vmem:[%s553 + $0xc0] sm:$0xff]
        %v4332 = vld [vmem:[%s553 + $0xc8] sm:$0xff]
        %v4333 = vld [vmem:[%s553 + $0xd0] sm:$0xff]
        %v4334 = vld [vmem:[%s553 + $0xd8] sm:$0xff]
        %v4335 = vld [vmem:[%s553 + $0xe0] sm:$0xff]
        %v4336 = vld [vmem:[%s553 + $0xe8] sm:$0xff]
        %v4337 = vld [vmem:[%s553 + $0xf0] sm:$0xff]
        %v4338 = vld [vmem:[%s553 + $0xf8] sm:$0xff]
        %v4339 = vld [vmem:[%s557] sm:$0xf]
        %v4341 = vlaneseq
        %v4342 = vshrl.u32 %v4341, 7
        %v4343 = vsub.s32 0, %v4342
        %v4344 = vrot.slane %v4339, %v4343
        %v4345 = vlaneseq
        %v4346 = vshrl.u32 %v4345, 7
        %v4347 = vsub.s32 1, %v4346
        %v4348 = vrot.slane %v4339, %v4347
        %v4349 = vlaneseq
        %v4350 = vshrl.u32 %v4349, 7
        %v4351 = vsub.s32 2, %v4350
        %v4352 = vrot.slane %v4339, %v4351
        %v4353 = vlaneseq
        %v4354 = vshrl.u32 %v4353, 7
        %v4355 = vsub.s32 3, %v4354
        %v4356 = vrot.slane %v4339, %v4355
        %vm4361 = vcmask 523264
        %v4363 = vsel %vm4361, %v4306, 0
        %4365 = vmatprep.subr.mxu0 %v4308
        %4366 = vmatpush1.msra.mxu0 %v4307
        %4367 = vmatprep.subr.mxu0 %v4312
        %4368 = vmatpush1.msra.mxu0 %v4311
        %4369 = vmatprep.subr.mxu0 %v4316
        %4370 = vmatpush1.msra.mxu0 %v4315
        %4371 = vmatprep.subr.mxu0 %v4320
        %4372 = vmatpush1.msra.mxu0 %v4319
        %4373 = vmatprep.subr.mxu0 %v4324
        %4374 = vmatpush1.msra.mxu0 %v4323
        %4375 = vmatprep.subr.mxu0 %v4328
        %4376 = vmatpush1.msra.mxu0 %v4327
        %4377 = vmatprep.subr.mxu0 %v4332
        %4378 = vmatpush1.msra.mxu0 %v4331
        %4379 = vmatprep.subr.mxu0 %v4336
        %4380 = vmatpush1.msra.mxu0 %v4335
        %4381 = vmatprep.subr.mxu0 0.0
        %4382 = vmatpush1.msra.mxu0 0.0
        %4383 = vmatprep.subr.mxu0 0.0
        %4384 = vmatpush1.msra.mxu0 0.0
        %4385 = vmatprep.subr.mxu0 0.0
        %4386 = vmatpush1.msra.mxu0 0.0
        %4387 = vmatprep.subr.mxu0 0.0
        %4388 = vmatpush1.msra.mxu0 0.0
        %4389 = vmatprep.subr.mxu0 0.0
        %4390 = vmatpush1.msra.mxu0 0.0
        %4391 = vmatprep.subr.mxu0 0.0
        %4392 = vmatpush1.msra.mxu0 0.0
        %4393 = vmatprep.subr.mxu0 0.0
        %4394 = vmatpush1.msra.mxu0 0.0
        %4395 = vmatprep.subr.mxu0 0.0
        %4396 = vmatpush1.msra.mxu0 0.0
        %4397 = vmatprep.subr.mxu0 0.0
        %4398 = vmatpush1.msra.mxu0 0.0
        %4399 = vmatprep.subr.mxu0 0.0
        %4400 = vmatpush1.msra.mxu0 0.0
        %4401 = vmatprep.subr.mxu0 0.0
        %4402 = vmatpush1.msra.mxu0 0.0
        %4403 = vmatprep.subr.mxu0 0.0
        %4404 = vmatpush1.msra.mxu0 0.0
        %4405 = vmatprep.subr.mxu0 0.0
        %4406 = vmatpush1.msra.mxu0 0.0
        %4407 = vmatprep.subr.mxu0 0.0
        %4408 = vmatpush1.msra.mxu0 0.0
        %4409 = vmatprep.subr.mxu0 0.0
        %4410 = vmatpush1.msra.mxu0 0.0
        %4411 = vmatprep.subr.mxu0 0.0
        %4412 = vmatpush1.msra.mxu0 0.0
        %4413 = vmatprep.subr.mxu0 0.0
        %4414 = vmatpush1.msra.mxu0 0.0
        %4415 = vmatprep.subr.mxu0 0.0
        %4416 = vmatpush1.msra.mxu0 0.0
        %4417 = vmatprep.subr.mxu0 0.0
        %4418 = vmatpush1.msra.mxu0 0.0
        %4419 = vmatprep.subr.mxu0 0.0
        %4420 = vmatpush1.msra.mxu0 0.0
        %4421 = vmatprep.subr.mxu0 0.0
        %4422 = vmatpush1.msra.mxu0 0.0
        %4423 = vmatprep.subr.mxu0 0.0
        %4424 = vmatpush1.msra.mxu0 0.0
        %4425 = vmatprep.subr.mxu0 0.0
        %4426 = vmatpush1.msra.mxu0 0.0
        %4427 = vmatprep.subr.mxu0 0.0
        %4428 = vmatpush1.msra.mxu0 0.0
        %4429 = vmatprep.mubr.f32.mxu0 0.0
        %4430 = vmatmul.mubr.f32.gmra.mrb[0].mxu0 %v4363
        %v4431 = vpop.f32.mrb[0].mxu0
        %v4432 = vadd.f32 %v4344, %v4431
        %v4433 = vpop.f32.mrb[0].mxu0
        %v4434 = vadd.f32 %v4348, %v4433
        %4435 = vdwg.mxu0
        %4436 = vmatprep.subr.mxu0 %v4310
        %4437 = vmatpush1.msra.mxu0 %v4309
        %4438 = vmatprep.subr.mxu0 %v4314
        %4439 = vmatpush1.msra.mxu0 %v4313
        %4440 = vmatprep.subr.mxu0 %v4318
        %4441 = vmatpush1.msra.mxu0 %v4317
        %4442 = vmatprep.subr.mxu0 %v4322
        %4443 = vmatpush1.msra.mxu0 %v4321
        %4444 = vmatprep.subr.mxu0 %v4326
        %4445 = vmatpush1.msra.mxu0 %v4325
        %4446 = vmatprep.subr.mxu0 %v4330
        %4447 = vmatpush1.msra.mxu0 %v4329
        %4448 = vmatprep.subr.mxu0 %v4334
        %4449 = vmatpush1.msra.mxu0 %v4333
        %4450 = vmatprep.subr.mxu0 %v4338
        %4451 = vmatpush1.msra.mxu0 %v4337
        %4452 = vmatprep.subr.mxu0 0.0
        %4453 = vmatpush1.msra.mxu0 0.0
        %4454 = vmatprep.subr.mxu0 0.0
        %4455 = vmatpush1.msra.mxu0 0.0
        %4456 = vmatprep.subr.mxu0 0.0
        %4457 = vmatpush1.msra.mxu0 0.0
        %4458 = vmatprep.subr.mxu0 0.0
        %4459 = vmatpush1.msra.mxu0 0.0
        %4460 = vmatprep.subr.mxu0 0.0
        %4461 = vmatpush1.msra.mxu0 0.0
        %4462 = vmatprep.subr.mxu0 0.0
        %4463 = vmatpush1.msra.mxu0 0.0
        %4464 = vmatprep.subr.mxu0 0.0
        %4465 = vmatpush1.msra.mxu0 0.0
        %4466 = vmatprep.subr.mxu0 0.0
        %4467 = vmatpush1.msra.mxu0 0.0
        %4468 = vmatprep.subr.mxu0 0.0
        %4469 = vmatpush1.msra.mxu0 0.0
        %4470 = vmatprep.subr.mxu0 0.0
        %4471 = vmatpush1.msra.mxu0 0.0
        %4472 = vmatprep.subr.mxu0 0.0
        %4473 = vmatpush1.msra.mxu0 0.0
        %4474 = vmatprep.subr.mxu0 0.0
        %4475 = vmatpush1.msra.mxu0 0.0
        %4476 = vmatprep.subr.mxu0 0.0
        %4477 = vmatpush1.msra.mxu0 0.0
        %4478 = vmatprep.subr.mxu0 0.0
        %4479 = vmatpush1.msra.mxu0 0.0
        %4480 = vmatprep.subr.mxu0 0.0
        %4481 = vmatpush1.msra.mxu0 0.0
        %4482 = vmatprep.subr.mxu0 0.0
        %4483 = vmatpush1.msra.mxu0 0.0
        %4484 = vmatprep.subr.mxu0 0.0
        %4485 = vmatpush1.msra.mxu0 0.0
        %4486 = vmatprep.subr.mxu0 0.0
        %4487 = vmatpush1.msra.mxu0 0.0
        %4488 = vmatprep.subr.mxu0 0.0
        %4489 = vmatpush1.msra.mxu0 0.0
        %4490 = vmatprep.subr.mxu0 0.0
        %4491 = vmatpush1.msra.mxu0 0.0
        %4492 = vmatprep.subr.mxu0 0.0
        %4493 = vmatpush1.msra.mxu0 0.0
        %4494 = vmatprep.subr.mxu0 0.0
        %4495 = vmatpush1.msra.mxu0 0.0
        %4496 = vmatprep.subr.mxu0 0.0
        %4497 = vmatpush1.msra.mxu0 0.0
        %4498 = vmatprep.subr.mxu0 0.0
        %4499 = vmatpush1.msra.mxu0 0.0
        %4500 = vmatprep.mubr.f32.mxu0 0.0
        %4501 = vmatmul.mubr.f32.gmra.mrb[0].mxu0 %v4363
        %v4502 = vpop.f32.mrb[0].mxu0
        %v4503 = vadd.f32 %v4352, %v4502
        %v4504 = vpop.f32.mrb[0].mxu0
        %v4505 = vadd.f32 %v4356, %v4504
        %4506 = vdwg.mxu0
        %v4507 = vmax.f32 %v4432, 0.0
        %v4508 = vmax.f32 %v4434, 0.0
        %v4509 = vmax.f32 %v4503, 0.0
        %v4510 = vmax.f32 %v4505, 0.0
        %v4511 = vld [vmem:[%s561] sm:$0xf]
        %v4513 = vlaneseq
        %v4514 = vshrl.u32 %v4513, 7
        %v4515 = vsub.s32 0, %v4514
        %v4516 = vrot.slane %v4511, %v4515
        %v4517 = vlaneseq
        %v4518 = vshrl.u32 %v4517, 7
        %v4519 = vsub.s32 1, %v4518
        %v4520 = vrot.slane %v4511, %v4519
        %v4521 = vlaneseq
        %v4522 = vshrl.u32 %v4521, 7
        %v4523 = vsub.s32 2, %v4522
        %v4524 = vrot.slane %v4511, %v4523
        %v4525 = vlaneseq
        %v4526 = vshrl.u32 %v4525, 7
        %v4527 = vsub.s32 3, %v4526
        %v4528 = vrot.slane %v4511, %v4527
        %v4533 = vmul.f32 %v4507, %v4516
        %v4534 = vmul.f32 %v4508, %v4520
        %v4535 = vmul.f32 %v4509, %v4524
        %v4536 = vmul.f32 %v4510, %v4528
        %v4537 = vld [vmem:[%s565] sm:$0xf]
        %v4539 = vlaneseq
        %v4540 = vshrl.u32 %v4539, 7
        %v4541 = vsub.s32 0, %v4540
        %v4542 = vrot.slane %v4537, %v4541
        %v4543 = vlaneseq
        %v4544 = vshrl.u32 %v4543, 7
        %v4545 = vsub.s32 1, %v4544
        %v4546 = vrot.slane %v4537, %v4545
        %v4547 = vlaneseq
        %v4548 = vshrl.u32 %v4547, 7
        %v4549 = vsub.s32 2, %v4548
        %v4550 = vrot.slane %v4537, %v4549
        %v4551 = vlaneseq
        %v4552 = vshrl.u32 %v4551, 7
        %v4553 = vsub.s32 3, %v4552
        %v4554 = vrot.slane %v4537, %v4553
        %v4559 = vadd.f32 %v4533, %v4542
        %v4560 = vadd.f32 %v4534, %v4546
        %v4561 = vadd.f32 %v4535, %v4550
        %v4562 = vadd.f32 %v4536, %v4554
        %v4563 = vld [vmem:[%s570] sm:$0xff]
        %v4564 = vld [vmem:[%s570 + $0x8] sm:$0xff]
        %v4565 = vld [vmem:[%s570 + $0x10] sm:$0xff]
        %v4566 = vld [vmem:[%s570 + $0x18] sm:$0xff]
        %v4567 = vld [vmem:[%s570 + $0x20] sm:$0xff]
        %v4568 = vld [vmem:[%s570 + $0x28] sm:$0xff]
        %v4569 = vld [vmem:[%s570 + $0x30] sm:$0xff]
        %v4570 = vld [vmem:[%s570 + $0x38] sm:$0xff]
        %v4571 = vld [vmem:[%s570 + $0x40] sm:$0xff]
        %v4572 = vld [vmem:[%s570 + $0x48] sm:$0xff]
        %v4573 = vld [vmem:[%s570 + $0x50] sm:$0xff]
        %v4574 = vld [vmem:[%s570 + $0x58] sm:$0xff]
        %v4575 = vld [vmem:[%s570 + $0x60] sm:$0xff]
        %v4576 = vld [vmem:[%s570 + $0x68] sm:$0xff]
        %v4577 = vld [vmem:[%s570 + $0x70] sm:$0xff]
        %v4578 = vld [vmem:[%s570 + $0x78] sm:$0xff]
        %v4579 = vld [vmem:[%s570 + $0x80] sm:$0xff]
        %v4580 = vld [vmem:[%s570 + $0x88] sm:$0xff]
        %v4581 = vld [vmem:[%s570 + $0x90] sm:$0xff]
        %v4582 = vld [vmem:[%s570 + $0x98] sm:$0xff]
        %v4583 = vld [vmem:[%s570 + $0xa0] sm:$0xff]
        %v4584 = vld [vmem:[%s570 + $0xa8] sm:$0xff]
        %v4585 = vld [vmem:[%s570 + $0xb0] sm:$0xff]
        %v4586 = vld [vmem:[%s570 + $0xb8] sm:$0xff]
        %v4587 = vld [vmem:[%s570 + $0xc0] sm:$0xff]
        %v4588 = vld [vmem:[%s570 + $0xc8] sm:$0xff]
        %v4589 = vld [vmem:[%s570 + $0xd0] sm:$0xff]
        %v4590 = vld [vmem:[%s570 + $0xd8] sm:$0xff]
        %v4591 = vld [vmem:[%s570 + $0xe0] sm:$0xff]
        %v4592 = vld [vmem:[%s570 + $0xe8] sm:$0xff]
        %v4593 = vld [vmem:[%s570 + $0xf0] sm:$0xff]
        %v4594 = vld [vmem:[%s570 + $0xf8] sm:$0xff]
        %v4595 = vld [vmem:[%s570 + $0x100] sm:$0xff]
        %v4596 = vld [vmem:[%s570 + $0x108] sm:$0xff]
        %v4597 = vld [vmem:[%s570 + $0x110] sm:$0xff]
        %v4598 = vld [vmem:[%s570 + $0x118] sm:$0xff]
        %v4599 = vld [vmem:[%s570 + $0x120] sm:$0xff]
        %v4600 = vld [vmem:[%s570 + $0x128] sm:$0xff]
        %v4601 = vld [vmem:[%s570 + $0x130] sm:$0xff]
        %v4602 = vld [vmem:[%s570 + $0x138] sm:$0xff]
        %v4603 = vld [vmem:[%s570 + $0x140] sm:$0xff]
        %v4604 = vld [vmem:[%s570 + $0x148] sm:$0xff]
        %v4605 = vld [vmem:[%s570 + $0x150] sm:$0xff]
        %v4606 = vld [vmem:[%s570 + $0x158] sm:$0xff]
        %v4607 = vld [vmem:[%s570 + $0x160] sm:$0xff]
        %v4608 = vld [vmem:[%s570 + $0x168] sm:$0xff]
        %v4609 = vld [vmem:[%s570 + $0x170] sm:$0xff]
        %v4610 = vld [vmem:[%s570 + $0x178] sm:$0xff]
        %v4611 = vld [vmem:[%s570 + $0x180] sm:$0xff]
        %v4612 = vld [vmem:[%s570 + $0x188] sm:$0xff]
        %v4613 = vld [vmem:[%s570 + $0x190] sm:$0xff]
        %v4614 = vld [vmem:[%s570 + $0x198] sm:$0xff]
        %v4615 = vld [vmem:[%s570 + $0x1a0] sm:$0xff]
        %v4616 = vld [vmem:[%s570 + $0x1a8] sm:$0xff]
        %v4617 = vld [vmem:[%s570 + $0x1b0] sm:$0xff]
        %v4618 = vld [vmem:[%s570 + $0x1b8] sm:$0xff]
        %v4619 = vld [vmem:[%s570 + $0x1c0] sm:$0xff]
        %v4620 = vld [vmem:[%s570 + $0x1c8] sm:$0xff]
        %v4621 = vld [vmem:[%s570 + $0x1d0] sm:$0xff]
        %v4622 = vld [vmem:[%s570 + $0x1d8] sm:$0xff]
        %v4623 = vld [vmem:[%s570 + $0x1e0] sm:$0xff]
        %v4624 = vld [vmem:[%s570 + $0x1e8] sm:$0xff]
        %v4625 = vld [vmem:[%s570 + $0x1f0] sm:$0xff]
        %v4626 = vld [vmem:[%s570 + $0x1f8] sm:$0xff]
        %v4627 = vld [vmem:[%s573] sm:$0x1]
        %v4629 = vlaneseq
        %v4630 = vshrl.u32 %v4629, 7
        %v4631 = vsub.s32 0, %v4630
        %v4632 = vrot.slane %v4627, %v4631
        %4634 = vmatprep.subr.mxu0 0.0
        %4635 = vmatpush1.msra.mxu0 %v4563
        %4636 = vmatprep.subr.mxu0 0.0
        %4637 = vmatpush1.msra.mxu0 %v4564
        %4638 = vmatprep.subr.mxu0 0.0
        %4639 = vmatpush1.msra.mxu0 %v4565
        %4640 = vmatprep.subr.mxu0 0.0
        %4641 = vmatpush1.msra.mxu0 %v4566
        %4642 = vmatprep.subr.mxu0 0.0
        %4643 = vmatpush1.msra.mxu0 %v4567
        %4644 = vmatprep.subr.mxu0 0.0
        %4645 = vmatpush1.msra.mxu0 %v4568
        %4646 = vmatprep.subr.mxu0 0.0
        %4647 = vmatpush1.msra.mxu0 %v4569
        %4648 = vmatprep.subr.mxu0 0.0
        %4649 = vmatpush1.msra.mxu0 %v4570
        %4650 = vmatprep.subr.mxu0 0.0
        %4651 = vmatpush1.msra.mxu0 %v4571
        %4652 = vmatprep.subr.mxu0 0.0
        %4653 = vmatpush1.msra.mxu0 %v4572
        %4654 = vmatprep.subr.mxu0 0.0
        %4655 = vmatpush1.msra.mxu0 %v4573
        %4656 = vmatprep.subr.mxu0 0.0
        %4657 = vmatpush1.msra.mxu0 %v4574
        %4658 = vmatprep.subr.mxu0 0.0
        %4659 = vmatpush1.msra.mxu0 %v4575
        %4660 = vmatprep.subr.mxu0 0.0
        %4661 = vmatpush1.msra.mxu0 %v4576
        %4662 = vmatprep.subr.mxu0 0.0
        %4663 = vmatpush1.msra.mxu0 %v4577
        %4664 = vmatprep.subr.mxu0 0.0
        %4665 = vmatpush1.msra.mxu0 %v4578
        %4666 = vmatprep.subr.mxu0 0.0
        %4667 = vmatpush1.msra.mxu0 %v4579
        %4668 = vmatprep.subr.mxu0 0.0
        %4669 = vmatpush1.msra.mxu0 %v4580
        %4670 = vmatprep.subr.mxu0 0.0
        %4671 = vmatpush1.msra.mxu0 %v4581
        %4672 = vmatprep.subr.mxu0 0.0
        %4673 = vmatpush1.msra.mxu0 %v4582
        %4674 = vmatprep.subr.mxu0 0.0
        %4675 = vmatpush1.msra.mxu0 %v4583
        %4676 = vmatprep.subr.mxu0 0.0
        %4677 = vmatpush1.msra.mxu0 %v4584
        %4678 = vmatprep.subr.mxu0 0.0
        %4679 = vmatpush1.msra.mxu0 %v4585
        %4680 = vmatprep.subr.mxu0 0.0
        %4681 = vmatpush1.msra.mxu0 %v4586
        %4682 = vmatprep.subr.mxu0 0.0
        %4683 = vmatpush1.msra.mxu0 %v4587
        %4684 = vmatprep.subr.mxu0 0.0
        %4685 = vmatpush1.msra.mxu0 %v4588
        %4686 = vmatprep.subr.mxu0 0.0
        %4687 = vmatpush1.msra.mxu0 %v4589
        %4688 = vmatprep.subr.mxu0 0.0
        %4689 = vmatpush1.msra.mxu0 %v4590
        %4690 = vmatprep.subr.mxu0 0.0
        %4691 = vmatpush1.msra.mxu0 %v4591
        %4692 = vmatprep.subr.mxu0 0.0
        %4693 = vmatpush1.msra.mxu0 %v4592
        %4694 = vmatprep.subr.mxu0 0.0
        %4695 = vmatpush1.msra.mxu0 %v4593
        %4696 = vmatprep.subr.mxu0 0.0
        %4697 = vmatpush1.msra.mxu0 %v4594
        %4698 = vmatprep.mubr.f32.mxu0 %v4560
        %4699 = vmatmul.mubr.f32.gmra.mrb[0].mxu0 %v4559
        %v4700 = vpop.f32.mrb[0].mxu0
        %v4701 = vadd.f32 %v4632, %v4700
        %v4702 = vpop.f32.mrb[0].mxu0
        %4703 = vdwg.mxu0
        %4704 = vmatprep.subr.mxu0 0.0
        %4705 = vmatpush1.msra.mxu0 %v4595
        %4706 = vmatprep.subr.mxu0 0.0
        %4707 = vmatpush1.msra.mxu0 %v4596
        %4708 = vmatprep.subr.mxu0 0.0
        %4709 = vmatpush1.msra.mxu0 %v4597
        %4710 = vmatprep.subr.mxu0 0.0
        %4711 = vmatpush1.msra.mxu0 %v4598
        %4712 = vmatprep.subr.mxu0 0.0
        %4713 = vmatpush1.msra.mxu0 %v4599
        %4714 = vmatprep.subr.mxu0 0.0
        %4715 = vmatpush1.msra.mxu0 %v4600
        %4716 = vmatprep.subr.mxu0 0.0
        %4717 = vmatpush1.msra.mxu0 %v4601
        %4718 = vmatprep.subr.mxu0 0.0
        %4719 = vmatpush1.msra.mxu0 %v4602
        %4720 = vmatprep.subr.mxu0 0.0
        %4721 = vmatpush1.msra.mxu0 %v4603
        %4722 = vmatprep.subr.mxu0 0.0
        %4723 = vmatpush1.msra.mxu0 %v4604
        %4724 = vmatprep.subr.mxu0 0.0
        %4725 = vmatpush1.msra.mxu0 %v4605
        %4726 = vmatprep.subr.mxu0 0.0
        %4727 = vmatpush1.msra.mxu0 %v4606
        %4728 = vmatprep.subr.mxu0 0.0
        %4729 = vmatpush1.msra.mxu0 %v4607
        %4730 = vmatprep.subr.mxu0 0.0
        %4731 = vmatpush1.msra.mxu0 %v4608
        %4732 = vmatprep.subr.mxu0 0.0
        %4733 = vmatpush1.msra.mxu0 %v4609
        %4734 = vmatprep.subr.mxu0 0.0
        %4735 = vmatpush1.msra.mxu0 %v4610
        %4736 = vmatprep.subr.mxu0 0.0
        %4737 = vmatpush1.msra.mxu0 %v4611
        %4738 = vmatprep.subr.mxu0 0.0
        %4739 = vmatpush1.msra.mxu0 %v4612
        %4740 = vmatprep.subr.mxu0 0.0
        %4741 = vmatpush1.msra.mxu0 %v4613
        %4742 = vmatprep.subr.mxu0 0.0
        %4743 = vmatpush1.msra.mxu0 %v4614
        %4744 = vmatprep.subr.mxu0 0.0
        %4745 = vmatpush1.msra.mxu0 %v4615
        %4746 = vmatprep.subr.mxu0 0.0
        %4747 = vmatpush1.msra.mxu0 %v4616
        %4748 = vmatprep.subr.mxu0 0.0
        %4749 = vmatpush1.msra.mxu0 %v4617
        %4750 = vmatprep.subr.mxu0 0.0
        %4751 = vmatpush1.msra.mxu0 %v4618
        %4752 = vmatprep.subr.mxu0 0.0
        %4753 = vmatpush1.msra.mxu0 %v4619
        %4754 = vmatprep.subr.mxu0 0.0
        %4755 = vmatpush1.msra.mxu0 %v4620
        %4756 = vmatprep.subr.mxu0 0.0
        %4757 = vmatpush1.msra.mxu0 %v4621
        %4758 = vmatprep.subr.mxu0 0.0
        %4759 = vmatpush1.msra.mxu0 %v4622
        %4760 = vmatprep.subr.mxu0 0.0
        %4761 = vmatpush1.msra.mxu0 %v4623
        %4762 = vmatprep.subr.mxu0 0.0
        %4763 = vmatpush1.msra.mxu0 %v4624
        %4764 = vmatprep.subr.mxu0 0.0
        %4765 = vmatpush1.msra.mxu0 %v4625
        %4766 = vmatprep.subr.mxu0 0.0
        %4767 = vmatpush1.msra.mxu0 %v4626
        %4768 = vmatprep.mubr.f32.mxu0 %v4562
        %4769 = vmatmul.mubr.f32.gmra.mrb[0].mxu0 %v4561
        %v4770 = vpop.f32.mrb[0].mxu0
        %v4771 = vadd.f32 %v4701, %v4770
        %v4772 = vpop.f32.mrb[0].mxu0
        %4773 = vdwg.mxu0
        %v4774 = vld [vmem:[#allocation3] sm:$0x3]
        %v4775 = vadd.f32 %v4774, %v4771
        %4776 = vst [vmem:[#allocation3] sm:$0x3] %v4775
        %p4777 = scmp.eq.s32.totalorder %s25, 1
        // Predicated region
        $region77: #{net_forward.1} parent=71 // pred_check
          %p4778 = pneg %p4777
        $region78: #{net_forward.1} parent=71 // pred_check_branch
          %4780 = sbr.rel (%p4778) target = $region80
        $region79: #{net_forward.1} parent=71 // pred_region
          %v4781 = vld [vmem:[#allocation3] sm:$0x3]
          %v4782 = vld [vmem:[%s11] sm:$0xff]
          %v4783 = vld [vmem:[%s11 + $0x8] sm:$0xff]
          %v4784 = vld [vmem:[%s11 + $0x10] sm:$0xff]
          %v4785 = vld [vmem:[%s11 + $0x18] sm:$0xff]
          %v4786 = vld [vmem:[%s11 + $0x20] sm:$0xff]
          %v4787 = vld [vmem:[%s11 + $0x28] sm:$0xff]
          %v4788 = vld [vmem:[%s11 + $0x30] sm:$0xff]
          %v4789 = vld [vmem:[%s11 + $0x38] sm:$0xff]
          %v4790 = vld [vmem:[%s11 + $0x40] sm:$0xff]
          %v4791 = vld [vmem:[%s11 + $0x48] sm:$0xff]
          %v4792 = vld [vmem:[%s11 + $0x50] sm:$0xff]
          %v4793 = vld [vmem:[%s11 + $0x58] sm:$0xff]
          %v4794 = vld [vmem:[%s11 + $0x60] sm:$0xff]
          %v4795 = vld [vmem:[%s11 + $0x68] sm:$0xff]
          %v4796 = vld [vmem:[%s11 + $0x70] sm:$0xff]
          %v4797 = vld [vmem:[%s11 + $0x78] sm:$0xff]
          %v4798 = vld [vmem:[%s12] sm:$0x1]
          %v4800 = vlaneseq
          %v4801 = vshrl.u32 %v4800, 7
          %v4802 = vsub.s32 0, %v4801
          %v4803 = vrot.slane %v4798, %v4802
          %4805 = vmatprep.subr.mxu0 0.0
          %4806 = vmatpush1.msra.mxu0 %v4782
          %4807 = vmatprep.subr.mxu0 0.0
          %4808 = vmatpush1.msra.mxu0 %v4783
          %4809 = vmatprep.subr.mxu0 0.0
          %4810 = vmatpush1.msra.mxu0 %v4784
          %4811 = vmatprep.subr.mxu0 0.0
          %4812 = vmatpush1.msra.mxu0 %v4785
          %4813 = vmatprep.subr.mxu0 0.0
          %4814 = vmatpush1.msra.mxu0 %v4786
          %4815 = vmatprep.subr.mxu0 0.0
          %4816 = vmatpush1.msra.mxu0 %v4787
          %4817 = vmatprep.subr.mxu0 0.0
          %4818 = vmatpush1.msra.mxu0 %v4788
          %4819 = vmatprep.subr.mxu0 0.0
          %4820 = vmatpush1.msra.mxu0 %v4789
          %4821 = vmatprep.subr.mxu0 0.0
          %4822 = vmatpush1.msra.mxu0 %v4790
          %4823 = vmatprep.subr.mxu0 0.0
          %4824 = vmatpush1.msra.mxu0 %v4791
          %4825 = vmatprep.subr.mxu0 0.0
          %4826 = vmatpush1.msra.mxu0 %v4792
          %4827 = vmatprep.subr.mxu0 0.0
          %4828 = vmatpush1.msra.mxu0 %v4793
          %4829 = vmatprep.subr.mxu0 0.0
          %4830 = vmatpush1.msra.mxu0 %v4794
          %4831 = vmatprep.subr.mxu0 0.0
          %4832 = vmatpush1.msra.mxu0 %v4795
          %4833 = vmatprep.subr.mxu0 0.0
          %4834 = vmatpush1.msra.mxu0 %v4796
          %4835 = vmatprep.subr.mxu0 0.0
          %4836 = vmatpush1.msra.mxu0 %v4797
          %4837 = vmatprep.subr.mxu0 0.0
          %4838 = vmatpush1.msra.mxu0 0.0
          %4839 = vmatprep.subr.mxu0 0.0
          %4840 = vmatpush1.msra.mxu0 0.0
          %4841 = vmatprep.subr.mxu0 0.0
          %4842 = vmatpush1.msra.mxu0 0.0
          %4843 = vmatprep.subr.mxu0 0.0
          %4844 = vmatpush1.msra.mxu0 0.0
          %4845 = vmatprep.subr.mxu0 0.0
          %4846 = vmatpush1.msra.mxu0 0.0
          %4847 = vmatprep.subr.mxu0 0.0
          %4848 = vmatpush1.msra.mxu0 0.0
          %4849 = vmatprep.subr.mxu0 0.0
          %4850 = vmatpush1.msra.mxu0 0.0
          %4851 = vmatprep.subr.mxu0 0.0
          %4852 = vmatpush1.msra.mxu0 0.0
          %4853 = vmatprep.subr.mxu0 0.0
          %4854 = vmatpush1.msra.mxu0 0.0
          %4855 = vmatprep.subr.mxu0 0.0
          %4856 = vmatpush1.msra.mxu0 0.0
          %4857 = vmatprep.subr.mxu0 0.0
          %4858 = vmatpush1.msra.mxu0 0.0
          %4859 = vmatprep.subr.mxu0 0.0
          %4860 = vmatpush1.msra.mxu0 0.0
          %4861 = vmatprep.subr.mxu0 0.0
          %4862 = vmatpush1.msra.mxu0 0.0
          %4863 = vmatprep.subr.mxu0 0.0
          %4864 = vmatpush1.msra.mxu0 0.0
          %4865 = vmatprep.subr.mxu0 0.0
          %4866 = vmatpush1.msra.mxu0 0.0
          %4867 = vmatprep.subr.mxu0 0.0
          %4868 = vmatpush1.msra.mxu0 0.0
          %4869 = vmatprep.mubr.f32.mxu0 0.0
          %4870 = vmatmul.mubr.f32.gmra.mrb[0].mxu0 %v4781
          %v4871 = vpop.f32.mrb[0].mxu0
          %v4872 = vadd.f32 %v4803, %v4871
          %v4873 = vpop.f32.mrb[0].mxu0
          %4874 = vdwg.mxu0
          %vm4875 = vcmask 74752
          %4876 = vst.msk [vmem:[#allocation4] sm:$0x3] %vm4875, %v4872
        $region80: #{net_forward.1} parent=71 // pred_fallthru
          _
        // Predicated region
        $region81: #{net_forward.1} parent=71 // pred_check
          %p4877 = pneg %p361
        $region82: #{net_forward.1} parent=71 // pred_check_branch
          %4879 = sbr.rel (%p4877) target = $region84
        $region83: #{net_forward.1} parent=71 // pred_region
          %s4881 = ssub.s32 32, 32
          %4882 = vsyncadd [#allocation5], %s4881
          %s4884 = sshll.u32 [#allocation4], 4
          %s4885 = int_to_ptr.vmem [resolvable:$true] %s4884
          %4887 = dma.vmem_to_hbm [thread:$0]  %s4885, 32, %s13, [#allocation5]
        $region84: #{net_forward.1} parent=71 // pred_fallthru
          _
        // Predicated region
        $region85: #{net_forward.1} parent=71 // pred_check
          %p4888 = pneg %p361
        $region86: #{net_forward.1} parent=71 // pred_check_branch
          %4890 = sbr.rel (%p4888) target = $region88
        $region87: #{net_forward.1} parent=71 // pred_region
          %4891 = dma.done [#allocation5], 32
        $region88: #{net_forward.1} parent=71 // pred_fallthru
          _
      $region72: #{net_forward.1} parent=5 // pred_fallthru
        _
      %p4892 = scmp.le.s32.totalorder 2, %s20
      // Predicated region
      $region89: #{net_forward.1} parent=5 // pred_check
        %p4893 = pneg %p4892
      $region90: #{net_forward.1} parent=5 // pred_check_branch
        %4895 = sbr.rel (%p4893) target = $region92
      $region91: #{net_forward.1} parent=5 // pred_region
        %s4896 = ssub.s32 %s20, 2
      $region92: #{net_forward.1} parent=5 // pred_fallthru
        _
    $region6: #{net_forward.1} parent=1 // loop_footer
      %s24 = sadd.s32 1, %s20
    $region7: #{net_forward.1} parent=1 // loop_footer_branch
      %19 = sbr.rel target = $region3
    $region8: #{net_forward.1} parent=1 // loop_exit
      _
    %4897 = vsyncpa [#allocation5], 1
    %s4898 = scalar_lea.sflag [#allocation5], 1
    %4899 = vsyncpa %s4898, 1

</llo_original>
